<compile_context>
chip_gen: v7x
topology: tpu7x:2x2x1
jax: 0.10.0
libtpu: 0.0.40
codegen_flags: <defaults>
</compile_context>

<pallas_src>
import jax
import jax.numpy as jnp
from jax.experimental import pallas as pl
from jax.experimental.pallas import tpu as pltpu

# ---------------- configuration (small, lane/sublane-aligned toy shapes) ------
B = 4                        # batch
C = 3                        # image channels
IMG = 32                     # image H = W
PATCH = 16                   # patch size (stride == kernel)
N_PATCH = (IMG // PATCH) ** 2         # 4
TOKENS = N_PATCH + 1                  # CLS + patches = 5
T_PAD = 8                             # token rows padded to a full sublane group
EMBED = 128                           # embedding (lane-dense toy; real dinov2_b=768)
HEADS = 2
HEAD_DIM = EMBED // HEADS             # 64
DEPTH = 2                             # transformer blocks
MLP_HIDDEN = 4 * EMBED                # 512
CPP = C * PATCH * PATCH               # 768 (patchified feature length)
NUM_CLASSES_MAIN = 3                  # Classifier(3, 'dinov2_b', ...)
NUM_TILE = 4                          # Tile_Classifier(4, ...)
NUM_WALL = 8                          # Wall_Classifier(8, ...)
NUM_HEADS_OUT = NUM_CLASSES_MAIN + NUM_TILE + NUM_WALL   # 15
HEAD_PAD = 128                        # padded, lane-dense fused head output width
LN_EPS = 1e-6                         # DINOv2 LayerNorm eps
CHUNK_B = 2                           # samples folded into one matmul M-slab


# ---------------- in-kernel helpers -------------------------------------------
def _ln(x, g, b):
    mu = jnp.mean(x, axis=-1, keepdims=True)
    var = jnp.mean(jnp.square(x - mu), axis=-1, keepdims=True)
    return (x - mu) * jax.lax.rsqrt(var + LN_EPS) * g + b


# ---------------- kernel 1: patch-embed + CLS + pos-embed ----------------------
def _embed_kernel(patches_ref, wT_ref, b_ref, addin_ref, out_ref):
    tok = jnp.dot(patches_ref[...], wT_ref[...],
                  preferred_element_type=jnp.float32) + b_ref[...]
    r = jax.lax.broadcasted_iota(jnp.int32, tok.shape, 0) & (T_PAD - 1)
    keep = (r >= 1) & (r <= N_PATCH)          # only real patch rows keep the conv
    out_ref[...] = jnp.where(keep, tok, 0.0) + addin_ref[...]


# ---------------- kernel 2: fused transformer blocks + final LN + heads --------
def _backbone_kernel(
    tokens_ref,
    n1_g_ref, n1_b_ref, qkv_wT_ref, qkv_b_ref, proj_wT_ref, proj_b_ref,
    n2_g_ref, n2_b_ref, fc1_wT_ref, fc1_b_ref, fc2_wT_ref, fc2_b_ref,
    norm_g_ref, norm_b_ref, heads_wT_ref, heads_b_ref,
    feat_ref, heads_ref,
    x_res, kmask_sc,
):
    d = pl.program_id(1)
    m_ch = x_res.shape[0]
    chunk = m_ch // T_PAD

    # ---- depth step 0: load chunk tokens, hoist padded-key additive mask ------
    @pl.when(d == 0)
    def _init():
        x_res[...] = tokens_ref[...]
        col = jax.lax.broadcasted_iota(jnp.int32, (1, T_PAD, T_PAD), 2)
        kmask_sc[...] = jnp.where(col < TOKENS, 0.0, -1e30)

    # ---- transformer block `d` (residual stream stays resident in VMEM) -------
    x = x_res[...]                                                    # [M, E] f32
    xn = _ln(x, n1_g_ref[0], n1_b_ref[0])
    qkv = jnp.dot(xn.astype(jnp.bfloat16), qkv_wT_ref[0],
                  preferred_element_type=jnp.float32) + qkv_b_ref[0]  # [M, 3E]

    q = qkv[:, :EMBED].reshape(chunk, T_PAD, EMBED)
    k = qkv[:, EMBED:2 * EMBED].reshape(chunk, T_PAD, EMBED)
    v = qkv[:, 2 * EMBED:].reshape(chunk, T_PAD, EMBED)
    scale = 1.0 / (HEAD_DIM ** 0.5)
    kmask = kmask_sc[...]                                             # [1, T, T]

    outs = []
    for h in range(HEADS):            # static unroll; chunk-batched einsums
        lo = h * HEAD_DIM
        q_h = q[:, :, lo:lo + HEAD_DIM].astype(jnp.bfloat16)
        k_h = k[:, :, lo:lo + HEAD_DIM].astype(jnp.bfloat16)
        v_h = v[:, :, lo:lo + HEAD_DIM].astype(jnp.bfloat16)
        s = jnp.einsum('cqd,ckd->cqk', q_h, k_h,
                       preferred_element_type=jnp.float32)
        s = s * scale + kmask                     # block-local keys, mask padding
        p = jnp.exp(s - jnp.max(s, axis=-1, keepdims=True))
        p = p * pl.reciprocal(jnp.sum(p, axis=-1, keepdims=True), approx=True)
        outs.append(jnp.einsum('cqk,ckd->cqd', p.astype(jnp.bfloat16), v_h,
                               preferred_element_type=jnp.float32))
    o = jnp.concatenate(outs, axis=-1).reshape(m_ch, EMBED)           # [M, E]
    # single full-width output projection (LayerScale gamma_1 folded into W & b)
    attn = jnp.dot(o.astype(jnp.bfloat16), proj_wT_ref[0],
                   preferred_element_type=jnp.float32) + proj_b_ref[0]
    x = x + attn

    xn2 = _ln(x, n2_g_ref[0], n2_b_ref[0])
    h1 = jnp.dot(xn2.astype(jnp.bfloat16), fc1_wT_ref[0],
                 preferred_element_type=jnp.float32) + fc1_b_ref[0]
    h1 = 0.5 * h1 * (1.0 + jax.lax.erf(h1 * 0.7071067811865476))      # exact GELU
    x = x + jnp.dot(h1.astype(jnp.bfloat16), fc2_wT_ref[0],
                    preferred_element_type=jnp.float32) + fc2_b_ref[0]  # gamma_2 folded
    x_res[...] = x

    # ---- last depth step: final LN, CLS features, fused 3-way classifier head --
    @pl.when(d == DEPTH - 1)
    def _final():
        xn_f = _ln(x, norm_g_ref[...], norm_b_ref[...])               # [M, E]
        cls_emb = xn_f.reshape(chunk, T_PAD, EMBED)[:, 0, :]          # [chunk, E]
        logits = jnp.dot(cls_emb, heads_wT_ref[...],
                         preferred_element_type=jnp.float32) + heads_b_ref[...]
        colh = jax.lax.broadcasted_iota(jnp.int32, logits.shape, 1)
        is_main = colh < NUM_CLASSES_MAIN
        m = jnp.max(jnp.where(is_main, logits, -1e30), axis=-1, keepdims=True)
        e = jnp.where(is_main, jnp.exp(logits - m), 0.0)
        probs = e / jnp.sum(e, axis=-1, keepdims=True)                # exact softmax
        is_aux = (colh >= NUM_CLASSES_MAIN) & (colh < NUM_HEADS_OUT)
        sig = jnp.where(is_aux, 1.0 / (1.0 + jnp.exp(-logits)), 0.0)  # exact sigmoid
        feat_ref[0] = cls_emb                      # backbone feature (x_norm_clstoken)
        heads_ref[0] = probs + sig                 # [softmax(3) | sigm(4) | sigm(8) | 0..]


# ---------------- fused forward wrapper ----------------------------------------
@jax.jit
def backbone_and_heads(params, x):
    """x: [B, C, H, W] NCHW -> (feat [B,E], cls_probs [B,3], tile [B,4], wall [B,8])."""
    b, c, hh, ww = x.shape
    nh, nw = hh // PATCH, ww // PATCH
    # patchify (stride-P conv == patchify + linear); layout glue stays in XLA.
    patches = (x.reshape(b, c, nh, PATCH, nw, PATCH)
                 .transpose(0, 2, 4, 1, 3, 5)
                 .reshape(b, nh * nw, CPP))
    # pad token rows to T_PAD per sample: row 0 = CLS slot, trailing rows = padding.
    patches = jnp.concatenate(
        [jnp.zeros((b, 1, CPP), jnp.float32), patches,
         jnp.zeros((b, T_PAD - 1 - nh * nw, CPP), jnp.float32)], axis=1)
    patches = patches.reshape(b * T_PAD, CPP).astype(jnp.bfloat16)
    # CLS token + positional embedding as one additive term, tiled per sample.
    addin = params["pos"].at[0].add(params["cls"][0])
    addin = jnp.tile(addin, (b, 1))                                   # [b*T_PAD, E]

    m_all = b * T_PAD
    tokens = pl.pallas_call(
        _embed_kernel,
        grid=(1,),
        in_specs=[
            pl.BlockSpec((m_all, CPP), lambda i: (0, 0)),
            pl.BlockSpec((CPP, EMBED), lambda i: (0, 0)),
            pl.BlockSpec((1, EMBED), lambda i: (0, 0)),
            pl.BlockSpec((m_all, EMBED), lambda i: (0, 0)),
        ],
        out_specs=pl.BlockSpec((m_all, EMBED), lambda i: (0, 0)),
        out_shape=jax.ShapeDtypeStruct((m_all, EMBED), jnp.float32),
    )(patches, params["patch_wT"], params["patch_b"], addin)

    chunk_b = CHUNK_B if b % CHUNK_B == 0 else 1   # keep >=2 chunks for v7x megacore
    nchunk = b // chunk_b
    m_ch = chunk_b * T_PAD

    dep = lambda shape: pl.BlockSpec((1,) + shape, lambda ci, d: (d, 0, 0))
    cst = lambda shape: pl.BlockSpec(shape, lambda ci, d: (0, 0))

    feat, heads = pl.pallas_call(
        _backbone_kernel,
        grid=(nchunk, DEPTH),
        in_specs=(
            pl.BlockSpec((m_ch, EMBED), lambda ci, d: (ci, 0)),        # tokens
            dep((1, EMBED)), dep((1, EMBED)),                          # ln1 g/b
            dep((EMBED, 3 * EMBED)), dep((1, 3 * EMBED)),              # qkv wT / b
            dep((EMBED, EMBED)), dep((1, EMBED)),                      # proj wT / b
            dep((1, EMBED)), dep((1, EMBED)),                          # ln2 g/b
            dep((EMBED, MLP_HIDDEN)), dep((1, MLP_HIDDEN)),            # fc1 wT / b
            dep((MLP_HIDDEN, EMBED)), dep((1, EMBED)),                 # fc2 wT / b
            cst((1, EMBED)), cst((1, EMBED)),                          # final norm g/b
            cst((EMBED, HEAD_PAD)), cst((1, HEAD_PAD)),                # fused heads
        ),
        out_specs=(
            pl.BlockSpec((1, chunk_b, EMBED), lambda ci, d: (ci, 0, 0)),
            pl.BlockSpec((1, chunk_b, HEAD_PAD), lambda ci, d: (ci, 0, 0)),
        ),
        out_shape=(jax.ShapeDtypeStruct((nchunk, chunk_b, EMBED), jnp.float32),
                   jax.ShapeDtypeStruct((nchunk, chunk_b, HEAD_PAD), jnp.float32)),
        scratch_shapes=[pltpu.VMEM((m_ch, EMBED), jnp.float32),        # residual stream
                        pltpu.VMEM((1, T_PAD, T_PAD), jnp.float32)],   # hoisted key mask
        compiler_params=pltpu.CompilerParams(
            dimension_semantics=("parallel", "arbitrary"),
            vmem_limit_bytes=32 * 1024 * 1024),
    )(tokens,
      params["n1_g"], params["n1_b"], params["qkv_wT"], params["qkv_b"],
      params["proj_wT"], params["proj_b"], params["n2_g"], params["n2_b"],
      params["fc1_wT"], params["fc1_b"], params["fc2_wT"], params["fc2_b"],
      params["norm_g"], params["norm_b"], params["heads_wT"], params["heads_b"])

    feat = feat.reshape(b, EMBED)
    heads = heads.reshape(b, HEAD_PAD)
    cls_probs = heads[:, :NUM_CLASSES_MAIN]
    tile_probs = heads[:, NUM_CLASSES_MAIN:NUM_CLASSES_MAIN + NUM_TILE]
    wall_probs = heads[:, NUM_CLASSES_MAIN + NUM_TILE:NUM_HEADS_OUT]
    return feat, cls_probs, tile_probs, wall_probs


def unified_classifier_forward(params, x):
    """Mimics UnifiedClassifier.forward; branching/dict output done host-side."""
    feat, cls_probs, tile_probs, wall_probs = backbone_and_heads(params, x)
    # TODO(synk): the data-dependent Python if/elif + dict/.tolist() return of
    #             UnifiedClassifier.forward has no Pallas equivalent; it is
    #             evaluated host-side (per sample) from the fused head outputs.
    cls_np, tile_np, wall_np = map(jax.device_get, (cls_probs, tile_probs, wall_probs))
    preds = []
    for i in range(cls_np.shape[0]):
        val = float(cls_np[i].max())
        cls_id = int(cls_np[i].argmax())
        if cls_id == 0:
            preds.append({"prediction": [[val], [cls_id], None]})
        elif cls_id == 1:
            preds.append({"prediction": [[val], [cls_id], [tile_np[i].tolist()]]})
        else:
            preds.append({"prediction": [[val], [cls_id], [wall_np[i].tolist()]]})
    return preds, feat


# ---------------- parameters (deterministic, synthetic, pre-laid-out, bf16) -----
def init_params(key):
    keys = jax.random.split(key, 40)
    it = iter(keys)

    def nrm(shape, std=0.02):
        return jax.random.normal(next(it), shape, jnp.float32) * std

    patch_w = nrm((EMBED, CPP))                 # conv-as-linear, torch [out, in]
    patch_b = nrm((1, EMBED))
    cls_token = nrm((1, EMBED))
    pos = nrm((TOKENS, EMBED))
    pos_pad = jnp.zeros((T_PAD, EMBED), jnp.float32).at[:TOKENS].set(pos)

    qkv_wT, qkv_b, proj_wT, proj_b = [], [], [], []
    fc1_wT, fc1_b, fc2_wT, fc2_b = [], [], [], []
    for _ in range(DEPTH):
        g1 = jnp.full((EMBED,), 1e-5, jnp.float32)   # DINOv2 LayerScale init
        g2 = jnp.full((EMBED,), 1e-5, jnp.float32)
        qkv_wT.append(nrm((3 * EMBED, EMBED)).T)                     # [E, 3E]
        qkv_b.append(nrm((1, 3 * EMBED)))
        # LayerScale gamma folded into BOTH the weight and the bias: gamma*(Wx+b)
        proj_wT.append(nrm((EMBED, EMBED)).T * g1[None, :])
        proj_b.append(nrm((1, EMBED)) * g1[None, :])
        fc1_wT.append(nrm((MLP_HIDDEN, EMBED)).T)                    # [E, MLP]
        fc1_b.append(nrm((1, MLP_HIDDEN)))
        fc2_wT.append(nrm((EMBED, MLP_HIDDEN)).T * g2[None, :])      # [MLP, E]
        fc2_b.append(nrm((1, EMBED)) * g2[None, :])

    # three heads (main=3 softmax, tile=4 sigmoid, wall=8 sigmoid) fused + padded
    head_w = jnp.concatenate([nrm((NUM_CLASSES_MAIN, EMBED)),
                              nrm((NUM_TILE, EMBED)),
                              nrm((NUM_WALL, EMBED))], axis=0)       # [15, E]
    head_b = jnp.concatenate([nrm((1, NUM_CLASSES_MAIN)),
                              nrm((1, NUM_TILE)),
                              nrm((1, NUM_WALL))], axis=1)           # [1, 15]
    heads_wT = jnp.zeros((EMBED, HEAD_PAD), jnp.float32
                         ).at[:, :NUM_HEADS_OUT].set(head_w.T)
    heads_b = jnp.zeros((1, HEAD_PAD), jnp.float32
                        ).at[:, :NUM_HEADS_OUT].set(head_b)

    bf = lambda a: a.astype(jnp.bfloat16)       # frozen weights in bf16
    return {
        "patch_wT": bf(patch_w.T), "patch_b": patch_b,
        "cls": cls_token, "pos": pos_pad,
        "n1_g": jnp.ones((DEPTH, 1, EMBED), jnp.float32),
        "n1_b": jnp.zeros((DEPTH, 1, EMBED), jnp.float32),
        "qkv_wT": bf(jnp.stack(qkv_wT)), "qkv_b": jnp.stack(qkv_b),
        "proj_wT": bf(jnp.stack(proj_wT)), "proj_b": jnp.stack(proj_b),
        "n2_g": jnp.ones((DEPTH, 1, EMBED), jnp.float32),
        "n2_b": jnp.zeros((DEPTH, 1, EMBED), jnp.float32),
        "fc1_wT": bf(jnp.stack(fc1_wT)), "fc1_b": jnp.stack(fc1_b),
        "fc2_wT": bf(jnp.stack(fc2_wT)), "fc2_b": jnp.stack(fc2_b),
        "norm_g": jnp.ones((1, EMBED), jnp.float32),
        "norm_b": jnp.zeros((1, EMBED), jnp.float32),
        "heads_wT": heads_wT, "heads_b": heads_b,   # tiny, run once -> keep f32
    }


# ---------------- main ----------------------------------------------------------
if __name__ == "__main__":
    key = jax.random.PRNGKey(0)
    pkey, xkey = jax.random.split(key)
    params = init_params(pkey)
    x = jax.random.normal(xkey, (B, C, IMG, IMG), jnp.float32)

    feat, cls_probs, tile_probs, wall_probs = backbone_and_heads(params, x)
    jax.block_until_ready((feat, cls_probs, tile_probs, wall_probs))

    preds, _ = unified_classifier_forward(params, x)

    assert feat.shape == (B, EMBED), feat.shape
    assert cls_probs.shape == (B, NUM_CLASSES_MAIN)
    assert tile_probs.shape == (B, NUM_TILE)
    assert wall_probs.shape == (B, NUM_WALL)
    assert bool(jnp.all(jnp.isfinite(feat)))
    assert bool(jnp.allclose(jnp.sum(cls_probs, axis=-1), 1.0, atol=1e-3))
    assert bool(jnp.all((tile_probs >= 0.0) & (tile_probs <= 1.0)))
    assert bool(jnp.all((wall_probs >= 0.0) & (wall_probs <= 1.0)))
    assert len(preds) == B and all("prediction" in p for p in preds)
    print("KERNEL_OK")
</pallas_src>

<mosaic_0001>
module attributes {stable_mosaic.version = 11 : i64} {
  func.func @_embed_kernel(%arg0: i32, %arg1: memref<32x768xbf16, #tpu.memory_space<vmem>>, %arg2: memref<768x128xbf16, #tpu.memory_space<vmem>>, %arg3: memref<1x128xf32, #tpu.memory_space<vmem>>, %arg4: memref<32x128xf32, #tpu.memory_space<vmem>>, %arg5: memref<32x128xf32, #tpu.memory_space<vmem>>) attributes {dimension_semantics = [#tpu.dimension_semantics<arbitrary>], iteration_bounds = array<i64: 1>, scalar_prefetch = 0 : i64, scratch_operands = 0 : i64, tpu.core_type = #tpu.core_type<tc>, window_params = [{pipeline_mode = #tpu.pipeline_mode<synchronous>, transform_indices = @transform_0, window_bounds = array<i64: 32, 768>}, {pipeline_mode = #tpu.pipeline_mode<synchronous>, transform_indices = @transform_1, window_bounds = array<i64: 768, 128>}, {pipeline_mode = #tpu.pipeline_mode<synchronous>, transform_indices = @transform_2, window_bounds = array<i64: 1, 128>}, {pipeline_mode = #tpu.pipeline_mode<synchronous>, transform_indices = @transform_3, window_bounds = array<i64: 32, 128>}, {pipeline_mode = #tpu.pipeline_mode<synchronous>, transform_indices = @transform_4, window_bounds = array<i64: 32, 128>}]} {
    %c0 = arith.constant 0 : index
    %c0_0 = arith.constant 0 : index
    %0 = vector.load %arg1[%c0, %c0_0] : memref<32x768xbf16, #tpu.memory_space<vmem>>, vector<32x768xbf16>
    %c0_1 = arith.constant 0 : index
    %c0_2 = arith.constant 0 : index
    %1 = vector.load %arg2[%c0_1, %c0_2] : memref<768x128xbf16, #tpu.memory_space<vmem>>, vector<768x128xbf16>
    %cst = arith.constant dense<0.000000e+00> : vector<32x128xf32>
    %2 = tpu.matmul %0, %1, %cst {dimension_numbers = #tpu.dot_dimension_numbers<[1], [0], [0], [1], [0, 0, 1, 1], [], []>} : vector<32x768xbf16>, vector<768x128xbf16>, vector<32x128xf32> -> vector<32x128xf32>
    %c0_3 = arith.constant 0 : index
    %c0_4 = arith.constant 0 : index
    %3 = vector.load %arg3[%c0_3, %c0_4] : memref<1x128xf32, #tpu.memory_space<vmem>>, vector<1x128xf32>
    %4 = vector.broadcast %3 : vector<1x128xf32> to vector<32x128xf32>
    %5 = arith.addf %2, %4 : vector<32x128xf32>
    %6 = tpu.iota {dimensions = array<i32: 0>} : vector<32x128xi32>
    %c7_i32 = arith.constant 7 : i32
    %7 = vector.broadcast %c7_i32 : i32 to vector<32x128xi32>
    %8 = arith.andi %6, %7 : vector<32x128xi32>
    %c1_i32 = arith.constant 1 : i32
    %9 = vector.broadcast %c1_i32 : i32 to vector<32x128xi32>
    %10 = arith.cmpi sge, %8, %9 : vector<32x128xi32>
    %c4_i32 = arith.constant 4 : i32
    %11 = vector.broadcast %c4_i32 : i32 to vector<32x128xi32>
    %12 = arith.cmpi sle, %8, %11 : vector<32x128xi32>
    %13 = arith.andi %10, %12 : vector<32x128xi1>
    %cst_5 = arith.constant 0.000000e+00 : f32
    %14 = vector.broadcast %cst_5 : f32 to vector<32x128xf32>
    %15 = arith.select %13, %5, %14 : vector<32x128xi1>, vector<32x128xf32>
    %c0_6 = arith.constant 0 : index
    %c0_7 = arith.constant 0 : index
    %16 = vector.load %arg4[%c0_6, %c0_7] : memref<32x128xf32, #tpu.memory_space<vmem>>, vector<32x128xf32>
    %17 = arith.addf %15, %16 : vector<32x128xf32>
    %c0_8 = arith.constant 0 : index
    %c0_9 = arith.constant 0 : index
    %18 = vector.load %arg5[%c0_8, %c0_9] : memref<32x128xf32, #tpu.memory_space<vmem>>, vector<32x128xf32>
    tpu.vector_store %arg5[%c0_8, %c0_9], %17 {strides = array<i32>} : memref<32x128xf32, #tpu.memory_space<vmem>>, vector<32x128xf32>,
    return
  }
  func.func @transform_0(%arg0: i32) -> (i32, i32) {
    %c0_i32 = arith.constant 0 : i32
    %c0_i32_0 = arith.constant 0 : i32
    %c0_i32_1 = arith.constant 0 : i32
    return %c0_i32, %c0_i32_0 : i32, i32
  }
  func.func @transform_1(%arg0: i32) -> (i32, i32) {
    %c0_i32 = arith.constant 0 : i32
    %c0_i32_0 = arith.constant 0 : i32
    %c0_i32_1 = arith.constant 0 : i32
    return %c0_i32, %c0_i32_0 : i32, i32
  }
  func.func @transform_2(%arg0: i32) -> (i32, i32) {
    %c0_i32 = arith.constant 0 : i32
    %c0_i32_0 = arith.constant 0 : i32
    %c0_i32_1 = arith.constant 0 : i32
    return %c0_i32, %c0_i32_0 : i32, i32
  }
  func.func @transform_3(%arg0: i32) -> (i32, i32) {
    %c0_i32 = arith.constant 0 : i32
    %c0_i32_0 = arith.constant 0 : i32
    %c0_i32_1 = arith.constant 0 : i32
    return %c0_i32, %c0_i32_0 : i32, i32
  }
  func.func @transform_4(%arg0: i32) -> (i32, i32) {
    %c0_i32 = arith.constant 0 : i32
    %c0_i32_0 = arith.constant 0 : i32
    %c0_i32_1 = arith.constant 0 : i32
    return %c0_i32, %c0_i32_0 : i32, i32
  }
}

module attributes {stable_mosaic.version = 11 : i64} {
  func.func @_backbone_kernel(%arg0: i32, %arg1: i32, %arg2: memref<16x128xf32, #tpu.memory_space<vmem>>, %arg3: memref<1x1x128xf32, #tpu.memory_space<vmem>>, %arg4: memref<1x1x128xf32, #tpu.memory_space<vmem>>, %arg5: memref<1x128x384xbf16, #tpu.memory_space<vmem>>, %arg6: memref<1x1x384xf32, #tpu.memory_space<vmem>>, %arg7: memref<1x128x128xbf16, #tpu.memory_space<vmem>>, %arg8: memref<1x1x128xf32, #tpu.memory_space<vmem>>, %arg9: memref<1x1x128xf32, #tpu.memory_space<vmem>>, %arg10: memref<1x1x128xf32, #tpu.memory_space<vmem>>, %arg11: memref<1x128x512xbf16, #tpu.memory_space<vmem>>, %arg12: memref<1x1x512xf32, #tpu.memory_space<vmem>>, %arg13: memref<1x512x128xbf16, #tpu.memory_space<vmem>>, %arg14: memref<1x1x128xf32, #tpu.memory_space<vmem>>, %arg15: memref<1x128xf32, #tpu.memory_space<vmem>>, %arg16: memref<1x128xf32, #tpu.memory_space<vmem>>, %arg17: memref<128x128xf32, #tpu.memory_space<vmem>>, %arg18: memref<1x128xf32, #tpu.memory_space<vmem>>, %arg19: memref<1x2x128xf32, #tpu.memory_space<vmem>>, %arg20: memref<1x2x128xf32, #tpu.memory_space<vmem>>, %arg21: memref<16x128xf32, #tpu.memory_space<vmem>>, %arg22: memref<1x8x8xf32, #tpu.memory_space<vmem>>) attributes {dimension_semantics = [#tpu.dimension_semantics<parallel>, #tpu.dimension_semantics<arbitrary>], iteration_bounds = array<i64: 2, 2>, scalar_prefetch = 0 : i64, scratch_operands = 2 : i64, tpu.core_type = #tpu.core_type<tc>, window_params = [{transform_indices = @transform_0, window_bounds = array<i64: 16, 128>}, {transform_indices = @transform_1, window_bounds = array<i64: 1, 1, 128>}, {transform_indices = @transform_2, window_bounds = array<i64: 1, 1, 128>}, {transform_indices = @transform_3, window_bounds = array<i64: 1, 128, 384>}, {transform_indices = @transform_4, window_bounds = array<i64: 1, 1, 384>}, {transform_indices = @transform_5, window_bounds = array<i64: 1, 128, 128>}, {transform_indices = @transform_6, window_bounds = array<i64: 1, 1, 128>}, {transform_indices = @transform_7, window_bounds = array<i64: 1, 1, 128>}, {transform_indices = @transform_8, window_bounds = array<i64: 1, 1, 128>}, {transform_indices = @transform_9, window_bounds = array<i64: 1, 128, 512>}, {transform_indices = @transform_10, window_bounds = array<i64: 1, 1, 512>}, {transform_indices = @transform_11, window_bounds = array<i64: 1, 512, 128>}, {transform_indices = @transform_12, window_bounds = array<i64: 1, 1, 128>}, {pipeline_mode = #tpu.pipeline_mode<synchronous>, transform_indices = @transform_13, window_bounds = array<i64: 1, 128>}, {pipeline_mode = #tpu.pipeline_mode<synchronous>, transform_indices = @transform_14, window_bounds = array<i64: 1, 128>}, {pipeline_mode = #tpu.pipeline_mode<synchronous>, transform_indices = @transform_15, window_bounds = array<i64: 128, 128>}, {pipeline_mode = #tpu.pipeline_mode<synchronous>, transform_indices = @transform_16, window_bounds = array<i64: 1, 128>}, {transform_indices = @transform_17, window_bounds = array<i64: 1, 2, 128>}, {transform_indices = @transform_18, window_bounds = array<i64: 1, 2, 128>}]} {
    %c0_i32 = arith.constant 0 : i32
    %0 = arith.cmpi eq, %arg1, %c0_i32 : i32
    %1 = arith.extui %0 : i1 to i32
    %c0_i32_0 = arith.constant 0 : i32
    %2 = arith.cmpi ne, %1, %c0_i32_0 : i32
    scf.if %2 {
      %c0_70 = arith.constant 0 : index
      %c0_71 = arith.constant 0 : index
      %157 = vector.load %arg2[%c0_70, %c0_71] : memref<16x128xf32, #tpu.memory_space<vmem>>, vector<16x128xf32>
      %c0_72 = arith.constant 0 : index
      %c0_73 = arith.constant 0 : index
      %158 = vector.load %arg21[%c0_72, %c0_73] : memref<16x128xf32, #tpu.memory_space<vmem>>, vector<16x128xf32>
      tpu.vector_store %arg21[%c0_72, %c0_73], %157 {strides = array<i32>} : memref<16x128xf32, #tpu.memory_space<vmem>>, vector<16x128xf32>,
      %159 = tpu.iota {dimensions = array<i32: 2>} : vector<1x8x8xi32>
      %c5_i32 = arith.constant 5 : i32
      %160 = vector.broadcast %c5_i32 : i32 to vector<1x8x8xi32>
      %161 = arith.cmpi slt, %159, %160 : vector<1x8x8xi32>
      %cst_74 = arith.constant 0.000000e+00 : f32
      %cst_75 = arith.constant -1.000000e+30 : f32
      %162 = vector.broadcast %cst_74 : f32 to vector<1x8x8xf32>
      %163 = vector.broadcast %cst_75 : f32 to vector<1x8x8xf32>
      %164 = arith.select %161, %162, %163 : vector<1x8x8xi1>, vector<1x8x8xf32>
      %c0_76 = arith.constant 0 : index
      %c0_77 = arith.constant 0 : index
      %c0_78 = arith.constant 0 : index
      %165 = vector.load %arg22[%c0_76, %c0_77, %c0_78] : memref<1x8x8xf32, #tpu.memory_space<vmem>>, vector<1x8x8xf32>
      tpu.vector_store %arg22[%c0_76, %c0_77, %c0_78], %164 {strides = array<i32>} : memref<1x8x8xf32, #tpu.memory_space<vmem>>, vector<1x8x8xf32>,
    } else {
    }
    %c0 = arith.constant 0 : index
    %c0_1 = arith.constant 0 : index
    %3 = vector.load %arg21[%c0, %c0_1] : memref<16x128xf32, #tpu.memory_space<vmem>>, vector<16x128xf32>
    %c0_2 = arith.constant 0 : index
    %c0_3 = arith.constant 0 : index
    %c0_4 = arith.constant 0 : index
    %4 = vector.load %arg3[%c0_2, %c0_3, %c0_4] : memref<1x1x128xf32, #tpu.memory_space<vmem>>, vector<1x1x128xf32>
    %5 = vector.shape_cast %4 : vector<1x1x128xf32> to vector<1x128xf32>
    %c0_5 = arith.constant 0 : index
    %c0_6 = arith.constant 0 : index
    %c0_7 = arith.constant 0 : index
    %6 = vector.load %arg4[%c0_5, %c0_6, %c0_7] : memref<1x1x128xf32, #tpu.memory_space<vmem>>, vector<1x1x128xf32>
    %7 = vector.shape_cast %6 : vector<1x1x128xf32> to vector<1x128xf32>
    %cst = arith.constant dense<0.000000e+00> : vector<16xf32>
    %8 = vector.multi_reduction <add>, %3, %cst [1] : vector<16x128xf32> to vector<16xf32>
    %9 = vector.shape_cast %8 : vector<16xf32> to vector<16x1xf32>
    %cst_8 = arith.constant 1.280000e+02 : f32
    %10 = vector.broadcast %cst_8 : f32 to vector<16x1xf32>
    %11 = arith.divf %9, %10 : vector<16x1xf32>
    %12 = vector.broadcast %11 : vector<16x1xf32> to vector<16x128xf32>
    %13 = arith.subf %3, %12 : vector<16x128xf32>
    %14 = arith.mulf %13, %13 : vector<16x128xf32>
    %cst_9 = arith.constant dense<0.000000e+00> : vector<16xf32>
    %15 = vector.multi_reduction <add>, %14, %cst_9 [1] : vector<16x128xf32> to vector<16xf32>
    %16 = vector.shape_cast %15 : vector<16xf32> to vector<16x1xf32>
    %cst_10 = arith.constant 1.280000e+02 : f32
    %17 = vector.broadcast %cst_10 : f32 to vector<16x1xf32>
    %18 = arith.divf %16, %17 : vector<16x1xf32>
    %19 = vector.broadcast %11 : vector<16x1xf32> to vector<16x128xf32>
    %20 = arith.subf %3, %19 : vector<16x128xf32>
    %cst_11 = arith.constant 9.99999997E-7 : f32
    %21 = vector.broadcast %cst_11 : f32 to vector<16x1xf32>
    %22 = arith.addf %18, %21 : vector<16x1xf32>
    %23 = math.rsqrt %22 : vector<16x1xf32>
    %24 = vector.broadcast %23 : vector<16x1xf32> to vector<16x128xf32>
    %25 = arith.mulf %20, %24 : vector<16x128xf32>
    %26 = vector.broadcast %5 : vector<1x128xf32> to vector<16x128xf32>
    %27 = arith.mulf %25, %26 : vector<16x128xf32>
    %28 = vector.broadcast %7 : vector<1x128xf32> to vector<16x128xf32>
    %29 = arith.addf %27, %28 : vector<16x128xf32>
    %30 = arith.truncf %29 : vector<16x128xf32> to vector<16x128xbf16>
    %c0_12 = arith.constant 0 : index
    %c0_13 = arith.constant 0 : index
    %c0_14 = arith.constant 0 : index
    %31 = vector.load %arg5[%c0_12, %c0_13, %c0_14] : memref<1x128x384xbf16, #tpu.memory_space<vmem>>, vector<1x128x384xbf16>
    %32 = vector.shape_cast %31 : vector<1x128x384xbf16> to vector<128x384xbf16>
    %cst_15 = arith.constant dense<0.000000e+00> : vector<16x384xf32>
    %33 = tpu.matmul %30, %32, %cst_15 {dimension_numbers = #tpu.dot_dimension_numbers<[1], [0], [0], [1], [0, 0, 1, 1], [], []>} : vector<16x128xbf16>, vector<128x384xbf16>, vector<16x384xf32> -> vector<16x384xf32>
    %c0_16 = arith.constant 0 : index
    %c0_17 = arith.constant 0 : index
    %c0_18 = arith.constant 0 : index
    %34 = vector.load %arg6[%c0_16, %c0_17, %c0_18] : memref<1x1x384xf32, #tpu.memory_space<vmem>>, vector<1x1x384xf32>
    %35 = vector.shape_cast %34 : vector<1x1x384xf32> to vector<1x384xf32>
    %36 = vector.broadcast %35 : vector<1x384xf32> to vector<16x384xf32>
    %37 = arith.addf %33, %36 : vector<16x384xf32>
    %38 = vector.extract_strided_slice %37 {offsets = [0, 0], sizes = [16, 128], strides = [1, 1]} : vector<16x384xf32> to vector<16x128xf32>
    %39 = vector.shape_cast %38 : vector<16x128xf32> to vector<2x8x128xf32>
    %40 = vector.extract_strided_slice %37 {offsets = [0, 128], sizes = [16, 128], strides = [1, 1]} : vector<16x384xf32> to vector<16x128xf32>
    %41 = vector.shape_cast %40 : vector<16x128xf32> to vector<2x8x128xf32>
    %42 = vector.extract_strided_slice %37 {offsets = [0, 256], sizes = [16, 128], strides = [1, 1]} : vector<16x384xf32> to vector<16x128xf32>
    %43 = vector.shape_cast %42 : vector<16x128xf32> to vector<2x8x128xf32>
    %c0_19 = arith.constant 0 : index
    %c0_20 = arith.constant 0 : index
    %c0_21 = arith.constant 0 : index
    %44 = vector.load %arg22[%c0_19, %c0_20, %c0_21] : memref<1x8x8xf32, #tpu.memory_space<vmem>>, vector<1x8x8xf32>
    %45 = vector.extract_strided_slice %39 {offsets = [0, 0, 0], sizes = [2, 8, 64], strides = [1, 1, 1]} : vector<2x8x128xf32> to vector<2x8x64xf32>
    %46 = arith.truncf %45 : vector<2x8x64xf32> to vector<2x8x64xbf16>
    %47 = vector.extract_strided_slice %41 {offsets = [0, 0, 0], sizes = [2, 8, 64], strides = [1, 1, 1]} : vector<2x8x128xf32> to vector<2x8x64xf32>
    %48 = arith.truncf %47 : vector<2x8x64xf32> to vector<2x8x64xbf16>
    %49 = vector.extract_strided_slice %43 {offsets = [0, 0, 0], sizes = [2, 8, 64], strides = [1, 1, 1]} : vector<2x8x128xf32> to vector<2x8x64xf32>
    %50 = arith.truncf %49 : vector<2x8x64xf32> to vector<2x8x64xbf16>
    "tpu.trace_start"() <{level = 10 : i32, message = "cqd,ckd->cqk"}> : () -> ()
    %cst_22 = arith.constant dense<0.000000e+00> : vector<2x8x8xf32>
    %51 = tpu.matmul %46, %48, %cst_22 {dimension_numbers = #tpu.dot_dimension_numbers<[2], [2], [1], [1], [0, 0, 0, 1, 1, 1], [0], [0]>} : vector<2x8x64xbf16>, vector<2x8x64xbf16>, vector<2x8x8xf32> -> vector<2x8x8xf32>
    "tpu.trace_stop"() : () -> ()
    %cst_23 = arith.constant 1.250000e-01 : f32
    %52 = vector.broadcast %cst_23 : f32 to vector<2x8x8xf32>
    %53 = arith.mulf %51, %52 : vector<2x8x8xf32>
    %54 = vector.broadcast %44 : vector<1x8x8xf32> to vector<2x8x8xf32>
    %55 = arith.addf %53, %54 : vector<2x8x8xf32>
    %cst_24 = arith.constant dense<0xFF800000> : vector<2x8xf32>
    %56 = vector.multi_reduction <maximumf>, %55, %cst_24 [2] : vector<2x8x8xf32> to vector<2x8xf32>
    %57 = vector.shape_cast %56 : vector<2x8xf32> to vector<2x8x1xf32>
    %58 = vector.broadcast %57 : vector<2x8x1xf32> to vector<2x8x8xf32>
    %59 = arith.subf %55, %58 : vector<2x8x8xf32>
    %60 = math.exp %59 : vector<2x8x8xf32>
    %cst_25 = arith.constant dense<0.000000e+00> : vector<2x8xf32>
    %61 = vector.multi_reduction <add>, %60, %cst_25 [2] : vector<2x8x8xf32> to vector<2x8xf32>
    %62 = vector.shape_cast %61 : vector<2x8xf32> to vector<2x8x1xf32>
    %63 = tpu.reciprocal %62 {approx = true} : vector<2x8x1xf32> -> vector<2x8x1xf32>
    %64 = vector.broadcast %63 : vector<2x8x1xf32> to vector<2x8x8xf32>
    %65 = arith.mulf %60, %64 : vector<2x8x8xf32>
    %66 = arith.truncf %65 : vector<2x8x8xf32> to vector<2x8x8xbf16>
    "tpu.trace_start"() <{level = 10 : i32, message = "cqk,ckd->cqd"}> : () -> ()
    %cst_26 = arith.constant dense<0.000000e+00> : vector<2x8x64xf32>
    %67 = tpu.matmul %66, %50, %cst_26 {dimension_numbers = #tpu.dot_dimension_numbers<[2], [1], [1], [2], [0, 0, 0, 1, 1, 2], [0], [0]>} : vector<2x8x8xbf16>, vector<2x8x64xbf16>, vector<2x8x64xf32> -> vector<2x8x64xf32>
    "tpu.trace_stop"() : () -> ()
    %68 = vector.extract_strided_slice %39 {offsets = [0, 0, 64], sizes = [2, 8, 64], strides = [1, 1, 1]} : vector<2x8x128xf32> to vector<2x8x64xf32>
    %69 = arith.truncf %68 : vector<2x8x64xf32> to vector<2x8x64xbf16>
    %70 = vector.extract_strided_slice %41 {offsets = [0, 0, 64], sizes = [2, 8, 64], strides = [1, 1, 1]} : vector<2x8x128xf32> to vector<2x8x64xf32>
    %71 = arith.truncf %70 : vector<2x8x64xf32> to vector<2x8x64xbf16>
    %72 = vector.extract_strided_slice %43 {offsets = [0, 0, 64], sizes = [2, 8, 64], strides = [1, 1, 1]} : vector<2x8x128xf32> to vector<2x8x64xf32>
    %73 = arith.truncf %72 : vector<2x8x64xf32> to vector<2x8x64xbf16>
    "tpu.trace_start"() <{level = 10 : i32, message = "cqd,ckd->cqk"}> : () -> ()
    %cst_27 = arith.constant dense<0.000000e+00> : vector<2x8x8xf32>
    %74 = tpu.matmul %69, %71, %cst_27 {dimension_numbers = #tpu.dot_dimension_numbers<[2], [2], [1], [1], [0, 0, 0, 1, 1, 1], [0], [0]>} : vector<2x8x64xbf16>, vector<2x8x64xbf16>, vector<2x8x8xf32> -> vector<2x8x8xf32>
    "tpu.trace_stop"() : () -> ()
    %cst_28 = arith.constant 1.250000e-01 : f32
    %75 = vector.broadcast %cst_28 : f32 to vector<2x8x8xf32>
    %76 = arith.mulf %74, %75 : vector<2x8x8xf32>
    %77 = vector.broadcast %44 : vector<1x8x8xf32> to vector<2x8x8xf32>
    %78 = arith.addf %76, %77 : vector<2x8x8xf32>
    %cst_29 = arith.constant dense<0xFF800000> : vector<2x8xf32>
    %79 = vector.multi_reduction <maximumf>, %78, %cst_29 [2] : vector<2x8x8xf32> to vector<2x8xf32>
    %80 = vector.shape_cast %79 : vector<2x8xf32> to vector<2x8x1xf32>
    %81 = vector.broadcast %80 : vector<2x8x1xf32> to vector<2x8x8xf32>
    %82 = arith.subf %78, %81 : vector<2x8x8xf32>
    %83 = math.exp %82 : vector<2x8x8xf32>
    %cst_30 = arith.constant dense<0.000000e+00> : vector<2x8xf32>
    %84 = vector.multi_reduction <add>, %83, %cst_30 [2] : vector<2x8x8xf32> to vector<2x8xf32>
    %85 = vector.shape_cast %84 : vector<2x8xf32> to vector<2x8x1xf32>
    %86 = tpu.reciprocal %85 {approx = true} : vector<2x8x1xf32> -> vector<2x8x1xf32>
    %87 = vector.broadcast %86 : vector<2x8x1xf32> to vector<2x8x8xf32>
    %88 = arith.mulf %83, %87 : vector<2x8x8xf32>
    %89 = arith.truncf %88 : vector<2x8x8xf32> to vector<2x8x8xbf16>
    "tpu.trace_start"() <{level = 10 : i32, message = "cqk,ckd->cqd"}> : () -> ()
    %cst_31 = arith.constant dense<0.000000e+00> : vector<2x8x64xf32>
    %90 = tpu.matmul %89, %73, %cst_31 {dimension_numbers = #tpu.dot_dimension_numbers<[2], [1], [1], [2], [0, 0, 0, 1, 1, 2], [0], [0]>} : vector<2x8x8xbf16>, vector<2x8x64xbf16>, vector<2x8x64xf32> -> vector<2x8x64xf32>
    "tpu.trace_stop"() : () -> ()
    %91 = tpu.concatenate %67, %90 in 2 : vector<2x8x64xf32>, vector<2x8x64xf32> -> vector<2x8x128xf32>
    %92 = vector.shape_cast %91 : vector<2x8x128xf32> to vector<16x128xf32>
    %93 = arith.truncf %92 : vector<16x128xf32> to vector<16x128xbf16>
    %c0_32 = arith.constant 0 : index
    %c0_33 = arith.constant 0 : index
    %c0_34 = arith.constant 0 : index
    %94 = vector.load %arg7[%c0_32, %c0_33, %c0_34] : memref<1x128x128xbf16, #tpu.memory_space<vmem>>, vector<1x128x128xbf16>
    %95 = vector.shape_cast %94 : vector<1x128x128xbf16> to vector<128x128xbf16>
    %cst_35 = arith.constant dense<0.000000e+00> : vector<16x128xf32>
    %96 = tpu.matmul %93, %95, %cst_35 {dimension_numbers = #tpu.dot_dimension_numbers<[1], [0], [0], [1], [0, 0, 1, 1], [], []>} : vector<16x128xbf16>, vector<128x128xbf16>, vector<16x128xf32> -> vector<16x128xf32>
    %c0_36 = arith.constant 0 : index
    %c0_37 = arith.constant 0 : index
    %c0_38 = arith.constant 0 : index
    %97 = vector.load %arg8[%c0_36, %c0_37, %c0_38] : memref<1x1x128xf32, #tpu.memory_space<vmem>>, vector<1x1x128xf32>
    %98 = vector.shape_cast %97 : vector<1x1x128xf32> to vector<1x128xf32>
    %99 = vector.broadcast %98 : vector<1x128xf32> to vector<16x128xf32>
    %100 = arith.addf %96, %99 : vector<16x128xf32>
    %101 = arith.addf %3, %100 : vector<16x128xf32>
    %c0_39 = arith.constant 0 : index
    %c0_40 = arith.constant 0 : index
    %c0_41 = arith.constant 0 : index
    %102 = vector.load %arg9[%c0_39, %c0_40, %c0_41] : memref<1x1x128xf32, #tpu.memory_space<vmem>>, vector<1x1x128xf32>
    %103 = vector.shape_cast %102 : vector<1x1x128xf32> to vector<1x128xf32>
    %c0_42 = arith.constant 0 : index
    %c0_43 = arith.constant 0 : index
    %c0_44 = arith.constant 0 : index
    %104 = vector.load %arg10[%c0_42, %c0_43, %c0_44] : memref<1x1x128xf32, #tpu.memory_space<vmem>>, vector<1x1x128xf32>
    %105 = vector.shape_cast %104 : vector<1x1x128xf32> to vector<1x128xf32>
    %cst_45 = arith.constant dense<0.000000e+00> : vector<16xf32>
    %106 = vector.multi_reduction <add>, %101, %cst_45 [1] : vector<16x128xf32> to vector<16xf32>
    %107 = vector.shape_cast %106 : vector<16xf32> to vector<16x1xf32>
    %cst_46 = arith.constant 1.280000e+02 : f32
    %108 = vector.broadcast %cst_46 : f32 to vector<16x1xf32>
    %109 = arith.divf %107, %108 : vector<16x1xf32>
    %110 = vector.broadcast %109 : vector<16x1xf32> to vector<16x128xf32>
    %111 = arith.subf %101, %110 : vector<16x128xf32>
    %112 = arith.mulf %111, %111 : vector<16x128xf32>
    %cst_47 = arith.constant dense<0.000000e+00> : vector<16xf32>
    %113 = vector.multi_reduction <add>, %112, %cst_47 [1] : vector<16x128xf32> to vector<16xf32>
    %114 = vector.shape_cast %113 : vector<16xf32> to vector<16x1xf32>
    %cst_48 = arith.constant 1.280000e+02 : f32
    %115 = vector.broadcast %cst_48 : f32 to vector<16x1xf32>
    %116 = arith.divf %114, %115 : vector<16x1xf32>
    %117 = vector.broadcast %109 : vector<16x1xf32> to vector<16x128xf32>
    %118 = arith.subf %101, %117 : vector<16x128xf32>
    %cst_49 = arith.constant 9.99999997E-7 : f32
    %119 = vector.broadcast %cst_49 : f32 to vector<16x1xf32>
    %120 = arith.addf %116, %119 : vector<16x1xf32>
    %121 = math.rsqrt %120 : vector<16x1xf32>
    %122 = vector.broadcast %121 : vector<16x1xf32> to vector<16x128xf32>
    %123 = arith.mulf %118, %122 : vector<16x128xf32>
    %124 = vector.broadcast %103 : vector<1x128xf32> to vector<16x128xf32>
    %125 = arith.mulf %123, %124 : vector<16x128xf32>
    %126 = vector.broadcast %105 : vector<1x128xf32> to vector<16x128xf32>
    %127 = arith.addf %125, %126 : vector<16x128xf32>
    %128 = arith.truncf %127 : vector<16x128xf32> to vector<16x128xbf16>
    %c0_50 = arith.constant 0 : index
    %c0_51 = arith.constant 0 : index
    %c0_52 = arith.constant 0 : index
    %129 = vector.load %arg11[%c0_50, %c0_51, %c0_52] : memref<1x128x512xbf16, #tpu.memory_space<vmem>>, vector<1x128x512xbf16>
    %130 = vector.shape_cast %129 : vector<1x128x512xbf16> to vector<128x512xbf16>
    %cst_53 = arith.constant dense<0.000000e+00> : vector<16x512xf32>
    %131 = tpu.matmul %128, %130, %cst_53 {dimension_numbers = #tpu.dot_dimension_numbers<[1], [0], [0], [1], [0, 0, 1, 1], [], []>} : vector<16x128xbf16>, vector<128x512xbf16>, vector<16x512xf32> -> vector<16x512xf32>
    %c0_54 = arith.constant 0 : index
    %c0_55 = arith.constant 0 : index
    %c0_56 = arith.constant 0 : index
    %132 = vector.load %arg12[%c0_54, %c0_55, %c0_56] : memref<1x1x512xf32, #tpu.memory_space<vmem>>, vector<1x1x512xf32>
    %133 = vector.shape_cast %132 : vector<1x1x512xf32> to vector<1x512xf32>
    %134 = vector.broadcast %133 : vector<1x512xf32> to vector<16x512xf32>
    %135 = arith.addf %131, %134 : vector<16x512xf32>
    %cst_57 = arith.constant 5.000000e-01 : f32
    %136 = vector.broadcast %cst_57 : f32 to vector<16x512xf32>
    %137 = arith.mulf %136, %135 : vector<16x512xf32>
    %cst_58 = arith.constant 0.707106769 : f32
    %138 = vector.broadcast %cst_58 : f32 to vector<16x512xf32>
    %139 = arith.mulf %135, %138 : vector<16x512xf32>
    %140 = math.erf %139 : vector<16x512xf32>
    %cst_59 = arith.constant 1.000000e+00 : f32
    %141 = vector.broadcast %cst_59 : f32 to vector<16x512xf32>
    %142 = arith.addf %141, %140 : vector<16x512xf32>
    %143 = arith.mulf %137, %142 : vector<16x512xf32>
    %144 = arith.truncf %143 : vector<16x512xf32> to vector<16x512xbf16>
    %c0_60 = arith.constant 0 : index
    %c0_61 = arith.constant 0 : index
    %c0_62 = arith.constant 0 : index
    %145 = vector.load %arg13[%c0_60, %c0_61, %c0_62] : memref<1x512x128xbf16, #tpu.memory_space<vmem>>, vector<1x512x128xbf16>
    %146 = vector.shape_cast %145 : vector<1x512x128xbf16> to vector<512x128xbf16>
    %cst_63 = arith.constant dense<0.000000e+00> : vector<16x128xf32>
    %147 = tpu.matmul %144, %146, %cst_63 {dimension_numbers = #tpu.dot_dimension_numbers<[1], [0], [0], [1], [0, 0, 1, 1], [], []>} : vector<16x512xbf16>, vector<512x128xbf16>, vector<16x128xf32> -> vector<16x128xf32>
    %148 = arith.addf %101, %147 : vector<16x128xf32>
    %c0_64 = arith.constant 0 : index
    %c0_65 = arith.constant 0 : index
    %c0_66 = arith.constant 0 : index
    %149 = vector.load %arg14[%c0_64, %c0_65, %c0_66] : memref<1x1x128xf32, #tpu.memory_space<vmem>>, vector<1x1x128xf32>
    %150 = vector.shape_cast %149 : vector<1x1x128xf32> to vector<1x128xf32>
    %151 = vector.broadcast %150 : vector<1x128xf32> to vector<16x128xf32>
    %152 = arith.addf %148, %151 : vector<16x128xf32>
    %c0_67 = arith.constant 0 : index
    %c0_68 = arith.constant 0 : index
    %153 = vector.load %arg21[%c0_67, %c0_68] : memref<16x128xf32, #tpu.memory_space<vmem>>, vector<16x128xf32>
    tpu.vector_store %arg21[%c0_67, %c0_68], %152 {strides = array<i32>} : memref<16x128xf32, #tpu.memory_space<vmem>>, vector<16x128xf32>,
    %c1_i32 = arith.constant 1 : i32
    %154 = arith.cmpi eq, %arg1, %c1_i32 : i32
    %155 = arith.extui %154 : i1 to i32
    %c0_i32_69 = arith.constant 0 : i32
    %156 = arith.cmpi ne, %155, %c0_i32_69 : i32
    scf.if %156 {
      %c0_70 = arith.constant 0 : index
      %c0_71 = arith.constant 0 : index
      %157 = vector.load %arg15[%c0_70, %c0_71] : memref<1x128xf32, #tpu.memory_space<vmem>>, vector<1x128xf32>
      %c0_72 = arith.constant 0 : index
      %c0_73 = arith.constant 0 : index
      %158 = vector.load %arg16[%c0_72, %c0_73] : memref<1x128xf32, #tpu.memory_space<vmem>>, vector<1x128xf32>
      %cst_74 = arith.constant dense<0.000000e+00> : vector<16xf32>
      %159 = vector.multi_reduction <add>, %152, %cst_74 [1] : vector<16x128xf32> to vector<16xf32>
      %160 = vector.shape_cast %159 : vector<16xf32> to vector<16x1xf32>
      %cst_75 = arith.constant 1.280000e+02 : f32
      %161 = vector.broadcast %cst_75 : f32 to vector<16x1xf32>
      %162 = arith.divf %160, %161 : vector<16x1xf32>
      %163 = vector.broadcast %162 : vector<16x1xf32> to vector<16x128xf32>
      %164 = arith.subf %152, %163 : vector<16x128xf32>
      %165 = arith.mulf %164, %164 : vector<16x128xf32>
      %cst_76 = arith.constant dense<0.000000e+00> : vector<16xf32>
      %166 = vector.multi_reduction <add>, %165, %cst_76 [1] : vector<16x128xf32> to vector<16xf32>
      %167 = vector.shape_cast %166 : vector<16xf32> to vector<16x1xf32>
      %cst_77 = arith.constant 1.280000e+02 : f32
      %168 = vector.broadcast %cst_77 : f32 to vector<16x1xf32>
      %169 = arith.divf %167, %168 : vector<16x1xf32>
      %170 = vector.broadcast %162 : vector<16x1xf32> to vector<16x128xf32>
      %171 = arith.subf %152, %170 : vector<16x128xf32>
      %cst_78 = arith.constant 9.99999997E-7 : f32
      %172 = vector.broadcast %cst_78 : f32 to vector<16x1xf32>
      %173 = arith.addf %169, %172 : vector<16x1xf32>
      %174 = math.rsqrt %173 : vector<16x1xf32>
      %175 = vector.broadcast %174 : vector<16x1xf32> to vector<16x128xf32>
      %176 = arith.mulf %171, %175 : vector<16x128xf32>
      %177 = vector.broadcast %157 : vector<1x128xf32> to vector<16x128xf32>
      %178 = arith.mulf %176, %177 : vector<16x128xf32>
      %179 = vector.broadcast %158 : vector<1x128xf32> to vector<16x128xf32>
      %180 = arith.addf %178, %179 : vector<16x128xf32>
      %181 = vector.shape_cast %180 : vector<16x128xf32> to vector<2x8x128xf32>
      %182 = vector.extract_strided_slice %181 {offsets = [0, 0, 0], sizes = [2, 1, 128], strides = [1, 1, 1]} : vector<2x8x128xf32> to vector<2x1x128xf32>
      %183 = vector.shape_cast %182 : vector<2x1x128xf32> to vector<2x128xf32>
      %c0_79 = arith.constant 0 : index
      %c0_80 = arith.constant 0 : index
      %184 = vector.load %arg17[%c0_79, %c0_80] : memref<128x128xf32, #tpu.memory_space<vmem>>, vector<128x128xf32>
      %cst_81 = arith.constant dense<0.000000e+00> : vector<2x128xf32>
      %185 = tpu.matmul %183, %184, %cst_81 {dimension_numbers = #tpu.dot_dimension_numbers<[1], [0], [0], [1], [0, 0, 1, 1], [], []>} : vector<2x128xf32>, vector<128x128xf32>, vector<2x128xf32> -> vector<2x128xf32>
      %c0_82 = arith.constant 0 : index
      %c0_83 = arith.constant 0 : index
      %186 = vector.load %arg18[%c0_82, %c0_83] : memref<1x128xf32, #tpu.memory_space<vmem>>, vector<1x128xf32>
      %187 = vector.broadcast %186 : vector<1x128xf32> to vector<2x128xf32>
      %188 = arith.addf %185, %187 : vector<2x128xf32>
      %189 = tpu.iota {dimensions = array<i32: 1>} : vector<2x128xi32>
      %c3_i32 = arith.constant 3 : i32
      %190 = vector.broadcast %c3_i32 : i32 to vector<2x128xi32>
      %191 = arith.cmpi slt, %189, %190 : vector<2x128xi32>
      %cst_84 = arith.constant -1.000000e+30 : f32
      %192 = vector.broadcast %cst_84 : f32 to vector<2x128xf32>
      %193 = arith.select %191, %188, %192 : vector<2x128xi1>, vector<2x128xf32>
      %cst_85 = arith.constant dense<0xFF800000> : vector<2xf32>
      %194 = vector.multi_reduction <maximumf>, %193, %cst_85 [1] : vector<2x128xf32> to vector<2xf32>
      %195 = vector.shape_cast %194 : vector<2xf32> to vector<2x1xf32>
      %196 = vector.broadcast %195 : vector<2x1xf32> to vector<2x128xf32>
      %197 = arith.subf %188, %196 : vector<2x128xf32>
      %198 = math.exp %197 : vector<2x128xf32>
      %cst_86 = arith.constant 0.000000e+00 : f32
      %199 = vector.broadcast %cst_86 : f32 to vector<2x128xf32>
      %200 = arith.select %191, %198, %199 : vector<2x128xi1>, vector<2x128xf32>
      %cst_87 = arith.constant dense<0.000000e+00> : vector<2xf32>
      %201 = vector.multi_reduction <add>, %200, %cst_87 [1] : vector<2x128xf32> to vector<2xf32>
      %202 = vector.shape_cast %201 : vector<2xf32> to vector<2x1xf32>
      %203 = vector.broadcast %202 : vector<2x1xf32> to vector<2x128xf32>
      %204 = arith.divf %200, %203 : vector<2x128xf32>
      %c3_i32_88 = arith.constant 3 : i32
      %205 = vector.broadcast %c3_i32_88 : i32 to vector<2x128xi32>
      %206 = arith.cmpi sge, %189, %205 : vector<2x128xi32>
      %c15_i32 = arith.constant 15 : i32
      %207 = vector.broadcast %c15_i32 : i32 to vector<2x128xi32>
      %208 = arith.cmpi slt, %189, %207 : vector<2x128xi32>
      %209 = arith.andi %206, %208 : vector<2x128xi1>
      %cst_89 = arith.constant 0.000000e+00 : f32
      %210 = vector.broadcast %cst_89 : f32 to vector<2x128xf32>
      %211 = arith.subf %210, %188 : vector<2x128xf32>
      %212 = math.exp %211 : vector<2x128xf32>
      %cst_90 = arith.constant 1.000000e+00 : f32
      %213 = vector.broadcast %cst_90 : f32 to vector<2x128xf32>
      %214 = arith.addf %213, %212 : vector<2x128xf32>
      %cst_91 = arith.constant 1.000000e+00 : f32
      %215 = vector.broadcast %cst_91 : f32 to vector<2x128xf32>
      %216 = arith.divf %215, %214 : vector<2x128xf32>
      %cst_92 = arith.constant 0.000000e+00 : f32
      %217 = vector.broadcast %cst_92 : f32 to vector<2x128xf32>
      %218 = arith.select %209, %216, %217 : vector<2x128xi1>, vector<2x128xf32>
      %c0_93 = arith.constant 0 : index
      %c0_94 = arith.constant 0 : index
      %c0_95 = arith.constant 0 : index
      %219 = vector.load %arg19[%c0_93, %c0_94, %c0_95] : memref<1x2x128xf32, #tpu.memory_space<vmem>>, vector<1x2x128xf32>
      %220 = vector.shape_cast %219 : vector<1x2x128xf32> to vector<2x128xf32>
      %221 = vector.shape_cast %183 : vector<2x128xf32> to vector<1x2x128xf32>
      tpu.vector_store %arg19[%c0_93, %c0_94, %c0_95], %221 {strides = array<i32>} : memref<1x2x128xf32, #tpu.memory_space<vmem>>, vector<1x2x128xf32>,
      %222 = arith.addf %204, %218 : vector<2x128xf32>
      %c0_96 = arith.constant 0 : index
      %c0_97 = arith.constant 0 : index
      %c0_98 = arith.constant 0 : index
      %223 = vector.load %arg20[%c0_96, %c0_97, %c0_98] : memref<1x2x128xf32, #tpu.memory_space<vmem>>, vector<1x2x128xf32>
      %224 = vector.shape_cast %223 : vector<1x2x128xf32> to vector<2x128xf32>
      %225 = vector.shape_cast %222 : vector<2x128xf32> to vector<1x2x128xf32>
      tpu.vector_store %arg20[%c0_96, %c0_97, %c0_98], %225 {strides = array<i32>} : memref<1x2x128xf32, #tpu.memory_space<vmem>>, vector<1x2x128xf32>,
    } else {
    }
    return
  }
  func.func @transform_0(%arg0: i32, %arg1: i32) -> (i32, i32) {
    %c0_i32 = arith.constant 0 : i32
    %c0_i32_0 = arith.constant 0 : i32
    return %arg0, %c0_i32 : i32, i32
  }
  func.func @transform_1(%arg0: i32, %arg1: i32) -> (i32, i32, i32) {
    %c0_i32 = arith.constant 0 : i32
    %c0_i32_0 = arith.constant 0 : i32
    %c0_i32_1 = arith.constant 0 : i32
    return %arg1, %c0_i32, %c0_i32_0 : i32, i32, i32
  }
  func.func @transform_2(%arg0: i32, %arg1: i32) -> (i32, i32, i32) {
    %c0_i32 = arith.constant 0 : i32
    %c0_i32_0 = arith.constant 0 : i32
    %c0_i32_1 = arith.constant 0 : i32
    return %arg1, %c0_i32, %c0_i32_0 : i32, i32, i32
  }
  func.func @transform_3(%arg0: i32, %arg1: i32) -> (i32, i32, i32) {
    %c0_i32 = arith.constant 0 : i32
    %c0_i32_0 = arith.constant 0 : i32
    %c0_i32_1 = arith.constant 0 : i32
    return %arg1, %c0_i32, %c0_i32_0 : i32, i32, i32
  }
  func.func @transform_4(%arg0: i32, %arg1: i32) -> (i32, i32, i32) {
    %c0_i32 = arith.constant 0 : i32
    %c0_i32_0 = arith.constant 0 : i32
    %c0_i32_1 = arith.constant 0 : i32
    return %arg1, %c0_i32, %c0_i32_0 : i32, i32, i32
  }
  func.func @transform_5(%arg0: i32, %arg1: i32) -> (i32, i32, i32) {
    %c0_i32 = arith.constant 0 : i32
    %c0_i32_0 = arith.constant 0 : i32
    %c0_i32_1 = arith.constant 0 : i32
    return %arg1, %c0_i32, %c0_i32_0 : i32, i32, i32
  }
  func.func @transform_6(%arg0: i32, %arg1: i32) -> (i32, i32, i32) {
    %c0_i32 = arith.constant 0 : i32
    %c0_i32_0 = arith.constant 0 : i32
    %c0_i32_1 = arith.constant 0 : i32
    return %arg1, %c0_i32, %c0_i32_0 : i32, i32, i32
  }
  func.func @transform_7(%arg0: i32, %arg1: i32) -> (i32, i32, i32) {
    %c0_i32 = arith.constant 0 : i32
    %c0_i32_0 = arith.constant 0 : i32
    %c0_i32_1 = arith.constant 0 : i32
    return %arg1, %c0_i32, %c0_i32_0 : i32, i32, i32
  }
  func.func @transform_8(%arg0: i32, %arg1: i32) -> (i32, i32, i32) {
    %c0_i32 = arith.constant 0 : i32
    %c0_i32_0 = arith.constant 0 : i32
    %c0_i32_1 = arith.constant 0 : i32
    return %arg1, %c0_i32, %c0_i32_0 : i32, i32, i32
  }
  func.func @transform_9(%arg0: i32, %arg1: i32) -> (i32, i32, i32) {
    %c0_i32 = arith.constant 0 : i32
    %c0_i32_0 = arith.constant 0 : i32
    %c0_i32_1 = arith.constant 0 : i32
    return %arg1, %c0_i32, %c0_i32_0 : i32, i32, i32
  }
  func.func @transform_10(%arg0: i32, %arg1: i32) -> (i32, i32, i32) {
    %c0_i32 = arith.constant 0 : i32
    %c0_i32_0 = arith.constant 0 : i32
    %c0_i32_1 = arith.constant 0 : i32
    return %arg1, %c0_i32, %c0_i32_0 : i32, i32, i32
  }
  func.func @transform_11(%arg0: i32, %arg1: i32) -> (i32, i32, i32) {
    %c0_i32 = arith.constant 0 : i32
    %c0_i32_0 = arith.constant 0 : i32
    %c0_i32_1 = arith.constant 0 : i32
    return %arg1, %c0_i32, %c0_i32_0 : i32, i32, i32
  }
  func.func @transform_12(%arg0: i32, %arg1: i32) -> (i32, i32, i32) {
    %c0_i32 = arith.constant 0 : i32
    %c0_i32_0 = arith.constant 0 : i32
    %c0_i32_1 = arith.constant 0 : i32
    return %arg1, %c0_i32, %c0_i32_0 : i32, i32, i32
  }
  func.func @transform_13(%arg0: i32, %arg1: i32) -> (i32, i32) {
    %c0_i32 = arith.constant 0 : i32
    %c0_i32_0 = arith.constant 0 : i32
    %c0_i32_1 = arith.constant 0 : i32
    return %c0_i32, %c0_i32_0 : i32, i32
  }
  func.func @transform_14(%arg0: i32, %arg1: i32) -> (i32, i32) {
    %c0_i32 = arith.constant 0 : i32
    %c0_i32_0 = arith.constant 0 : i32
    %c0_i32_1 = arith.constant 0 : i32
    return %c0_i32, %c0_i32_0 : i32, i32
  }
  func.func @transform_15(%arg0: i32, %arg1: i32) -> (i32, i32) {
    %c0_i32 = arith.constant 0 : i32
    %c0_i32_0 = arith.constant 0 : i32
    %c0_i32_1 = arith.constant 0 : i32
    return %c0_i32, %c0_i32_0 : i32, i32
  }
  func.func @transform_16(%arg0: i32, %arg1: i32) -> (i32, i32) {
    %c0_i32 = arith.constant 0 : i32
    %c0_i32_0 = arith.constant 0 : i32
    %c0_i32_1 = arith.constant 0 : i32
    return %c0_i32, %c0_i32_0 : i32, i32
  }
  func.func @transform_17(%arg0: i32, %arg1: i32) -> (i32, i32, i32) {
    %c0_i32 = arith.constant 0 : i32
    %c0_i32_0 = arith.constant 0 : i32
    %c0_i32_1 = arith.constant 0 : i32
    return %arg0, %c0_i32, %c0_i32_0 : i32, i32, i32
  }
  func.func @transform_18(%arg0: i32, %arg1: i32) -> (i32, i32, i32) {
    %c0_i32 = arith.constant 0 : i32
    %c0_i32_0 = arith.constant 0 : i32
    %c0_i32_1 = arith.constant 0 : i32
    return %arg0, %c0_i32, %c0_i32_0 : i32, i32, i32
  }
}

</mosaic_0001>

<llo_original>
// kernel: backbone_and_heads.2
$region0: #{backbone_and_heads.2}
  #allocation0 [shape = 'u32[]', space=smem, size = 0x4, offset = 0x4, fixed_abs, tag = 'smem constant byte address 0x4 - core index']
  #allocation1 [shape = 'u32[144,128]{1,0:T(1,128)}', space=vmem, size = 0x12000, scoped, tag = 'internal scratch']
  %s0 = inlined_call_operand.vmem [shape: bf16[32,768], index: 0, kind: input, shape index: {}]
  %s1 = inlined_call_operand.vmem [shape: bf16[768,128], index: 1, kind: input, shape index: {}]
  %s2 = inlined_call_operand.vmem [shape: f32[1,128], index: 2, kind: input, shape index: {}]
  %s3 = inlined_call_operand.vmem [shape: f32[32,128], index: 3, kind: input, shape index: {}]
  %s4 = inlined_call_operand.vmem [shape: f32[32,128], index: 4, kind: output, shape index: {}]
  %s5 = sld [smem:[#allocation0]]
  $region26: #{backbone_and_heads.2} parent=0
    _
  %s7 = ssub.s32 1, %s5
  %s8 = scalar_select 0, %s7, %s5
  // Predicated region
  $region2: #{backbone_and_heads.2} parent=0 // pred_check
    _
  $region3: #{backbone_and_heads.2} parent=0 // pred_check_branch
    %10 = sbr.rel (0) target = $region5
  $region4: #{backbone_and_heads.2} parent=0 // pred_region
    _
  $region5: #{backbone_and_heads.2} parent=0 // pred_fallthru
    _
  // Predicated region
  $region6: #{backbone_and_heads.2} parent=0 // pred_check
    _
  $region7: #{backbone_and_heads.2} parent=0 // pred_check_branch
    %12 = sbr.rel (0) target = $region9
  $region8: #{backbone_and_heads.2} parent=0 // pred_region
    _
  $region9: #{backbone_and_heads.2} parent=0 // pred_fallthru
    _
  // Predicated region
  $region10: #{backbone_and_heads.2} parent=0 // pred_check
    _
  $region11: #{backbone_and_heads.2} parent=0 // pred_check_branch
    %14 = sbr.rel (0) target = $region13
  $region12: #{backbone_and_heads.2} parent=0 // pred_region
    _
  $region13: #{backbone_and_heads.2} parent=0 // pred_fallthru
    _
  // Predicated region
  $region14: #{backbone_and_heads.2} parent=0 // pred_check
    _
  $region15: #{backbone_and_heads.2} parent=0 // pred_check_branch
    %16 = sbr.rel (0) target = $region17
  $region16: #{backbone_and_heads.2} parent=0 // pred_region
    _
  $region17: #{backbone_and_heads.2} parent=0 // pred_fallthru
    _
  %v18 = vld [vmem:[%s0] sm:$0xff]
  %v19 = vld [vmem:[%s0 + $0x8] sm:$0xff]
  %v20 = vld [vmem:[%s0 + $0x10] sm:$0xff]
  %v21 = vld [vmem:[%s0 + $0x18] sm:$0xff]
  %v22 = vld [vmem:[%s0 + $0x20] sm:$0xff]
  %v23 = vld [vmem:[%s0 + $0x28] sm:$0xff]
  %v24 = vld [vmem:[%s0 + $0x30] sm:$0xff]
  %v25 = vld [vmem:[%s0 + $0x38] sm:$0xff]
  %v26 = vld [vmem:[%s0 + $0x40] sm:$0xff]
  %v27 = vld [vmem:[%s0 + $0x48] sm:$0xff]
  %v28 = vld [vmem:[%s0 + $0x50] sm:$0xff]
  %v29 = vld [vmem:[%s0 + $0x58] sm:$0xff]
  %v30 = vld [vmem:[%s1] sm:$0xf]
  %v31 = vld [vmem:[%s1 + $0x4] sm:$0xf]
  %v32 = vld [vmem:[%s1 + $0x8] sm:$0xf]
  %v33 = vld [vmem:[%s1 + $0xc] sm:$0xf]
  %v34 = vld [vmem:[%s1 + $0x10] sm:$0xf]
  %v35 = vld [vmem:[%s1 + $0x14] sm:$0xf]
  %v36 = vld [vmem:[%s1 + $0x18] sm:$0xf]
  %v37 = vld [vmem:[%s1 + $0x1c] sm:$0xf]
  %v38 = vld [vmem:[%s1 + $0x20] sm:$0xf]
  %v39 = vld [vmem:[%s1 + $0x24] sm:$0xf]
  %v40 = vld [vmem:[%s1 + $0x28] sm:$0xf]
  %v41 = vld [vmem:[%s1 + $0x2c] sm:$0xf]
  %v42 = vld [vmem:[%s1 + $0x30] sm:$0xf]
  %v43 = vld [vmem:[%s1 + $0x34] sm:$0xf]
  %v44 = vld [vmem:[%s1 + $0x38] sm:$0xf]
  %v45 = vld [vmem:[%s1 + $0x3c] sm:$0xf]
  %v46 = vld [vmem:[%s1 + $0x40] sm:$0xf]
  %v47 = vld [vmem:[%s1 + $0x44] sm:$0xf]
  %v48 = vld [vmem:[%s1 + $0x48] sm:$0xf]
  %v49 = vld [vmem:[%s1 + $0x4c] sm:$0xf]
  %v50 = vld [vmem:[%s1 + $0x50] sm:$0xf]
  %v51 = vld [vmem:[%s1 + $0x54] sm:$0xf]
  %v52 = vld [vmem:[%s1 + $0x58] sm:$0xf]
  %v53 = vld [vmem:[%s1 + $0x5c] sm:$0xf]
  %v54 = vld [vmem:[%s1 + $0x60] sm:$0xf]
  %v55 = vld [vmem:[%s1 + $0x64] sm:$0xf]
  %v56 = vld [vmem:[%s1 + $0x68] sm:$0xf]
  %v57 = vld [vmem:[%s1 + $0x6c] sm:$0xf]
  %v58 = vld [vmem:[%s1 + $0x70] sm:$0xf]
  %v59 = vld [vmem:[%s1 + $0x74] sm:$0xf]
  %v60 = vld [vmem:[%s1 + $0x78] sm:$0xf]
  %v61 = vld [vmem:[%s1 + $0x7c] sm:$0xf]
  %v62 = vld [vmem:[%s1 + $0x80] sm:$0xf]
  %v63 = vld [vmem:[%s1 + $0x84] sm:$0xf]
  %v64 = vld [vmem:[%s1 + $0x88] sm:$0xf]
  %v65 = vld [vmem:[%s1 + $0x8c] sm:$0xf]
  %v66 = vld [vmem:[%s1 + $0x90] sm:$0xf]
  %v67 = vld [vmem:[%s1 + $0x94] sm:$0xf]
  %v68 = vld [vmem:[%s1 + $0x98] sm:$0xf]
  %v69 = vld [vmem:[%s1 + $0x9c] sm:$0xf]
  %v70 = vld [vmem:[%s1 + $0xa0] sm:$0xf]
  %v71 = vld [vmem:[%s1 + $0xa4] sm:$0xf]
  %v72 = vld [vmem:[%s1 + $0xa8] sm:$0xf]
  %v73 = vld [vmem:[%s1 + $0xac] sm:$0xf]
  %v74 = vld [vmem:[%s1 + $0xb0] sm:$0xf]
  %v75 = vld [vmem:[%s1 + $0xb4] sm:$0xf]
  %v76 = vld [vmem:[%s1 + $0xb8] sm:$0xf]
  %v77 = vld [vmem:[%s1 + $0xbc] sm:$0xf]
  %v78 = vld [vmem:[%s1 + $0xc0] sm:$0xf]
  %v79 = vld [vmem:[%s1 + $0xc4] sm:$0xf]
  %v80 = vld [vmem:[%s1 + $0xc8] sm:$0xf]
  %v81 = vld [vmem:[%s1 + $0xcc] sm:$0xf]
  %v82 = vld [vmem:[%s1 + $0xd0] sm:$0xf]
  %v83 = vld [vmem:[%s1 + $0xd4] sm:$0xf]
  %v84 = vld [vmem:[%s1 + $0xd8] sm:$0xf]
  %v85 = vld [vmem:[%s1 + $0xdc] sm:$0xf]
  %v86 = vld [vmem:[%s1 + $0xe0] sm:$0xf]
  %v87 = vld [vmem:[%s1 + $0xe4] sm:$0xf]
  %v88 = vld [vmem:[%s1 + $0xe8] sm:$0xf]
  %v89 = vld [vmem:[%s1 + $0xec] sm:$0xf]
  %v90 = vld [vmem:[%s1 + $0xf0] sm:$0xf]
  %v91 = vld [vmem:[%s1 + $0xf4] sm:$0xf]
  %v92 = vld [vmem:[%s1 + $0xf8] sm:$0xf]
  %v93 = vld [vmem:[%s1 + $0xfc] sm:$0xf]
  %v94 = vld [vmem:[%s1 + $0x100] sm:$0xf]
  %v95 = vld [vmem:[%s1 + $0x104] sm:$0xf]
  %v96 = vld [vmem:[%s1 + $0x108] sm:$0xf]
  %v97 = vld [vmem:[%s1 + $0x10c] sm:$0xf]
  %v98 = vld [vmem:[%s1 + $0x110] sm:$0xf]
  %v99 = vld [vmem:[%s1 + $0x114] sm:$0xf]
  %v100 = vld [vmem:[%s1 + $0x118] sm:$0xf]
  %v101 = vld [vmem:[%s1 + $0x11c] sm:$0xf]
  %v102 = vld [vmem:[%s1 + $0x120] sm:$0xf]
  %v103 = vld [vmem:[%s1 + $0x124] sm:$0xf]
  %v104 = vld [vmem:[%s1 + $0x128] sm:$0xf]
  %v105 = vld [vmem:[%s1 + $0x12c] sm:$0xf]
  %v106 = vld [vmem:[%s1 + $0x130] sm:$0xf]
  %v107 = vld [vmem:[%s1 + $0x134] sm:$0xf]
  %v108 = vld [vmem:[%s1 + $0x138] sm:$0xf]
  %v109 = vld [vmem:[%s1 + $0x13c] sm:$0xf]
  %v110 = vld [vmem:[%s1 + $0x140] sm:$0xf]
  %v111 = vld [vmem:[%s1 + $0x144] sm:$0xf]
  %v112 = vld [vmem:[%s1 + $0x148] sm:$0xf]
  %v113 = vld [vmem:[%s1 + $0x14c] sm:$0xf]
  %v114 = vld [vmem:[%s1 + $0x150] sm:$0xf]
  %v115 = vld [vmem:[%s1 + $0x154] sm:$0xf]
  %v116 = vld [vmem:[%s1 + $0x158] sm:$0xf]
  %v117 = vld [vmem:[%s1 + $0x15c] sm:$0xf]
  %v118 = vld [vmem:[%s1 + $0x160] sm:$0xf]
  %v119 = vld [vmem:[%s1 + $0x164] sm:$0xf]
  %v120 = vld [vmem:[%s1 + $0x168] sm:$0xf]
  %v121 = vld [vmem:[%s1 + $0x16c] sm:$0xf]
  %v122 = vld [vmem:[%s1 + $0x170] sm:$0xf]
  %v123 = vld [vmem:[%s1 + $0x174] sm:$0xf]
  %v124 = vld [vmem:[%s1 + $0x178] sm:$0xf]
  %v125 = vld [vmem:[%s1 + $0x17c] sm:$0xf]
  %v126 = vld [vmem:[%s2] sm:$0x1]
  %v128 = vlaneseq
  %v129 = vshrl.u32 %v128, 7
  %v130 = vsub.s32 0, %v129
  %v131 = vrot.slane %v126, %v130
  %v145 = vunpack.c.l.b16 %v18
  %v146 = vunpack.c.h.b16 %v18
  %v147 = vunpack.c.l.b16 %v19
  %v148 = vunpack.c.h.b16 %v19
  %v149 = vunpack.c.l.b16 %v20
  %v150 = vunpack.c.h.b16 %v20
  %v151 = vunpack.c.l.b16 %v21
  %v152 = vunpack.c.h.b16 %v21
  %v153 = vunpack.c.l.b16 %v22
  %v154 = vunpack.c.h.b16 %v22
  %v155 = vunpack.c.l.b16 %v23
  %v156 = vunpack.c.h.b16 %v23
  %v157 = vunpack.c.l.b16 %v24
  %v158 = vunpack.c.h.b16 %v24
  %v159 = vunpack.c.l.b16 %v25
  %v160 = vunpack.c.h.b16 %v25
  %v161 = vunpack.c.l.b16 %v26
  %v162 = vunpack.c.h.b16 %v26
  %v163 = vunpack.c.l.b16 %v27
  %v164 = vunpack.c.h.b16 %v27
  %v165 = vunpack.c.l.b16 %v28
  %v166 = vunpack.c.h.b16 %v28
  %v167 = vunpack.c.l.b16 %v29
  %v168 = vunpack.c.h.b16 %v29
  %v169 = vpack.c.b16 %v151, %v145
  %v170 = vpack.c.b16 %v152, %v146
  %v171 = vpack.c.b16 %v153, %v147
  %v172 = vpack.c.b16 %v154, %v148
  %v173 = vpack.c.b16 %v155, %v149
  %v174 = vpack.c.b16 %v156, %v150
  %v175 = vpack.c.b16 %v163, %v157
  %v176 = vpack.c.b16 %v164, %v158
  %v177 = vpack.c.b16 %v165, %v159
  %v178 = vpack.c.b16 %v166, %v160
  %v179 = vpack.c.b16 %v167, %v161
  %v180 = vpack.c.b16 %v168, %v162
  %v289 = vunpack.c.l.b16 %v30
  %v290 = vunpack.c.l.b16 %v31
  %v291 = vunpack.c.l.b16 %v32
  %v292 = vunpack.c.l.b16 %v33
  %v293 = vunpack.c.l.b16 %v34
  %v294 = vunpack.c.l.b16 %v35
  %v295 = vunpack.c.l.b16 %v36
  %v296 = vunpack.c.l.b16 %v37
  %v297 = vunpack.c.l.b16 %v38
  %v298 = vunpack.c.l.b16 %v39
  %v299 = vunpack.c.l.b16 %v40
  %v300 = vunpack.c.l.b16 %v41
  %v301 = vunpack.c.l.b16 %v42
  %v302 = vunpack.c.l.b16 %v43
  %v303 = vunpack.c.l.b16 %v44
  %v304 = vunpack.c.l.b16 %v45
  %v305 = vunpack.c.l.b16 %v46
  %v306 = vunpack.c.l.b16 %v47
  %v307 = vunpack.c.l.b16 %v48
  %v308 = vunpack.c.l.b16 %v49
  %v309 = vunpack.c.l.b16 %v50
  %v310 = vunpack.c.l.b16 %v51
  %v311 = vunpack.c.l.b16 %v52
  %v312 = vunpack.c.l.b16 %v53
  %v313 = vunpack.c.l.b16 %v54
  %v314 = vunpack.c.l.b16 %v55
  %v315 = vunpack.c.l.b16 %v56
  %v316 = vunpack.c.l.b16 %v57
  %v317 = vunpack.c.l.b16 %v58
  %v318 = vunpack.c.l.b16 %v59
  %v319 = vunpack.c.l.b16 %v60
  %v320 = vunpack.c.l.b16 %v61
  %v321 = vunpack.c.l.b16 %v62
  %v322 = vunpack.c.l.b16 %v63
  %v323 = vunpack.c.l.b16 %v64
  %v324 = vunpack.c.l.b16 %v65
  %v325 = vunpack.c.l.b16 %v66
  %v326 = vunpack.c.l.b16 %v67
  %v327 = vunpack.c.l.b16 %v68
  %v328 = vunpack.c.l.b16 %v69
  %v329 = vunpack.c.l.b16 %v70
  %v330 = vunpack.c.l.b16 %v71
  %v331 = vunpack.c.l.b16 %v72
  %v332 = vunpack.c.l.b16 %v73
  %v333 = vunpack.c.l.b16 %v74
  %v334 = vunpack.c.l.b16 %v75
  %v335 = vunpack.c.l.b16 %v76
  %v336 = vunpack.c.l.b16 %v77
  %v337 = vunpack.c.l.b16 %v78
  %v338 = vunpack.c.l.b16 %v79
  %v339 = vunpack.c.l.b16 %v80
  %v340 = vunpack.c.l.b16 %v81
  %v341 = vunpack.c.l.b16 %v82
  %v342 = vunpack.c.l.b16 %v83
  %v343 = vunpack.c.l.b16 %v84
  %v344 = vunpack.c.l.b16 %v85
  %v345 = vunpack.c.l.b16 %v86
  %v346 = vunpack.c.l.b16 %v87
  %v347 = vunpack.c.l.b16 %v88
  %v348 = vunpack.c.l.b16 %v89
  %v349 = vunpack.c.l.b16 %v90
  %v350 = vunpack.c.l.b16 %v91
  %v351 = vunpack.c.l.b16 %v92
  %v352 = vunpack.c.l.b16 %v93
  %v353 = vunpack.c.l.b16 %v94
  %v354 = vunpack.c.l.b16 %v95
  %v355 = vunpack.c.l.b16 %v96
  %v356 = vunpack.c.l.b16 %v97
  %v357 = vunpack.c.l.b16 %v98
  %v358 = vunpack.c.l.b16 %v99
  %v359 = vunpack.c.l.b16 %v100
  %v360 = vunpack.c.l.b16 %v101
  %v361 = vunpack.c.l.b16 %v102
  %v362 = vunpack.c.l.b16 %v103
  %v363 = vunpack.c.l.b16 %v104
  %v364 = vunpack.c.l.b16 %v105
  %v365 = vunpack.c.l.b16 %v106
  %v366 = vunpack.c.l.b16 %v107
  %v367 = vunpack.c.l.b16 %v108
  %v368 = vunpack.c.l.b16 %v109
  %v369 = vunpack.c.l.b16 %v110
  %v370 = vunpack.c.l.b16 %v111
  %v371 = vunpack.c.l.b16 %v112
  %v372 = vunpack.c.l.b16 %v113
  %v373 = vunpack.c.l.b16 %v114
  %v374 = vunpack.c.l.b16 %v115
  %v375 = vunpack.c.l.b16 %v116
  %v376 = vunpack.c.l.b16 %v117
  %v377 = vunpack.c.l.b16 %v118
  %v378 = vunpack.c.l.b16 %v119
  %v379 = vunpack.c.l.b16 %v120
  %v380 = vunpack.c.l.b16 %v121
  %v381 = vunpack.c.l.b16 %v122
  %v382 = vunpack.c.l.b16 %v123
  %v383 = vunpack.c.l.b16 %v124
  %v384 = vunpack.c.l.b16 %v125
  %v385 = vpack.c.b16 %v290, %v289
  %v386 = vpack.c.b16 %v292, %v291
  %v387 = vpack.c.b16 %v294, %v293
  %v388 = vpack.c.b16 %v296, %v295
  %v389 = vpack.c.b16 %v298, %v297
  %v390 = vpack.c.b16 %v300, %v299
  %v391 = vpack.c.b16 %v302, %v301
  %v392 = vpack.c.b16 %v304, %v303
  %v393 = vpack.c.b16 %v306, %v305
  %v394 = vpack.c.b16 %v308, %v307
  %v395 = vpack.c.b16 %v310, %v309
  %v396 = vpack.c.b16 %v312, %v311
  %v397 = vpack.c.b16 %v314, %v313
  %v398 = vpack.c.b16 %v316, %v315
  %v399 = vpack.c.b16 %v318, %v317
  %v400 = vpack.c.b16 %v320, %v319
  %v401 = vpack.c.b16 %v322, %v321
  %v402 = vpack.c.b16 %v324, %v323
  %v403 = vpack.c.b16 %v326, %v325
  %v404 = vpack.c.b16 %v328, %v327
  %v405 = vpack.c.b16 %v330, %v329
  %v406 = vpack.c.b16 %v332, %v331
  %v407 = vpack.c.b16 %v334, %v333
  %v408 = vpack.c.b16 %v336, %v335
  %v409 = vpack.c.b16 %v338, %v337
  %v410 = vpack.c.b16 %v340, %v339
  %v411 = vpack.c.b16 %v342, %v341
  %v412 = vpack.c.b16 %v344, %v343
  %v413 = vpack.c.b16 %v346, %v345
  %v414 = vpack.c.b16 %v348, %v347
  %v415 = vpack.c.b16 %v350, %v349
  %v416 = vpack.c.b16 %v352, %v351
  %v417 = vpack.c.b16 %v354, %v353
  %v418 = vpack.c.b16 %v356, %v355
  %v419 = vpack.c.b16 %v358, %v357
  %v420 = vpack.c.b16 %v360, %v359
  %v421 = vpack.c.b16 %v362, %v361
  %v422 = vpack.c.b16 %v364, %v363
  %v423 = vpack.c.b16 %v366, %v365
  %v424 = vpack.c.b16 %v368, %v367
  %v425 = vpack.c.b16 %v370, %v369
  %v426 = vpack.c.b16 %v372, %v371
  %v427 = vpack.c.b16 %v374, %v373
  %v428 = vpack.c.b16 %v376, %v375
  %v429 = vpack.c.b16 %v378, %v377
  %v430 = vpack.c.b16 %v380, %v379
  %v431 = vpack.c.b16 %v382, %v381
  %v432 = vpack.c.b16 %v384, %v383
  %481 = vmatprep.subr.bf16.mxu0 0
  %482 = vmatpush1.bf16.msra.mxu0 %v385
  %483 = vmatprep.subr.bf16.mxu0 0
  %484 = vmatpush1.bf16.msra.mxu0 %v386
  %485 = vmatprep.subr.bf16.mxu0 0
  %486 = vmatpush1.bf16.msra.mxu0 %v387
  %487 = vmatprep.subr.bf16.mxu0 0
  %488 = vmatpush1.bf16.msra.mxu0 %v388
  %489 = vmatprep.subr.bf16.mxu0 0
  %490 = vmatpush1.bf16.msra.mxu0 %v389
  %491 = vmatprep.subr.bf16.mxu0 0
  %492 = vmatpush1.bf16.msra.mxu0 %v390
  %493 = vmatprep.subr.bf16.mxu0 0
  %494 = vmatpush1.bf16.msra.mxu0 %v391
  %495 = vmatprep.subr.bf16.mxu0 0
  %496 = vmatpush1.bf16.msra.mxu0 %v392
  %497 = vmatprep.subr.bf16.mxu0 0
  %498 = vmatpush1.bf16.msra.mxu0 %v393
  %499 = vmatprep.subr.bf16.mxu0 0
  %500 = vmatpush1.bf16.msra.mxu0 %v394
  %501 = vmatprep.subr.bf16.mxu0 0
  %502 = vmatpush1.bf16.msra.mxu0 %v395
  %503 = vmatprep.subr.bf16.mxu0 0
  %504 = vmatpush1.bf16.msra.mxu0 %v396
  %505 = vmatprep.subr.bf16.mxu0 0
  %506 = vmatpush1.bf16.msra.mxu0 %v397
  %507 = vmatprep.subr.bf16.mxu0 0
  %508 = vmatpush1.bf16.msra.mxu0 %v398
  %509 = vmatprep.subr.bf16.mxu0 0
  %510 = vmatpush1.bf16.msra.mxu0 %v399
  %511 = vmatprep.subr.bf16.mxu0 0
  %512 = vmatpush1.bf16.msra.mxu0 %v400
  %513 = vmatprep.mubr.bf16.mxu0 %v170
  %514 = vmatmul.mubr.bf16.gmra.mrb[0].mxu0 %v169
  %v515 = vpop.f32.mrb[0].mxu0
  %v516 = vadd.f32 %v131, %v515
  %v517 = vpop.f32.mrb[0].mxu0
  %v518 = vpop.f32.mrb[0].mxu0
  %v519 = vadd.f32 %v131, %v518
  %v520 = vpop.f32.mrb[0].mxu0
  %521 = vmatprep.mubr.bf16.mxu0 %v176
  %522 = vmatmul.mubr.bf16.gmra.mrb[0].mxu0 %v175
  %v523 = vpop.f32.mrb[0].mxu0
  %v524 = vadd.f32 %v131, %v523
  %v525 = vpop.f32.mrb[0].mxu0
  %v526 = vpop.f32.mrb[0].mxu0
  %v527 = vadd.f32 %v131, %v526
  %v528 = vpop.f32.mrb[0].mxu0
  %529 = vdwg.mxu0
  %530 = vmatprep.subr.bf16.mxu0 0
  %531 = vmatpush1.bf16.msra.mxu0 %v401
  %532 = vmatprep.subr.bf16.mxu0 0
  %533 = vmatpush1.bf16.msra.mxu0 %v402
  %534 = vmatprep.subr.bf16.mxu0 0
  %535 = vmatpush1.bf16.msra.mxu0 %v403
  %536 = vmatprep.subr.bf16.mxu0 0
  %537 = vmatpush1.bf16.msra.mxu0 %v404
  %538 = vmatprep.subr.bf16.mxu0 0
  %539 = vmatpush1.bf16.msra.mxu0 %v405
  %540 = vmatprep.subr.bf16.mxu0 0
  %541 = vmatpush1.bf16.msra.mxu0 %v406
  %542 = vmatprep.subr.bf16.mxu0 0
  %543 = vmatpush1.bf16.msra.mxu0 %v407
  %544 = vmatprep.subr.bf16.mxu0 0
  %545 = vmatpush1.bf16.msra.mxu0 %v408
  %546 = vmatprep.subr.bf16.mxu0 0
  %547 = vmatpush1.bf16.msra.mxu0 %v409
  %548 = vmatprep.subr.bf16.mxu0 0
  %549 = vmatpush1.bf16.msra.mxu0 %v410
  %550 = vmatprep.subr.bf16.mxu0 0
  %551 = vmatpush1.bf16.msra.mxu0 %v411
  %552 = vmatprep.subr.bf16.mxu0 0
  %553 = vmatpush1.bf16.msra.mxu0 %v412
  %554 = vmatprep.subr.bf16.mxu0 0
  %555 = vmatpush1.bf16.msra.mxu0 %v413
  %556 = vmatprep.subr.bf16.mxu0 0
  %557 = vmatpush1.bf16.msra.mxu0 %v414
  %558 = vmatprep.subr.bf16.mxu0 0
  %559 = vmatpush1.bf16.msra.mxu0 %v415
  %560 = vmatprep.subr.bf16.mxu0 0
  %561 = vmatpush1.bf16.msra.mxu0 %v416
  %562 = vmatprep.mubr.bf16.mxu0 %v172
  %563 = vmatmul.mubr.bf16.gmra.mrb[0].mxu0 %v171
  %v564 = vpop.f32.mrb[0].mxu0
  %v565 = vadd.f32 %v516, %v564
  %v566 = vpop.f32.mrb[0].mxu0
  %v567 = vpop.f32.mrb[0].mxu0
  %v568 = vadd.f32 %v519, %v567
  %v569 = vpop.f32.mrb[0].mxu0
  %570 = vmatprep.mubr.bf16.mxu0 %v178
  %571 = vmatmul.mubr.bf16.gmra.mrb[0].mxu0 %v177
  %v572 = vpop.f32.mrb[0].mxu0
  %v573 = vadd.f32 %v524, %v572
  %v574 = vpop.f32.mrb[0].mxu0
  %v575 = vpop.f32.mrb[0].mxu0
  %v576 = vadd.f32 %v527, %v575
  %v577 = vpop.f32.mrb[0].mxu0
  %578 = vdwg.mxu0
  %579 = vmatprep.subr.bf16.mxu0 0
  %580 = vmatpush1.bf16.msra.mxu0 %v417
  %581 = vmatprep.subr.bf16.mxu0 0
  %582 = vmatpush1.bf16.msra.mxu0 %v418
  %583 = vmatprep.subr.bf16.mxu0 0
  %584 = vmatpush1.bf16.msra.mxu0 %v419
  %585 = vmatprep.subr.bf16.mxu0 0
  %586 = vmatpush1.bf16.msra.mxu0 %v420
  %587 = vmatprep.subr.bf16.mxu0 0
  %588 = vmatpush1.bf16.msra.mxu0 %v421
  %589 = vmatprep.subr.bf16.mxu0 0
  %590 = vmatpush1.bf16.msra.mxu0 %v422
  %591 = vmatprep.subr.bf16.mxu0 0
  %592 = vmatpush1.bf16.msra.mxu0 %v423
  %593 = vmatprep.subr.bf16.mxu0 0
  %594 = vmatpush1.bf16.msra.mxu0 %v424
  %595 = vmatprep.subr.bf16.mxu0 0
  %596 = vmatpush1.bf16.msra.mxu0 %v425
  %597 = vmatprep.subr.bf16.mxu0 0
  %598 = vmatpush1.bf16.msra.mxu0 %v426
  %599 = vmatprep.subr.bf16.mxu0 0
  %600 = vmatpush1.bf16.msra.mxu0 %v427
  %601 = vmatprep.subr.bf16.mxu0 0
  %602 = vmatpush1.bf16.msra.mxu0 %v428
  %603 = vmatprep.subr.bf16.mxu0 0
  %604 = vmatpush1.bf16.msra.mxu0 %v429
  %605 = vmatprep.subr.bf16.mxu0 0
  %606 = vmatpush1.bf16.msra.mxu0 %v430
  %607 = vmatprep.subr.bf16.mxu0 0
  %608 = vmatpush1.bf16.msra.mxu0 %v431
  %609 = vmatprep.subr.bf16.mxu0 0
  %610 = vmatpush1.bf16.msra.mxu0 %v432
  %611 = vmatprep.mubr.bf16.mxu0 %v174
  %612 = vmatmul.mubr.bf16.gmra.mrb[0].mxu0 %v173
  %v613 = vpop.f32.mrb[0].mxu0
  %v614 = vadd.f32 %v565, %v613
  %v615 = vpop.f32.mrb[0].mxu0
  %v616 = vpop.f32.mrb[0].mxu0
  %v617 = vadd.f32 %v568, %v616
  %v618 = vpop.f32.mrb[0].mxu0
  %619 = vmatprep.mubr.bf16.mxu0 %v180
  %620 = vmatmul.mubr.bf16.gmra.mrb[0].mxu0 %v179
  %v621 = vpop.f32.mrb[0].mxu0
  %v622 = vadd.f32 %v573, %v621
  %v623 = vpop.f32.mrb[0].mxu0
  %v624 = vpop.f32.mrb[0].mxu0
  %v625 = vadd.f32 %v576, %v624
  %v626 = vpop.f32.mrb[0].mxu0
  %627 = vdwg.mxu0
  %v628 = vlaneseq
  %v629 = vshrl.u32 %v628, 7
  %v630 = vadd.s32 %v629, 8
  %v631 = vadd.s32 %v629, 16
  %v632 = vadd.s32 %v629, 24
  %v633 = vand.u32 %v629, 7
  %v634 = vand.u32 %v630, 7
  %v635 = vand.u32 %v631, 7
  %v636 = vand.u32 %v632, 7
  %vm637 = vcmp.ge.s32.totalorder %v633, 1
  %vm638 = vcmp.ge.s32.totalorder %v634, 1
  %vm639 = vcmp.ge.s32.totalorder %v635, 1
  %vm640 = vcmp.ge.s32.totalorder %v636, 1
  %vm641 = vcmp.le.s32.totalorder %v633, 4
  %vm642 = vcmp.le.s32.totalorder %v634, 4
  %vm643 = vcmp.le.s32.totalorder %v635, 4
  %vm644 = vcmp.le.s32.totalorder %v636, 4
  %vm645 = vmand %vm637, %vm641
  %vm646 = vmand %vm638, %vm642
  %vm647 = vmand %vm639, %vm643
  %vm648 = vmand %vm640, %vm644
  %v649 = vsel %vm645, %v614, 0.0
  %v650 = vsel %vm646, %v617, 0.0
  %v651 = vsel %vm647, %v622, 0.0
  %v652 = vsel %vm648, %v625, 0.0
  %v653 = vld [vmem:[%s3] sm:$0xff]
  %v654 = vld [vmem:[%s3 + $0x8] sm:$0xff]
  %v655 = vld [vmem:[%s3 + $0x10] sm:$0xff]
  %v656 = vld [vmem:[%s3 + $0x18] sm:$0xff]
  %v657 = vadd.f32 %v649, %v653
  %v658 = vadd.f32 %v650, %v654
  %v659 = vadd.f32 %v651, %v655
  %v660 = vadd.f32 %v652, %v656
  %661 = vst [vmem:[%s4] sm:$0xff] %v657
  %662 = vst [vmem:[%s4 + $0x8] sm:$0xff] %v658
  %663 = vst [vmem:[%s4 + $0x10] sm:$0xff] %v659
  %664 = vst [vmem:[%s4 + $0x18] sm:$0xff] %v660
  // Predicated region
  $region18: #{backbone_and_heads.2} parent=0 // pred_check
    _
  $region19: #{backbone_and_heads.2} parent=0 // pred_check_branch
    %666 = sbr.rel (0) target = $region21
  $region20: #{backbone_and_heads.2} parent=0 // pred_region
    _
  $region21: #{backbone_and_heads.2} parent=0 // pred_fallthru
    _
  // Predicated region
  $region22: #{backbone_and_heads.2} parent=0 // pred_check
    _
  $region23: #{backbone_and_heads.2} parent=0 // pred_check_branch
    %668 = sbr.rel (0) target = $region25
  $region24: #{backbone_and_heads.2} parent=0 // pred_region
    _
  $region25: #{backbone_and_heads.2} parent=0 // pred_fallthru
    _

// kernel: backbone_and_heads.3
$region0: #{backbone_and_heads.3}
  #allocation0 [shape = 'u32[]', space=smem, size = 0x4, offset = 0x4, fixed_abs, tag = 'smem constant byte address 0x4 - core index']
  #allocation1 [shape = 'u32[144,128]{1,0:T(1,128)}', space=vmem, size = 0x12000, scoped, tag = 'internal scratch']
  #allocation2 [shape = 'f32[16,128]{1,0:T(8,128)}', space=vmem, size = 0x2000, scoped, tag = 'scratch operand']
  #allocation3 [shape = 'f32[1,8,8]{2,1,0:T(8,128)}', space=vmem, size = 0x1000, scoped, tag = 'scratch operand']
  %s0 = inlined_call_operand.vmem [shape: f32[32,128], index: 0, kind: input, shape index: {}]
  %s1 = inlined_call_operand.vmem [shape: f32[2,1,128], index: 1, kind: input, shape index: {}]
  %s2 = inlined_call_operand.vmem [shape: f32[2,1,128], index: 2, kind: input, shape index: {}]
  %s3 = inlined_call_operand.vmem [shape: bf16[2,128,384], index: 3, kind: input, shape index: {}]
  %s4 = inlined_call_operand.vmem [shape: f32[2,1,384], index: 4, kind: input, shape index: {}]
  %s5 = inlined_call_operand.vmem [shape: bf16[2,128,128], index: 5, kind: input, shape index: {}]
  %s6 = inlined_call_operand.vmem [shape: f32[2,1,128], index: 6, kind: input, shape index: {}]
  %s7 = inlined_call_operand.vmem [shape: f32[2,1,128], index: 7, kind: input, shape index: {}]
  %s8 = inlined_call_operand.vmem [shape: f32[2,1,128], index: 8, kind: input, shape index: {}]
  %s9 = inlined_call_operand.vmem [shape: bf16[2,128,512], index: 9, kind: input, shape index: {}]
  %s10 = inlined_call_operand.vmem [shape: f32[2,1,512], index: 10, kind: input, shape index: {}]
  %s11 = inlined_call_operand.vmem [shape: bf16[2,512,128], index: 11, kind: input, shape index: {}]
  %s12 = inlined_call_operand.vmem [shape: f32[2,1,128], index: 12, kind: input, shape index: {}]
  %s13 = inlined_call_operand.vmem [shape: f32[1,128], index: 13, kind: input, shape index: {}]
  %s14 = inlined_call_operand.vmem [shape: f32[1,128], index: 14, kind: input, shape index: {}]
  %s15 = inlined_call_operand.vmem [shape: f32[128,128], index: 15, kind: input, shape index: {}]
  %s16 = inlined_call_operand.vmem [shape: f32[1,128], index: 16, kind: input, shape index: {}]
  %s17 = inlined_call_operand.hbm [shape: f32[2,2,128], index: 17, kind: output, shape index: {0}]
  %s18 = inlined_call_operand.vmem [shape: f32[2,2,128], index: 18, kind: output, shape index: {1}]
  %19 = xla_tuple %s17, %s18
  %s20 = sld [smem:[#allocation0]]
  $region117: #{backbone_and_heads.3} parent=0
    _
  %s22 = ssub.s32 1, %s20
  %s23 = scalar_select 0, %s22, %s20
  $region1: #{backbone_and_heads.3} parent=0
    #allocation4 [shape = 'u8[2048]{0}', space=vmem, size = 0x800, scoped, tag = 'output window, operand 0']
    #allocation5 [shape = 's32[2]{0}', space=sflag, size = 0x8, scoped, tag = 'scoped memory for backbone_and_heads.3']
    %24 = vsyncpa [#allocation5], 0
    %s25 = scalar_lea.sflag [#allocation5], 1
    %26 = vsyncpa %s25, 0
    loop: start=0, step=1, limit=6
    $region2: #{backbone_and_heads.3} parent=1 // loop_pre_header
      _
    $region3: #{backbone_and_heads.3} parent=1 // loop_header
      %s28 = sphi 0, %s32
      %p29 = scmp.ge.s32.totalorder %s28, 6
      %s35 = sphi 0, %s47
      %s36 = sphi 0, %s43
      %s37 = sphi 0, %s35
      %s38 = sphi 0, %s36
      %s39 = sphi 0, %s37
      %s40 = sphi 0, %s38
      %s50 = sphi 0, %s52
      %s53 = sphi 0, %s50
      %s54 = sphi 0, %s53
      %s70 = sphi 0, %s54
      %s76 = sphi 0, %s78
      %s79 = sphi 0, %s76
      %s80 = sphi 0, %s79
      %s96 = sphi 0, %s80
      %s102 = sphi 0, %s104
      %s105 = sphi 0, %s102
      %s106 = sphi 0, %s105
      %s122 = sphi 0, %s106
      %s128 = sphi 0, %s130
      %s131 = sphi 0, %s128
      %s132 = sphi 0, %s131
      %s148 = sphi 0, %s132
      %s154 = sphi 0, %s156
      %s157 = sphi 0, %s154
      %s158 = sphi 0, %s157
      %s174 = sphi 0, %s158
      %s180 = sphi 0, %s182
      %s183 = sphi 0, %s180
      %s184 = sphi 0, %s183
      %s200 = sphi 0, %s184
      %s206 = sphi 0, %s208
      %s209 = sphi 0, %s206
      %s210 = sphi 0, %s209
      %s226 = sphi 0, %s210
      %s232 = sphi 0, %s234
      %s235 = sphi 0, %s232
      %s236 = sphi 0, %s235
      %s252 = sphi 0, %s236
      %s258 = sphi 0, %s260
      %s261 = sphi 0, %s258
      %s262 = sphi 0, %s261
      %s278 = sphi 0, %s262
      %s284 = sphi 0, %s286
      %s287 = sphi 0, %s284
      %s288 = sphi 0, %s287
      %s304 = sphi 0, %s288
      %s310 = sphi 0, %s312
      %s313 = sphi 0, %s310
      %s314 = sphi 0, %s313
      %s330 = sphi 0, %s314
      %s336 = sphi 0, %s338
      %s339 = sphi 0, %s336
      %s340 = sphi 0, %s339
      %s356 = sphi 0, %s340
      %s362 = sphi 0, %s364
      %s365 = sphi 0, %s362
      %s366 = sphi 0, %s365
      %s382 = sphi 0, %s366
      %s386 = sphi 0, %s386
      %s388 = sphi 0, %s386
      %s389 = sphi 0, %s388
      %s403 = sphi 0, %s389
      %s407 = sphi 0, %s407
      %s409 = sphi 0, %s407
      %s410 = sphi 0, %s409
      %s424 = sphi 0, %s410
      %s428 = sphi 0, %s428
      %s430 = sphi 0, %s428
      %s431 = sphi 0, %s430
      %s445 = sphi 0, %s431
      %s449 = sphi 0, %s449
      %s451 = sphi 0, %s449
      %s452 = sphi 0, %s451
      %s466 = sphi 0, %s452
      %s472 = sphi 0, %s474
      %s475 = sphi 0, %s472
      %s476 = sphi 0, %s475
      %s492 = sphi 0, %s476
      %s498 = sphi 0, %s500
      %s501 = sphi 0, %s498
      %s502 = sphi 0, %s501
      %s518 = sphi 0, %s502
    $region4: #{backbone_and_heads.3} parent=1 // loop_header_branch
      %31 = sbr.rel (%p29) target = $region8
    $region5: #{backbone_and_heads.3} parent=1 // loop_body
      %s33 = ssub.s32 %s28, 1
      %s34 = ssub.s32 %s28, 2
      %s41 = sadd.s32 1, %s36
      %p42 = scmp.ge.s32.totalorder %s41, 2
      %s43 = scalar_select %p42, 0, %s41
      %s44 = sadd.s32 1, %s35
      %s45 = scalar_select %p42, %s44, %s35
      %p46 = scmp.ge.s32.totalorder %s45, 2
      %s47 = scalar_select %p46, 0, %s45
      %s48 = ssub.s32 %s35, %s47
      %p49 = scmp.eq.s32.totalorder %s48, 0
      %s51 = sadd.s32 %s50, 1
      %s52 = scalar_select %p49, %s50, %s51
      %p55 = pneg %p49
      %p56 = scmp.eq.s32.totalorder %s28, 3
      %p57 = por %p55, %p56
      %p58 = scmp.ne.s32.totalorder %s50, %s53
      %p59 = scmp.eq.s32.totalorder %s28, 0
      %p60 = por %p58, %p59
      %p61 = scmp.ne.s32.totalorder %s50, %s53
      %p62 = scmp.eq.s32.totalorder %s33, 3
      %p63 = por %p61, %p62
      %p64 = scmp.ne.s32.totalorder %s53, %s54
      %p65 = scmp.eq.s32.totalorder %s33, 0
      %p66 = por %p64, %p65
      %p67 = scmp.ne.s32.totalorder %s53, %s54
      %p68 = scmp.eq.s32.totalorder %s34, 3
      %p69 = por %p67, %p68
      %p71 = scmp.ne.s32.totalorder %s54, %s70
      %p72 = scmp.eq.s32.totalorder %s34, 0
      %p73 = por %p71, %p72
      %s74 = ssub.s32 %s36, %s43
      %p75 = scmp.eq.s32.totalorder %s74, 0
      %s77 = sadd.s32 %s76, 1
      %s78 = scalar_select %p75, %s76, %s77
      %p81 = pneg %p75
      %p82 = scmp.eq.s32.totalorder %s28, 3
      %p83 = por %p81, %p82
      %p84 = scmp.ne.s32.totalorder %s76, %s79
      %p85 = scmp.eq.s32.totalorder %s28, 0
      %p86 = por %p84, %p85
      %p87 = scmp.ne.s32.totalorder %s76, %s79
      %p88 = scmp.eq.s32.totalorder %s33, 3
      %p89 = por %p87, %p88
      %p90 = scmp.ne.s32.totalorder %s79, %s80
      %p91 = scmp.eq.s32.totalorder %s33, 0
      %p92 = por %p90, %p91
      %p93 = scmp.ne.s32.totalorder %s79, %s80
      %p94 = scmp.eq.s32.totalorder %s34, 3
      %p95 = por %p93, %p94
      %p97 = scmp.ne.s32.totalorder %s80, %s96
      %p98 = scmp.eq.s32.totalorder %s34, 0
      %p99 = por %p97, %p98
      %s100 = ssub.s32 %s36, %s43
      %p101 = scmp.eq.s32.totalorder %s100, 0
      %s103 = sadd.s32 %s102, 1
      %s104 = scalar_select %p101, %s102, %s103
      %p107 = pneg %p101
      %p108 = scmp.eq.s32.totalorder %s28, 3
      %p109 = por %p107, %p108
      %p110 = scmp.ne.s32.totalorder %s102, %s105
      %p111 = scmp.eq.s32.totalorder %s28, 0
      %p112 = por %p110, %p111
      %p113 = scmp.ne.s32.totalorder %s102, %s105
      %p114 = scmp.eq.s32.totalorder %s33, 3
      %p115 = por %p113, %p114
      %p116 = scmp.ne.s32.totalorder %s105, %s106
      %p117 = scmp.eq.s32.totalorder %s33, 0
      %p118 = por %p116, %p117
      %p119 = scmp.ne.s32.totalorder %s105, %s106
      %p120 = scmp.eq.s32.totalorder %s34, 3
      %p121 = por %p119, %p120
      %p123 = scmp.ne.s32.totalorder %s106, %s122
      %p124 = scmp.eq.s32.totalorder %s34, 0
      %p125 = por %p123, %p124
      %s126 = ssub.s32 %s36, %s43
      %p127 = scmp.eq.s32.totalorder %s126, 0
      %s129 = sadd.s32 %s128, 1
      %s130 = scalar_select %p127, %s128, %s129
      %p133 = pneg %p127
      %p134 = scmp.eq.s32.totalorder %s28, 3
      %p135 = por %p133, %p134
      %p136 = scmp.ne.s32.totalorder %s128, %s131
      %p137 = scmp.eq.s32.totalorder %s28, 0
      %p138 = por %p136, %p137
      %p139 = scmp.ne.s32.totalorder %s128, %s131
      %p140 = scmp.eq.s32.totalorder %s33, 3
      %p141 = por %p139, %p140
      %p142 = scmp.ne.s32.totalorder %s131, %s132
      %p143 = scmp.eq.s32.totalorder %s33, 0
      %p144 = por %p142, %p143
      %p145 = scmp.ne.s32.totalorder %s131, %s132
      %p146 = scmp.eq.s32.totalorder %s34, 3
      %p147 = por %p145, %p146
      %p149 = scmp.ne.s32.totalorder %s132, %s148
      %p150 = scmp.eq.s32.totalorder %s34, 0
      %p151 = por %p149, %p150
      %s152 = ssub.s32 %s36, %s43
      %p153 = scmp.eq.s32.totalorder %s152, 0
      %s155 = sadd.s32 %s154, 1
      %s156 = scalar_select %p153, %s154, %s155
      %p159 = pneg %p153
      %p160 = scmp.eq.s32.totalorder %s28, 3
      %p161 = por %p159, %p160
      %p162 = scmp.ne.s32.totalorder %s154, %s157
      %p163 = scmp.eq.s32.totalorder %s28, 0
      %p164 = por %p162, %p163
      %p165 = scmp.ne.s32.totalorder %s154, %s157
      %p166 = scmp.eq.s32.totalorder %s33, 3
      %p167 = por %p165, %p166
      %p168 = scmp.ne.s32.totalorder %s157, %s158
      %p169 = scmp.eq.s32.totalorder %s33, 0
      %p170 = por %p168, %p169
      %p171 = scmp.ne.s32.totalorder %s157, %s158
      %p172 = scmp.eq.s32.totalorder %s34, 3
      %p173 = por %p171, %p172
      %p175 = scmp.ne.s32.totalorder %s158, %s174
      %p176 = scmp.eq.s32.totalorder %s34, 0
      %p177 = por %p175, %p176
      %s178 = ssub.s32 %s36, %s43
      %p179 = scmp.eq.s32.totalorder %s178, 0
      %s181 = sadd.s32 %s180, 1
      %s182 = scalar_select %p179, %s180, %s181
      %p185 = pneg %p179
      %p186 = scmp.eq.s32.totalorder %s28, 3
      %p187 = por %p185, %p186
      %p188 = scmp.ne.s32.totalorder %s180, %s183
      %p189 = scmp.eq.s32.totalorder %s28, 0
      %p190 = por %p188, %p189
      %p191 = scmp.ne.s32.totalorder %s180, %s183
      %p192 = scmp.eq.s32.totalorder %s33, 3
      %p193 = por %p191, %p192
      %p194 = scmp.ne.s32.totalorder %s183, %s184
      %p195 = scmp.eq.s32.totalorder %s33, 0
      %p196 = por %p194, %p195
      %p197 = scmp.ne.s32.totalorder %s183, %s184
      %p198 = scmp.eq.s32.totalorder %s34, 3
      %p199 = por %p197, %p198
      %p201 = scmp.ne.s32.totalorder %s184, %s200
      %p202 = scmp.eq.s32.totalorder %s34, 0
      %p203 = por %p201, %p202
      %s204 = ssub.s32 %s36, %s43
      %p205 = scmp.eq.s32.totalorder %s204, 0
      %s207 = sadd.s32 %s206, 1
      %s208 = scalar_select %p205, %s206, %s207
      %p211 = pneg %p205
      %p212 = scmp.eq.s32.totalorder %s28, 3
      %p213 = por %p211, %p212
      %p214 = scmp.ne.s32.totalorder %s206, %s209
      %p215 = scmp.eq.s32.totalorder %s28, 0
      %p216 = por %p214, %p215
      %p217 = scmp.ne.s32.totalorder %s206, %s209
      %p218 = scmp.eq.s32.totalorder %s33, 3
      %p219 = por %p217, %p218
      %p220 = scmp.ne.s32.totalorder %s209, %s210
      %p221 = scmp.eq.s32.totalorder %s33, 0
      %p222 = por %p220, %p221
      %p223 = scmp.ne.s32.totalorder %s209, %s210
      %p224 = scmp.eq.s32.totalorder %s34, 3
      %p225 = por %p223, %p224
      %p227 = scmp.ne.s32.totalorder %s210, %s226
      %p228 = scmp.eq.s32.totalorder %s34, 0
      %p229 = por %p227, %p228
      %s230 = ssub.s32 %s36, %s43
      %p231 = scmp.eq.s32.totalorder %s230, 0
      %s233 = sadd.s32 %s232, 1
      %s234 = scalar_select %p231, %s232, %s233
      %p237 = pneg %p231
      %p238 = scmp.eq.s32.totalorder %s28, 3
      %p239 = por %p237, %p238
      %p240 = scmp.ne.s32.totalorder %s232, %s235
      %p241 = scmp.eq.s32.totalorder %s28, 0
      %p242 = por %p240, %p241
      %p243 = scmp.ne.s32.totalorder %s232, %s235
      %p244 = scmp.eq.s32.totalorder %s33, 3
      %p245 = por %p243, %p244
      %p246 = scmp.ne.s32.totalorder %s235, %s236
      %p247 = scmp.eq.s32.totalorder %s33, 0
      %p248 = por %p246, %p247
      %p249 = scmp.ne.s32.totalorder %s235, %s236
      %p250 = scmp.eq.s32.totalorder %s34, 3
      %p251 = por %p249, %p250
      %p253 = scmp.ne.s32.totalorder %s236, %s252
      %p254 = scmp.eq.s32.totalorder %s34, 0
      %p255 = por %p253, %p254
      %s256 = ssub.s32 %s36, %s43
      %p257 = scmp.eq.s32.totalorder %s256, 0
      %s259 = sadd.s32 %s258, 1
      %s260 = scalar_select %p257, %s258, %s259
      %p263 = pneg %p257
      %p264 = scmp.eq.s32.totalorder %s28, 3
      %p265 = por %p263, %p264
      %p266 = scmp.ne.s32.totalorder %s258, %s261
      %p267 = scmp.eq.s32.totalorder %s28, 0
      %p268 = por %p266, %p267
      %p269 = scmp.ne.s32.totalorder %s258, %s261
      %p270 = scmp.eq.s32.totalorder %s33, 3
      %p271 = por %p269, %p270
      %p272 = scmp.ne.s32.totalorder %s261, %s262
      %p273 = scmp.eq.s32.totalorder %s33, 0
      %p274 = por %p272, %p273
      %p275 = scmp.ne.s32.totalorder %s261, %s262
      %p276 = scmp.eq.s32.totalorder %s34, 3
      %p277 = por %p275, %p276
      %p279 = scmp.ne.s32.totalorder %s262, %s278
      %p280 = scmp.eq.s32.totalorder %s34, 0
      %p281 = por %p279, %p280
      %s282 = ssub.s32 %s36, %s43
      %p283 = scmp.eq.s32.totalorder %s282, 0
      %s285 = sadd.s32 %s284, 1
      %s286 = scalar_select %p283, %s284, %s285
      %p289 = pneg %p283
      %p290 = scmp.eq.s32.totalorder %s28, 3
      %p291 = por %p289, %p290
      %p292 = scmp.ne.s32.totalorder %s284, %s287
      %p293 = scmp.eq.s32.totalorder %s28, 0
      %p294 = por %p292, %p293
      %p295 = scmp.ne.s32.totalorder %s284, %s287
      %p296 = scmp.eq.s32.totalorder %s33, 3
      %p297 = por %p295, %p296
      %p298 = scmp.ne.s32.totalorder %s287, %s288
      %p299 = scmp.eq.s32.totalorder %s33, 0
      %p300 = por %p298, %p299
      %p301 = scmp.ne.s32.totalorder %s287, %s288
      %p302 = scmp.eq.s32.totalorder %s34, 3
      %p303 = por %p301, %p302
      %p305 = scmp.ne.s32.totalorder %s288, %s304
      %p306 = scmp.eq.s32.totalorder %s34, 0
      %p307 = por %p305, %p306
      %s308 = ssub.s32 %s36, %s43
      %p309 = scmp.eq.s32.totalorder %s308, 0
      %s311 = sadd.s32 %s310, 1
      %s312 = scalar_select %p309, %s310, %s311
      %p315 = pneg %p309
      %p316 = scmp.eq.s32.totalorder %s28, 3
      %p317 = por %p315, %p316
      %p318 = scmp.ne.s32.totalorder %s310, %s313
      %p319 = scmp.eq.s32.totalorder %s28, 0
      %p320 = por %p318, %p319
      %p321 = scmp.ne.s32.totalorder %s310, %s313
      %p322 = scmp.eq.s32.totalorder %s33, 3
      %p323 = por %p321, %p322
      %p324 = scmp.ne.s32.totalorder %s313, %s314
      %p325 = scmp.eq.s32.totalorder %s33, 0
      %p326 = por %p324, %p325
      %p327 = scmp.ne.s32.totalorder %s313, %s314
      %p328 = scmp.eq.s32.totalorder %s34, 3
      %p329 = por %p327, %p328
      %p331 = scmp.ne.s32.totalorder %s314, %s330
      %p332 = scmp.eq.s32.totalorder %s34, 0
      %p333 = por %p331, %p332
      %s334 = ssub.s32 %s36, %s43
      %p335 = scmp.eq.s32.totalorder %s334, 0
      %s337 = sadd.s32 %s336, 1
      %s338 = scalar_select %p335, %s336, %s337
      %p341 = pneg %p335
      %p342 = scmp.eq.s32.totalorder %s28, 3
      %p343 = por %p341, %p342
      %p344 = scmp.ne.s32.totalorder %s336, %s339
      %p345 = scmp.eq.s32.totalorder %s28, 0
      %p346 = por %p344, %p345
      %p347 = scmp.ne.s32.totalorder %s336, %s339
      %p348 = scmp.eq.s32.totalorder %s33, 3
      %p349 = por %p347, %p348
      %p350 = scmp.ne.s32.totalorder %s339, %s340
      %p351 = scmp.eq.s32.totalorder %s33, 0
      %p352 = por %p350, %p351
      %p353 = scmp.ne.s32.totalorder %s339, %s340
      %p354 = scmp.eq.s32.totalorder %s34, 3
      %p355 = por %p353, %p354
      %p357 = scmp.ne.s32.totalorder %s340, %s356
      %p358 = scmp.eq.s32.totalorder %s34, 0
      %p359 = por %p357, %p358
      %s360 = ssub.s32 %s36, %s43
      %p361 = scmp.eq.s32.totalorder %s360, 0
      %s363 = sadd.s32 %s362, 1
      %s364 = scalar_select %p361, %s362, %s363
      %p367 = pneg %p361
      %p368 = scmp.eq.s32.totalorder %s28, 3
      %p369 = por %p367, %p368
      %p370 = scmp.ne.s32.totalorder %s362, %s365
      %p371 = scmp.eq.s32.totalorder %s28, 0
      %p372 = por %p370, %p371
      %p373 = scmp.ne.s32.totalorder %s362, %s365
      %p374 = scmp.eq.s32.totalorder %s33, 3
      %p375 = por %p373, %p374
      %p376 = scmp.ne.s32.totalorder %s365, %s366
      %p377 = scmp.eq.s32.totalorder %s33, 0
      %p378 = por %p376, %p377
      %p379 = scmp.ne.s32.totalorder %s365, %s366
      %p380 = scmp.eq.s32.totalorder %s34, 3
      %p381 = por %p379, %p380
      %p383 = scmp.ne.s32.totalorder %s366, %s382
      %p384 = scmp.eq.s32.totalorder %s34, 0
      %p385 = por %p383, %p384
      %s387 = sadd.s32 %s386, 1
      %p390 = scmp.eq.s32.totalorder %s28, 3
      %p391 = scmp.ne.s32.totalorder %s386, %s388
      %p392 = scmp.eq.s32.totalorder %s28, 0
      %p393 = por %p391, %p392
      %p394 = scmp.ne.s32.totalorder %s386, %s388
      %p395 = scmp.eq.s32.totalorder %s33, 3
      %p396 = por %p394, %p395
      %p397 = scmp.ne.s32.totalorder %s388, %s389
      %p398 = scmp.eq.s32.totalorder %s33, 0
      %p399 = por %p397, %p398
      %p400 = scmp.ne.s32.totalorder %s388, %s389
      %p401 = scmp.eq.s32.totalorder %s34, 3
      %p402 = por %p400, %p401
      %p404 = scmp.ne.s32.totalorder %s389, %s403
      %p405 = scmp.eq.s32.totalorder %s34, 0
      %p406 = por %p404, %p405
      %s408 = sadd.s32 %s407, 1
      %p411 = scmp.eq.s32.totalorder %s28, 3
      %p412 = scmp.ne.s32.totalorder %s407, %s409
      %p413 = scmp.eq.s32.totalorder %s28, 0
      %p414 = por %p412, %p413
      %p415 = scmp.ne.s32.totalorder %s407, %s409
      %p416 = scmp.eq.s32.totalorder %s33, 3
      %p417 = por %p415, %p416
      %p418 = scmp.ne.s32.totalorder %s409, %s410
      %p419 = scmp.eq.s32.totalorder %s33, 0
      %p420 = por %p418, %p419
      %p421 = scmp.ne.s32.totalorder %s409, %s410
      %p422 = scmp.eq.s32.totalorder %s34, 3
      %p423 = por %p421, %p422
      %p425 = scmp.ne.s32.totalorder %s410, %s424
      %p426 = scmp.eq.s32.totalorder %s34, 0
      %p427 = por %p425, %p426
      %s429 = sadd.s32 %s428, 1
      %p432 = scmp.eq.s32.totalorder %s28, 3
      %p433 = scmp.ne.s32.totalorder %s428, %s430
      %p434 = scmp.eq.s32.totalorder %s28, 0
      %p435 = por %p433, %p434
      %p436 = scmp.ne.s32.totalorder %s428, %s430
      %p437 = scmp.eq.s32.totalorder %s33, 3
      %p438 = por %p436, %p437
      %p439 = scmp.ne.s32.totalorder %s430, %s431
      %p440 = scmp.eq.s32.totalorder %s33, 0
      %p441 = por %p439, %p440
      %p442 = scmp.ne.s32.totalorder %s430, %s431
      %p443 = scmp.eq.s32.totalorder %s34, 3
      %p444 = por %p442, %p443
      %p446 = scmp.ne.s32.totalorder %s431, %s445
      %p447 = scmp.eq.s32.totalorder %s34, 0
      %p448 = por %p446, %p447
      %s450 = sadd.s32 %s449, 1
      %p453 = scmp.eq.s32.totalorder %s28, 3
      %p454 = scmp.ne.s32.totalorder %s449, %s451
      %p455 = scmp.eq.s32.totalorder %s28, 0
      %p456 = por %p454, %p455
      %p457 = scmp.ne.s32.totalorder %s449, %s451
      %p458 = scmp.eq.s32.totalorder %s33, 3
      %p459 = por %p457, %p458
      %p460 = scmp.ne.s32.totalorder %s451, %s452
      %p461 = scmp.eq.s32.totalorder %s33, 0
      %p462 = por %p460, %p461
      %p463 = scmp.ne.s32.totalorder %s451, %s452
      %p464 = scmp.eq.s32.totalorder %s34, 3
      %p465 = por %p463, %p464
      %p467 = scmp.ne.s32.totalorder %s452, %s466
      %p468 = scmp.eq.s32.totalorder %s34, 0
      %p469 = por %p467, %p468
      %s470 = ssub.s32 %s35, %s47
      %p471 = scmp.eq.s32.totalorder %s470, 0
      %s473 = sadd.s32 %s472, 1
      %s474 = scalar_select %p471, %s472, %s473
      %p477 = pneg %p471
      %p478 = scmp.eq.s32.totalorder %s28, 3
      %p479 = por %p477, %p478
      %p480 = scmp.ne.s32.totalorder %s472, %s475
      %p481 = scmp.eq.s32.totalorder %s28, 0
      %p482 = por %p480, %p481
      %p483 = scmp.ne.s32.totalorder %s472, %s475
      %p484 = scmp.eq.s32.totalorder %s33, 3
      %p485 = por %p483, %p484
      %p486 = scmp.ne.s32.totalorder %s475, %s476
      %p487 = scmp.eq.s32.totalorder %s33, 0
      %p488 = por %p486, %p487
      %p489 = scmp.ne.s32.totalorder %s475, %s476
      %p490 = scmp.eq.s32.totalorder %s34, 3
      %p491 = por %p489, %p490
      %p493 = scmp.ne.s32.totalorder %s476, %s492
      %p494 = scmp.eq.s32.totalorder %s34, 0
      %p495 = por %p493, %p494
      %s496 = ssub.s32 %s35, %s47
      %p497 = scmp.eq.s32.totalorder %s496, 0
      %s499 = sadd.s32 %s498, 1
      %s500 = scalar_select %p497, %s498, %s499
      %p503 = pneg %p497
      %p504 = scmp.eq.s32.totalorder %s28, 3
      %p505 = por %p503, %p504
      %p506 = scmp.ne.s32.totalorder %s498, %s501
      %p507 = scmp.eq.s32.totalorder %s28, 0
      %p508 = por %p506, %p507
      %p509 = scmp.ne.s32.totalorder %s498, %s501
      %p510 = scmp.eq.s32.totalorder %s33, 3
      %p511 = por %p509, %p510
      %p512 = scmp.ne.s32.totalorder %s501, %s502
      %p513 = scmp.eq.s32.totalorder %s33, 0
      %p514 = por %p512, %p513
      %p515 = scmp.ne.s32.totalorder %s501, %s502
      %p516 = scmp.eq.s32.totalorder %s34, 3
      %p517 = por %p515, %p516
      %p519 = scmp.ne.s32.totalorder %s502, %s518
      %p520 = scmp.eq.s32.totalorder %s34, 0
      %p521 = por %p519, %p520
      %p522 = scmp.le.s32.totalorder 1, %s28
      %p523 = scmp.lt.s32.totalorder %s28, 5
      %p524 = pnand %p522, %p523
      %p525 = pneg %p524
      // Predicated region
      $region9: #{backbone_and_heads.3} parent=5 // pred_check
        _
      $region10: #{backbone_and_heads.3} parent=5 // pred_check_branch
        %527 = sbr.rel (%p524) target = $region12
      $region11: #{backbone_and_heads.3} parent=5 // pred_region
        %s528 = ssub.s32 %s28, 1
        // Predicated region
        $region13: #{backbone_and_heads.3} parent=11 // pred_check
          %p529 = pneg %p399
        $region14: #{backbone_and_heads.3} parent=11 // pred_check_branch
          %531 = sbr.rel (%p529) target = $region16
        $region15: #{backbone_and_heads.3} parent=11 // pred_region
          _
        $region16: #{backbone_and_heads.3} parent=11 // pred_fallthru
          _
        // Predicated region
        $region17: #{backbone_and_heads.3} parent=11 // pred_check
          %p532 = pneg %p420
        $region18: #{backbone_and_heads.3} parent=11 // pred_check_branch
          %534 = sbr.rel (%p532) target = $region20
        $region19: #{backbone_and_heads.3} parent=11 // pred_region
          _
        $region20: #{backbone_and_heads.3} parent=11 // pred_fallthru
          _
        // Predicated region
        $region21: #{backbone_and_heads.3} parent=11 // pred_check
          %p535 = pneg %p441
        $region22: #{backbone_and_heads.3} parent=11 // pred_check_branch
          %537 = sbr.rel (%p535) target = $region24
        $region23: #{backbone_and_heads.3} parent=11 // pred_region
          _
        $region24: #{backbone_and_heads.3} parent=11 // pred_fallthru
          _
        // Predicated region
        $region25: #{backbone_and_heads.3} parent=11 // pred_check
          %p538 = pneg %p462
        $region26: #{backbone_and_heads.3} parent=11 // pred_check_branch
          %540 = sbr.rel (%p538) target = $region28
        $region27: #{backbone_and_heads.3} parent=11 // pred_region
          _
        $region28: #{backbone_and_heads.3} parent=11 // pred_fallthru
          _
      $region12: #{backbone_and_heads.3} parent=5 // pred_fallthru
        _
      %p541 = scmp.lt.s32.totalorder %s28, 4
      // Predicated region
      $region29: #{backbone_and_heads.3} parent=5 // pred_check
        %p542 = pneg %p541
      $region30: #{backbone_and_heads.3} parent=5 // pred_check_branch
        %544 = sbr.rel (%p542) target = $region32
      $region31: #{backbone_and_heads.3} parent=5 // pred_region
        // Predicated region
        $region33: #{backbone_and_heads.3} parent=31 // pred_check
          %p545 = pneg %p60
        $region34: #{backbone_and_heads.3} parent=31 // pred_check_branch
          %547 = sbr.rel (%p545) target = $region36
        $region35: #{backbone_and_heads.3} parent=31 // pred_region
          %s548 = smul.u32 2, %s35
          %p549 = scmp.lt.s32.totalorder %s548, 3
          %s550 = scalar_select %p549, %s548, 3
          %s551 = smul.addr %s550, 8
          %s552 = scalar_lea.vmem %s0, %s551
          %s553 = smul.u32 2, %s35
        $region36: #{backbone_and_heads.3} parent=31 // pred_fallthru
          _
        // Predicated region
        $region37: #{backbone_and_heads.3} parent=31 // pred_check
          %p554 = pneg %p86
        $region38: #{backbone_and_heads.3} parent=31 // pred_check_branch
          %556 = sbr.rel (%p554) target = $region40
        $region39: #{backbone_and_heads.3} parent=31 // pred_region
          %p557 = scmp.lt.s32.totalorder %s36, 1
          %s558 = scalar_select %p557, %s36, 1
          %s559 = scalar_lea.vmem %s1, %s558
        $region40: #{backbone_and_heads.3} parent=31 // pred_fallthru
          _
        // Predicated region
        $region41: #{backbone_and_heads.3} parent=31 // pred_check
          %p560 = pneg %p112
        $region42: #{backbone_and_heads.3} parent=31 // pred_check_branch
          %562 = sbr.rel (%p560) target = $region44
        $region43: #{backbone_and_heads.3} parent=31 // pred_region
          %p563 = scmp.lt.s32.totalorder %s36, 1
          %s564 = scalar_select %p563, %s36, 1
          %s565 = scalar_lea.vmem %s2, %s564
        $region44: #{backbone_and_heads.3} parent=31 // pred_fallthru
          _
        // Predicated region
        $region45: #{backbone_and_heads.3} parent=31 // pred_check
          %p566 = pneg %p138
        $region46: #{backbone_and_heads.3} parent=31 // pred_check_branch
          %568 = sbr.rel (%p566) target = $region48
        $region47: #{backbone_and_heads.3} parent=31 // pred_region
          %p569 = scmp.lt.s32.totalorder %s36, 1
          %s570 = scalar_select %p569, %s36, 1
          %s571 = smul.addr %s570, 48
          %s572 = smul.addr %s571, 4
          %s573 = scalar_lea.vmem %s3, %s572
        $region48: #{backbone_and_heads.3} parent=31 // pred_fallthru
          _
        // Predicated region
        $region49: #{backbone_and_heads.3} parent=31 // pred_check
          %p574 = pneg %p164
        $region50: #{backbone_and_heads.3} parent=31 // pred_check_branch
          %576 = sbr.rel (%p574) target = $region52
        $region51: #{backbone_and_heads.3} parent=31 // pred_region
          %p577 = scmp.lt.s32.totalorder %s36, 1
          %s578 = scalar_select %p577, %s36, 1
          %s579 = smul.addr %s578, 3
          %s580 = scalar_lea.vmem %s4, %s579
        $region52: #{backbone_and_heads.3} parent=31 // pred_fallthru
          _
        // Predicated region
        $region53: #{backbone_and_heads.3} parent=31 // pred_check
          %p581 = pneg %p190
        $region54: #{backbone_and_heads.3} parent=31 // pred_check_branch
          %583 = sbr.rel (%p581) target = $region56
        $region55: #{backbone_and_heads.3} parent=31 // pred_region
          %p584 = scmp.lt.s32.totalorder %s36, 1
          %s585 = scalar_select %p584, %s36, 1
          %s586 = smul.addr %s585, 16
          %s587 = smul.addr %s586, 4
          %s588 = scalar_lea.vmem %s5, %s587
        $region56: #{backbone_and_heads.3} parent=31 // pred_fallthru
          _
        // Predicated region
        $region57: #{backbone_and_heads.3} parent=31 // pred_check
          %p589 = pneg %p216
        $region58: #{backbone_and_heads.3} parent=31 // pred_check_branch
          %591 = sbr.rel (%p589) target = $region60
        $region59: #{backbone_and_heads.3} parent=31 // pred_region
          %p592 = scmp.lt.s32.totalorder %s36, 1
          %s593 = scalar_select %p592, %s36, 1
          %s594 = scalar_lea.vmem %s6, %s593
        $region60: #{backbone_and_heads.3} parent=31 // pred_fallthru
          _
        // Predicated region
        $region61: #{backbone_and_heads.3} parent=31 // pred_check
          %p595 = pneg %p242
        $region62: #{backbone_and_heads.3} parent=31 // pred_check_branch
          %597 = sbr.rel (%p595) target = $region64
        $region63: #{backbone_and_heads.3} parent=31 // pred_region
          %p598 = scmp.lt.s32.totalorder %s36, 1
          %s599 = scalar_select %p598, %s36, 1
          %s600 = scalar_lea.vmem %s7, %s599
        $region64: #{backbone_and_heads.3} parent=31 // pred_fallthru
          _
        // Predicated region
        $region65: #{backbone_and_heads.3} parent=31 // pred_check
          %p601 = pneg %p268
        $region66: #{backbone_and_heads.3} parent=31 // pred_check_branch
          %603 = sbr.rel (%p601) target = $region68
        $region67: #{backbone_and_heads.3} parent=31 // pred_region
          %p604 = scmp.lt.s32.totalorder %s36, 1
          %s605 = scalar_select %p604, %s36, 1
          %s606 = scalar_lea.vmem %s8, %s605
        $region68: #{backbone_and_heads.3} parent=31 // pred_fallthru
          _
        // Predicated region
        $region69: #{backbone_and_heads.3} parent=31 // pred_check
          %p607 = pneg %p294
        $region70: #{backbone_and_heads.3} parent=31 // pred_check_branch
          %609 = sbr.rel (%p607) target = $region72
        $region71: #{backbone_and_heads.3} parent=31 // pred_region
          %p610 = scmp.lt.s32.totalorder %s36, 1
          %s611 = scalar_select %p610, %s36, 1
          %s612 = smul.addr %s611, 64
          %s613 = smul.addr %s612, 4
          %s614 = scalar_lea.vmem %s9, %s613
        $region72: #{backbone_and_heads.3} parent=31 // pred_fallthru
          _
        // Predicated region
        $region73: #{backbone_and_heads.3} parent=31 // pred_check
          %p615 = pneg %p320
        $region74: #{backbone_and_heads.3} parent=31 // pred_check_branch
          %617 = sbr.rel (%p615) target = $region76
        $region75: #{backbone_and_heads.3} parent=31 // pred_region
          %p618 = scmp.lt.s32.totalorder %s36, 1
          %s619 = scalar_select %p618, %s36, 1
          %s620 = smul.addr %s619, 4
          %s621 = scalar_lea.vmem %s10, %s620
        $region76: #{backbone_and_heads.3} parent=31 // pred_fallthru
          _
        // Predicated region
        $region77: #{backbone_and_heads.3} parent=31 // pred_check
          %p622 = pneg %p346
        $region78: #{backbone_and_heads.3} parent=31 // pred_check_branch
          %624 = sbr.rel (%p622) target = $region80
        $region79: #{backbone_and_heads.3} parent=31 // pred_region
          %p625 = scmp.lt.s32.totalorder %s36, 1
          %s626 = scalar_select %p625, %s36, 1
          %s627 = smul.addr %s626, 64
          %s628 = smul.addr %s627, 4
          %s629 = scalar_lea.vmem %s11, %s628
        $region80: #{backbone_and_heads.3} parent=31 // pred_fallthru
          _
        // Predicated region
        $region81: #{backbone_and_heads.3} parent=31 // pred_check
          %p630 = pneg %p372
        $region82: #{backbone_and_heads.3} parent=31 // pred_check_branch
          %632 = sbr.rel (%p630) target = $region84
        $region83: #{backbone_and_heads.3} parent=31 // pred_region
          %p633 = scmp.lt.s32.totalorder %s36, 1
          %s634 = scalar_select %p633, %s36, 1
          %s635 = scalar_lea.vmem %s12, %s634
        $region84: #{backbone_and_heads.3} parent=31 // pred_fallthru
          _
      $region32: #{backbone_and_heads.3} parent=5 // pred_fallthru
        _
      %p636 = scmp.le.s32.totalorder 1, %s28
      %p637 = scmp.lt.s32.totalorder %s28, 5
      %p638 = pnand %p636, %p637
      %p639 = pneg %p638
      // Predicated region
      $region85: #{backbone_and_heads.3} parent=5 // pred_check
        _
      $region86: #{backbone_and_heads.3} parent=5 // pred_check_branch
        %641 = sbr.rel (%p638) target = $region88
      $region87: #{backbone_and_heads.3} parent=5 // pred_region
        %s642 = ssub.s32 %s28, 1
        %s643 = smul.u32 2, %s37
        %p644 = scmp.lt.s32.totalorder %s643, 3
        %s645 = scalar_select %p644, %s643, 3
        %s646 = smul.addr %s645, 8
        %s647 = scalar_lea.vmem %s0, %s646
        %p648 = pneg %p66
        %p649 = pneg %p63
        %p650 = scmp.lt.s32.totalorder %s38, 1
        %s651 = scalar_select %p650, %s38, 1
        %s652 = scalar_lea.vmem %s1, %s651
        %p653 = pneg %p92
        %p654 = pneg %p89
        %p655 = scmp.lt.s32.totalorder %s38, 1
        %s656 = scalar_select %p655, %s38, 1
        %s657 = scalar_lea.vmem %s2, %s656
        %p658 = pneg %p118
        %p659 = pneg %p115
        %p660 = scmp.lt.s32.totalorder %s38, 1
        %s661 = scalar_select %p660, %s38, 1
        %s662 = smul.addr %s661, 48
        %s663 = smul.addr %s662, 4
        %s664 = scalar_lea.vmem %s3, %s663
        %p665 = pneg %p144
        %p666 = pneg %p141
        %p667 = scmp.lt.s32.totalorder %s38, 1
        %s668 = scalar_select %p667, %s38, 1
        %s669 = smul.addr %s668, 3
        %s670 = scalar_lea.vmem %s4, %s669
        %p671 = pneg %p170
        %p672 = pneg %p167
        %p673 = scmp.lt.s32.totalorder %s38, 1
        %s674 = scalar_select %p673, %s38, 1
        %s675 = smul.addr %s674, 16
        %s676 = smul.addr %s675, 4
        %s677 = scalar_lea.vmem %s5, %s676
        %p678 = pneg %p196
        %p679 = pneg %p193
        %p680 = scmp.lt.s32.totalorder %s38, 1
        %s681 = scalar_select %p680, %s38, 1
        %s682 = scalar_lea.vmem %s6, %s681
        %p683 = pneg %p222
        %p684 = pneg %p219
        %p685 = scmp.lt.s32.totalorder %s38, 1
        %s686 = scalar_select %p685, %s38, 1
        %s687 = scalar_lea.vmem %s7, %s686
        %p688 = pneg %p248
        %p689 = pneg %p245
        %p690 = scmp.lt.s32.totalorder %s38, 1
        %s691 = scalar_select %p690, %s38, 1
        %s692 = scalar_lea.vmem %s8, %s691
        %p693 = pneg %p274
        %p694 = pneg %p271
        %p695 = scmp.lt.s32.totalorder %s38, 1
        %s696 = scalar_select %p695, %s38, 1
        %s697 = smul.addr %s696, 64
        %s698 = smul.addr %s697, 4
        %s699 = scalar_lea.vmem %s9, %s698
        %p700 = pneg %p300
        %p701 = pneg %p297
        %p702 = scmp.lt.s32.totalorder %s38, 1
        %s703 = scalar_select %p702, %s38, 1
        %s704 = smul.addr %s703, 4
        %s705 = scalar_lea.vmem %s10, %s704
        %p706 = pneg %p326
        %p707 = pneg %p323
        %p708 = scmp.lt.s32.totalorder %s38, 1
        %s709 = scalar_select %p708, %s38, 1
        %s710 = smul.addr %s709, 64
        %s711 = smul.addr %s710, 4
        %s712 = scalar_lea.vmem %s11, %s711
        %p713 = pneg %p352
        %p714 = pneg %p349
        %p715 = scmp.lt.s32.totalorder %s38, 1
        %s716 = scalar_select %p715, %s38, 1
        %s717 = scalar_lea.vmem %s12, %s716
        %p718 = pneg %p378
        %p719 = pneg %p375
        %p720 = pneg %p399
        %p721 = pneg %p396
        %p722 = pneg %p420
        %p723 = pneg %p417
        %p724 = pneg %p441
        %p725 = pneg %p438
        %p726 = pneg %p462
        %p727 = pneg %p459
        %p728 = pneg %p488
        %p729 = pneg %p485
        %s730 = sand.u32 %s475, 1
        %s731 = scalar_lea.sflag [#allocation5], %s730
        %s732 = sand.u32 %s475, 1
        %s733 = smul.addr %s732, 2
        %s734 = scalar_lea.vmem [#allocation4], %s733
        %p735 = pneg %p514
        %p736 = pneg %p511
        %p737 = scmp.lt.s32.totalorder %s37, 1
        %s738 = scalar_select %p737, %s37, 1
        %s739 = smul.addr %s738, 2
        %s740 = scalar_lea.vmem %s18, %s739
        %s741 = smul.u32 2, %s37
        %p742 = scmp.lt.s32.totalorder %s741, 3
        %s743 = scalar_select %p742, %s741, 3
        %s744 = smul.addr %s743, 8
        %s745 = scalar_lea.vmem %s0, %s744
        %s746 = smul.u32 2, %s37
        %p747 = scmp.lt.s32.totalorder %s38, 1
        %s748 = scalar_select %p747, %s38, 1
        %s749 = scalar_lea.vmem %s1, %s748
        %p750 = scmp.lt.s32.totalorder %s38, 1
        %s751 = scalar_select %p750, %s38, 1
        %s752 = scalar_lea.vmem %s2, %s751
        %p753 = scmp.lt.s32.totalorder %s38, 1
        %s754 = scalar_select %p753, %s38, 1
        %s755 = smul.addr %s754, 48
        %s756 = smul.addr %s755, 4
        %s757 = scalar_lea.vmem %s3, %s756
        %p758 = scmp.lt.s32.totalorder %s38, 1
        %s759 = scalar_select %p758, %s38, 1
        %s760 = smul.addr %s759, 3
        %s761 = scalar_lea.vmem %s4, %s760
        %p762 = scmp.lt.s32.totalorder %s38, 1
        %s763 = scalar_select %p762, %s38, 1
        %s764 = smul.addr %s763, 16
        %s765 = smul.addr %s764, 4
        %s766 = scalar_lea.vmem %s5, %s765
        %p767 = scmp.lt.s32.totalorder %s38, 1
        %s768 = scalar_select %p767, %s38, 1
        %s769 = scalar_lea.vmem %s6, %s768
        %p770 = scmp.lt.s32.totalorder %s38, 1
        %s771 = scalar_select %p770, %s38, 1
        %s772 = scalar_lea.vmem %s7, %s771
        %p773 = scmp.lt.s32.totalorder %s38, 1
        %s774 = scalar_select %p773, %s38, 1
        %s775 = scalar_lea.vmem %s8, %s774
        %p776 = scmp.lt.s32.totalorder %s38, 1
        %s777 = scalar_select %p776, %s38, 1
        %s778 = smul.addr %s777, 64
        %s779 = smul.addr %s778, 4
        %s780 = scalar_lea.vmem %s9, %s779
        %p781 = scmp.lt.s32.totalorder %s38, 1
        %s782 = scalar_select %p781, %s38, 1
        %s783 = smul.addr %s782, 4
        %s784 = scalar_lea.vmem %s10, %s783
        %p785 = scmp.lt.s32.totalorder %s38, 1
        %s786 = scalar_select %p785, %s38, 1
        %s787 = smul.addr %s786, 64
        %s788 = smul.addr %s787, 4
        %s789 = scalar_lea.vmem %s11, %s788
        %p790 = scmp.lt.s32.totalorder %s38, 1
        %s791 = scalar_select %p790, %s38, 1
        %s792 = scalar_lea.vmem %s12, %s791
        %p793 = scmp.lt.s32.totalorder %s37, 1
        %s794 = scalar_select %p793, %s37, 1
        %s795 = smul.addr %s794, 2
        %s796 = scalar_lea.vmem %s18, %s795
        %p798 = scmp.eq.s32.totalorder %s38, 0
        // Predicated region
        $region89: #{backbone_and_heads.3} parent=87 // pred_check
          %p799 = pneg %p798
        $region90: #{backbone_and_heads.3} parent=87 // pred_check_branch
          %801 = sbr.rel (%p799) target = $region92
        $region91: #{backbone_and_heads.3} parent=87 // pred_region
          %v802 = vld [vmem:[%s745] sm:$0xff]
          %v803 = vld [vmem:[%s745 + $0x8] sm:$0xff]
          %804 = vst [vmem:[#allocation2] sm:$0xff] %v802
          %805 = vst [vmem:[#allocation2 + $0x8] sm:$0xff] %v803
          %v806 = vlaneseq
          %v807 = vand.u32 %v806, 127
          %vm808 = vcmp.lt.s32.totalorder %v807, 5
          %v809 = vsel %vm808, 0.0, -1e+30
          %vm810 = vcmask 64512
          %811 = vst.msk [vmem:[#allocation3] sm:$0xff] %vm810, %v809
        $region92: #{backbone_and_heads.3} parent=87 // pred_fallthru
          _
        %v812 = vld [vmem:[#allocation2] sm:$0xff]
        %v813 = vld [vmem:[#allocation2 + $0x8] sm:$0xff]
        %v814 = vld [vmem:[%s749] sm:$0x1]
        %v815 = vld [vmem:[%s752] sm:$0x1]
        %816 = vadd.xlane.f32.xlu0 %v812
        %v817 = vpop.xlane.xlu0 %816
        %818 = vadd.xlane.f32.xlu0 %v813
        %v819 = vpop.xlane.xlu0 %818
        %v820 = vrcp.pop 128.0
        %v821 = vmul.f32 %v817, %v820
        %v822 = vmul.f32 %v819, %v820
        %v823 = vsub.f32 %v812, %v821
        %v824 = vsub.f32 %v813, %v822
        %v825 = vmul.f32 %v823, %v823
        %v826 = vmul.f32 %v824, %v824
        %827 = vadd.xlane.f32.xlu0 %v825
        %v828 = vpop.xlane.xlu0 %827
        %829 = vadd.xlane.f32.xlu0 %v826
        %v830 = vpop.xlane.xlu0 %829
        %v831 = vmul.f32 %v828, %v820
        %v832 = vmul.f32 %v830, %v820
        %v833 = vadd.f32 %v831, 1e-06
        %v834 = vadd.f32 %v832, 1e-06
        %v835 = vrsqrt.pop %v833
        %v836 = vrsqrt.pop %v834
        %v837 = vmul.f32 %v823, %v835
        %v838 = vmul.f32 %v824, %v836
        %v840 = vlaneseq
        %v841 = vshrl.u32 %v840, 7
        %v842 = vsub.s32 0, %v841
        %v843 = vrot.slane %v814, %v842
        %v845 = vmul.f32 %v837, %v843
        %v846 = vmul.f32 %v838, %v843
        %v848 = vlaneseq
        %v849 = vshrl.u32 %v848, 7
        %v850 = vsub.s32 0, %v849
        %v851 = vrot.slane %v815, %v850
        %v853 = vadd.f32 %v845, %v851
        %v854 = vadd.f32 %v846, %v851
        %v855 = vpack.c.bf16 %v854, %v853
        %v856 = vld [vmem:[%s757] sm:$0xff]
        %v857 = vld [vmem:[%s757 + $0x8] sm:$0xf]
        %v858 = vld [vmem:[%s757 + $0xc] sm:$0xff]
        %v859 = vld [vmem:[%s757 + $0x14] sm:$0xf]
        %v860 = vld [vmem:[%s757 + $0x18] sm:$0xff]
        %v861 = vld [vmem:[%s757 + $0x20] sm:$0xf]
        %v862 = vld [vmem:[%s757 + $0x24] sm:$0xff]
        %v863 = vld [vmem:[%s757 + $0x2c] sm:$0xf]
        %v864 = vld [vmem:[%s757 + $0x30] sm:$0xff]
        %v865 = vld [vmem:[%s757 + $0x38] sm:$0xf]
        %v866 = vld [vmem:[%s757 + $0x3c] sm:$0xff]
        %v867 = vld [vmem:[%s757 + $0x44] sm:$0xf]
        %v868 = vld [vmem:[%s757 + $0x48] sm:$0xff]
        %v869 = vld [vmem:[%s757 + $0x50] sm:$0xf]
        %v870 = vld [vmem:[%s757 + $0x54] sm:$0xff]
        %v871 = vld [vmem:[%s757 + $0x5c] sm:$0xf]
        %v872 = vld [vmem:[%s757 + $0x60] sm:$0xff]
        %v873 = vld [vmem:[%s757 + $0x68] sm:$0xf]
        %v874 = vld [vmem:[%s757 + $0x6c] sm:$0xff]
        %v875 = vld [vmem:[%s757 + $0x74] sm:$0xf]
        %v876 = vld [vmem:[%s757 + $0x78] sm:$0xff]
        %v877 = vld [vmem:[%s757 + $0x80] sm:$0xf]
        %v878 = vld [vmem:[%s757 + $0x84] sm:$0xff]
        %v879 = vld [vmem:[%s757 + $0x8c] sm:$0xf]
        %v880 = vld [vmem:[%s757 + $0x90] sm:$0xff]
        %v881 = vld [vmem:[%s757 + $0x98] sm:$0xf]
        %v882 = vld [vmem:[%s757 + $0x9c] sm:$0xff]
        %v883 = vld [vmem:[%s757 + $0xa4] sm:$0xf]
        %v884 = vld [vmem:[%s757 + $0xa8] sm:$0xff]
        %v885 = vld [vmem:[%s757 + $0xb0] sm:$0xf]
        %v886 = vld [vmem:[%s757 + $0xb4] sm:$0xff]
        %v887 = vld [vmem:[%s757 + $0xbc] sm:$0xf]
        %v888 = vld [vmem:[%s761] sm:$0x7]
        %v890 = vlaneseq
        %v891 = vshrl.u32 %v890, 7
        %v892 = vsub.s32 0, %v891
        %v893 = vrot.slane %v888, %v892
        %v894 = vlaneseq
        %v895 = vshrl.u32 %v894, 7
        %v896 = vsub.s32 1, %v895
        %v897 = vrot.slane %v888, %v896
        %v898 = vlaneseq
        %v899 = vshrl.u32 %v898, 7
        %v900 = vsub.s32 2, %v899
        %v901 = vrot.slane %v888, %v900
        %v937 = vunpack.c.l.b16 %v856
        %v938 = vunpack.c.h.b16 %v856
        %v939 = vunpack.c.l.b16 %v857
        %v940 = vunpack.c.l.b16 %v858
        %v941 = vunpack.c.h.b16 %v858
        %v942 = vunpack.c.l.b16 %v859
        %v943 = vunpack.c.l.b16 %v860
        %v944 = vunpack.c.h.b16 %v860
        %v945 = vunpack.c.l.b16 %v861
        %v946 = vunpack.c.l.b16 %v862
        %v947 = vunpack.c.h.b16 %v862
        %v948 = vunpack.c.l.b16 %v863
        %v949 = vunpack.c.l.b16 %v864
        %v950 = vunpack.c.h.b16 %v864
        %v951 = vunpack.c.l.b16 %v865
        %v952 = vunpack.c.l.b16 %v866
        %v953 = vunpack.c.h.b16 %v866
        %v954 = vunpack.c.l.b16 %v867
        %v955 = vunpack.c.l.b16 %v868
        %v956 = vunpack.c.h.b16 %v868
        %v957 = vunpack.c.l.b16 %v869
        %v958 = vunpack.c.l.b16 %v870
        %v959 = vunpack.c.h.b16 %v870
        %v960 = vunpack.c.l.b16 %v871
        %v961 = vunpack.c.l.b16 %v872
        %v962 = vunpack.c.h.b16 %v872
        %v963 = vunpack.c.l.b16 %v873
        %v964 = vunpack.c.l.b16 %v874
        %v965 = vunpack.c.h.b16 %v874
        %v966 = vunpack.c.l.b16 %v875
        %v967 = vunpack.c.l.b16 %v876
        %v968 = vunpack.c.h.b16 %v876
        %v969 = vunpack.c.l.b16 %v877
        %v970 = vunpack.c.l.b16 %v878
        %v971 = vunpack.c.h.b16 %v878
        %v972 = vunpack.c.l.b16 %v879
        %v973 = vunpack.c.l.b16 %v880
        %v974 = vunpack.c.h.b16 %v880
        %v975 = vunpack.c.l.b16 %v881
        %v976 = vunpack.c.l.b16 %v882
        %v977 = vunpack.c.h.b16 %v882
        %v978 = vunpack.c.l.b16 %v883
        %v979 = vunpack.c.l.b16 %v884
        %v980 = vunpack.c.h.b16 %v884
        %v981 = vunpack.c.l.b16 %v885
        %v982 = vunpack.c.l.b16 %v886
        %v983 = vunpack.c.h.b16 %v886
        %v984 = vunpack.c.l.b16 %v887
        %v985 = vpack.c.b16 %v940, %v937
        %v986 = vpack.c.b16 %v941, %v938
        %v987 = vpack.c.b16 %v942, %v939
        %v988 = vpack.c.b16 %v946, %v943
        %v989 = vpack.c.b16 %v947, %v944
        %v990 = vpack.c.b16 %v948, %v945
        %v991 = vpack.c.b16 %v952, %v949
        %v992 = vpack.c.b16 %v953, %v950
        %v993 = vpack.c.b16 %v954, %v951
        %v994 = vpack.c.b16 %v958, %v955
        %v995 = vpack.c.b16 %v959, %v956
        %v996 = vpack.c.b16 %v960, %v957
        %v997 = vpack.c.b16 %v964, %v961
        %v998 = vpack.c.b16 %v965, %v962
        %v999 = vpack.c.b16 %v966, %v963
        %v1000 = vpack.c.b16 %v970, %v967
        %v1001 = vpack.c.b16 %v971, %v968
        %v1002 = vpack.c.b16 %v972, %v969
        %v1003 = vpack.c.b16 %v976, %v973
        %v1004 = vpack.c.b16 %v977, %v974
        %v1005 = vpack.c.b16 %v978, %v975
        %v1006 = vpack.c.b16 %v982, %v979
        %v1007 = vpack.c.b16 %v983, %v980
        %v1008 = vpack.c.b16 %v984, %v981
        %1033 = vmatprep.subr.bf16.mxu0 %v986
        %1034 = vmatpush1.bf16.msra.mxu0 %v985
        %1035 = vmatprep.subr.bf16.mxu0 %v989
        %1036 = vmatpush1.bf16.msra.mxu0 %v988
        %1037 = vmatprep.subr.bf16.mxu0 %v992
        %1038 = vmatpush1.bf16.msra.mxu0 %v991
        %1039 = vmatprep.subr.bf16.mxu0 %v995
        %1040 = vmatpush1.bf16.msra.mxu0 %v994
        %1041 = vmatprep.subr.bf16.mxu0 %v998
        %1042 = vmatpush1.bf16.msra.mxu0 %v997
        %1043 = vmatprep.subr.bf16.mxu0 %v1001
        %1044 = vmatpush1.bf16.msra.mxu0 %v1000
        %1045 = vmatprep.subr.bf16.mxu0 %v1004
        %1046 = vmatpush1.bf16.msra.mxu0 %v1003
        %1047 = vmatprep.subr.bf16.mxu0 %v1007
        %1048 = vmatpush1.bf16.msra.mxu0 %v1006
        %1049 = vmatprep.subr.bf16.mxu0 0
        %1050 = vmatpush1.bf16.msra.mxu0 0
        %1051 = vmatprep.subr.bf16.mxu0 0
        %1052 = vmatpush1.bf16.msra.mxu0 0
        %1053 = vmatprep.subr.bf16.mxu0 0
        %1054 = vmatpush1.bf16.msra.mxu0 0
        %1055 = vmatprep.subr.bf16.mxu0 0
        %1056 = vmatpush1.bf16.msra.mxu0 0
        %1057 = vmatprep.subr.bf16.mxu0 0
        %1058 = vmatpush1.bf16.msra.mxu0 0
        %1059 = vmatprep.subr.bf16.mxu0 0
        %1060 = vmatpush1.bf16.msra.mxu0 0
        %1061 = vmatprep.subr.bf16.mxu0 0
        %1062 = vmatpush1.bf16.msra.mxu0 0
        %1063 = vmatprep.subr.bf16.mxu0 0
        %1064 = vmatpush1.bf16.msra.mxu0 0
        %1065 = vmatprep.mubr.bf16.mxu0 0
        %1066 = vmatmul.mubr.bf16.gmra.mrb[0].mxu0 %v855
        %v1067 = vpop.f32.mrb[0].mxu0
        %v1068 = vadd.f32 %v893, %v1067
        %v1069 = vpop.f32.mrb[0].mxu0
        %v1070 = vadd.f32 %v897, %v1069
        %v1071 = vpop.f32.mrb[0].mxu0
        %v1072 = vadd.f32 %v893, %v1071
        %v1073 = vpop.f32.mrb[0].mxu0
        %v1074 = vadd.f32 %v897, %v1073
        %1075 = vdwg.mxu0
        %1076 = vmatprep.subr.bf16.mxu0 0
        %1077 = vmatpush1.bf16.msra.mxu0 %v987
        %1078 = vmatprep.subr.bf16.mxu0 0
        %1079 = vmatpush1.bf16.msra.mxu0 %v990
        %1080 = vmatprep.subr.bf16.mxu0 0
        %1081 = vmatpush1.bf16.msra.mxu0 %v993
        %1082 = vmatprep.subr.bf16.mxu0 0
        %1083 = vmatpush1.bf16.msra.mxu0 %v996
        %1084 = vmatprep.subr.bf16.mxu0 0
        %1085 = vmatpush1.bf16.msra.mxu0 %v999
        %1086 = vmatprep.subr.bf16.mxu0 0
        %1087 = vmatpush1.bf16.msra.mxu0 %v1002
        %1088 = vmatprep.subr.bf16.mxu0 0
        %1089 = vmatpush1.bf16.msra.mxu0 %v1005
        %1090 = vmatprep.subr.bf16.mxu0 0
        %1091 = vmatpush1.bf16.msra.mxu0 %v1008
        %1092 = vmatprep.subr.bf16.mxu0 0
        %1093 = vmatpush1.bf16.msra.mxu0 0
        %1094 = vmatprep.subr.bf16.mxu0 0
        %1095 = vmatpush1.bf16.msra.mxu0 0
        %1096 = vmatprep.subr.bf16.mxu0 0
        %1097 = vmatpush1.bf16.msra.mxu0 0
        %1098 = vmatprep.subr.bf16.mxu0 0
        %1099 = vmatpush1.bf16.msra.mxu0 0
        %1100 = vmatprep.subr.bf16.mxu0 0
        %1101 = vmatpush1.bf16.msra.mxu0 0
        %1102 = vmatprep.subr.bf16.mxu0 0
        %1103 = vmatpush1.bf16.msra.mxu0 0
        %1104 = vmatprep.subr.bf16.mxu0 0
        %1105 = vmatpush1.bf16.msra.mxu0 0
        %1106 = vmatprep.subr.bf16.mxu0 0
        %1107 = vmatpush1.bf16.msra.mxu0 0
        %1108 = vmatprep.mubr.bf16.mxu0 0
        %1109 = vmatmul.mubr.bf16.gmra.mrb[0].mxu0 %v855
        %v1110 = vpop.f32.mrb[0].mxu0
        %v1111 = vadd.f32 %v901, %v1110
        %v1112 = vpop.f32.mrb[0].mxu0
        %v1113 = vpop.f32.mrb[0].mxu0
        %v1114 = vadd.f32 %v901, %v1113
        %v1115 = vpop.f32.mrb[0].mxu0
        %1116 = vdwg.mxu0
        %v1117 = vld [vmem:[#allocation3] sm:$0xff]
        %v1118 = vpack.c.bf16 %v1068, %v1068
        %v1119 = vpack.c.bf16 %v1072, %v1072
        %v1120 = vpack.c.bf16 %v1070, %v1070
        %v1121 = vpack.c.bf16 %v1074, %v1074
        %v1122 = vpack.c.bf16 %v1111, %v1111
        %v1123 = vpack.c.bf16 %v1114, %v1114
        %vm1124 = vcmask 523264
        %v1126 = vsel %vm1124, %v1118, 0
        %v1129 = vsel %vm1124, %v1120, 0
        %1131 = vmatprep.subr.bf16.mxu0 0
        %1132 = vmatpush1.bf16.xpose.msra.mxu0 %v1129
        %1133 = vmatprep.subr.bf16.mxu0 0
        %1134 = vmatpush1.bf16.xpose.msra.mxu0 0
        %1135 = vmatprep.subr.bf16.mxu0 0
        %1136 = vmatpush1.bf16.xpose.msra.mxu0 0
        %1137 = vmatprep.subr.bf16.mxu0 0
        %1138 = vmatpush1.bf16.xpose.msra.mxu0 0
        %1139 = vmatprep.subr.bf16.mxu0 0
        %1140 = vmatpush1.bf16.xpose.msra.mxu0 0
        %1141 = vmatprep.subr.bf16.mxu0 0
        %1142 = vmatpush1.bf16.xpose.msra.mxu0 0
        %1143 = vmatprep.subr.bf16.mxu0 0
        %1144 = vmatpush1.bf16.xpose.msra.mxu0 0
        %1145 = vmatprep.subr.bf16.mxu0 0
        %1146 = vmatpush1.bf16.xpose.msra.mxu0 0
        %1147 = vmatprep.subr.bf16.mxu0 0
        %1148 = vmatpush1.bf16.xpose.msra.mxu0 0
        %1149 = vmatprep.subr.bf16.mxu0 0
        %1150 = vmatpush1.bf16.xpose.msra.mxu0 0
        %1151 = vmatprep.subr.bf16.mxu0 0
        %1152 = vmatpush1.bf16.xpose.msra.mxu0 0
        %1153 = vmatprep.subr.bf16.mxu0 0
        %1154 = vmatpush1.bf16.xpose.msra.mxu0 0
        %1155 = vmatprep.subr.bf16.mxu0 0
        %1156 = vmatpush1.bf16.xpose.msra.mxu0 0
        %1157 = vmatprep.subr.bf16.mxu0 0
        %1158 = vmatpush1.bf16.xpose.msra.mxu0 0
        %1159 = vmatprep.subr.bf16.mxu0 0
        %1160 = vmatpush1.bf16.xpose.msra.mxu0 0
        %1161 = vmatprep.subr.bf16.mxu0 0
        %1162 = vmatpush1.bf16.xpose.msra.mxu0 0
        %1163 = vmatprep.mubr.bf16.mxu0 0
        %1164 = vmatmul.mubr.bf16.gmra.mrb[0].mxu0 %v1126
        %v1165 = vpop.f32.mrb[0].mxu0
        %v1166 = vadd.f32 0.0, %v1165
        %v1167 = vpop.f32.mrb[0].mxu0
        %v1168 = vpop.f32.mrb[0].mxu0
        %v1169 = vpop.f32.mrb[0].mxu0
        %1170 = vdwg.mxu0
        %v1172 = vsel %vm1124, %v1119, 0
        %v1175 = vsel %vm1124, %v1121, 0
        %1177 = vmatprep.subr.bf16.mxu0 0
        %1178 = vmatpush1.bf16.xpose.msra.mxu0 %v1175
        %1179 = vmatprep.subr.bf16.mxu0 0
        %1180 = vmatpush1.bf16.xpose.msra.mxu0 0
        %1181 = vmatprep.subr.bf16.mxu0 0
        %1182 = vmatpush1.bf16.xpose.msra.mxu0 0
        %1183 = vmatprep.subr.bf16.mxu0 0
        %1184 = vmatpush1.bf16.xpose.msra.mxu0 0
        %1185 = vmatprep.subr.bf16.mxu0 0
        %1186 = vmatpush1.bf16.xpose.msra.mxu0 0
        %1187 = vmatprep.subr.bf16.mxu0 0
        %1188 = vmatpush1.bf16.xpose.msra.mxu0 0
        %1189 = vmatprep.subr.bf16.mxu0 0
        %1190 = vmatpush1.bf16.xpose.msra.mxu0 0
        %1191 = vmatprep.subr.bf16.mxu0 0
        %1192 = vmatpush1.bf16.xpose.msra.mxu0 0
        %1193 = vmatprep.subr.bf16.mxu0 0
        %1194 = vmatpush1.bf16.xpose.msra.mxu0 0
        %1195 = vmatprep.subr.bf16.mxu0 0
        %1196 = vmatpush1.bf16.xpose.msra.mxu0 0
        %1197 = vmatprep.subr.bf16.mxu0 0
        %1198 = vmatpush1.bf16.xpose.msra.mxu0 0
        %1199 = vmatprep.subr.bf16.mxu0 0
        %1200 = vmatpush1.bf16.xpose.msra.mxu0 0
        %1201 = vmatprep.subr.bf16.mxu0 0
        %1202 = vmatpush1.bf16.xpose.msra.mxu0 0
        %1203 = vmatprep.subr.bf16.mxu0 0
        %1204 = vmatpush1.bf16.xpose.msra.mxu0 0
        %1205 = vmatprep.subr.bf16.mxu0 0
        %1206 = vmatpush1.bf16.xpose.msra.mxu0 0
        %1207 = vmatprep.subr.bf16.mxu0 0
        %1208 = vmatpush1.bf16.xpose.msra.mxu0 0
        %1209 = vmatprep.mubr.bf16.mxu0 0
        %1210 = vmatmul.mubr.bf16.gmra.mrb[0].mxu0 %v1172
        %v1211 = vpop.f32.mrb[0].mxu0
        %v1212 = vadd.f32 0.0, %v1211
        %v1213 = vpop.f32.mrb[0].mxu0
        %v1214 = vpop.f32.mrb[0].mxu0
        %v1215 = vpop.f32.mrb[0].mxu0
        %1216 = vdwg.mxu0
        %v1217 = vmul.f32 %v1166, 0.125
        %v1218 = vmul.f32 %v1212, 0.125
        %v1219 = vadd.f32 %v1217, %v1117
        %v1220 = vadd.f32 %v1218, %v1117
        %vm1221 = vcmask 64512
        %v1222 = vsel %vm1221, %v1219, -inf
        %1223 = vmax.xlane.f32.xlu0 %v1222
        %v1224 = vpop.xlane.xlu0 %1223
        %v1225 = vsel %vm1221, %v1220, -inf
        %1226 = vmax.xlane.f32.xlu0 %v1225
        %v1227 = vpop.xlane.xlu0 %1226
        %v1228 = vsub.f32 %v1219, %v1224
        %v1229 = vsub.f32 %v1220, %v1227
        %v1230 = vmul.f32 %v1228, 1.442695
        %v1231 = vpow.pop %v1230
        %v1232 = vmul.f32 %v1229, 1.442695
        %v1233 = vpow.pop %v1232
        %v1234 = vsel %vm1221, %v1231, 0.0
        %1235 = vadd.xlane.f32.xlu0 %v1234
        %v1236 = vpop.xlane.xlu0 %1235
        %v1237 = vsel %vm1221, %v1233, 0.0
        %1238 = vadd.xlane.f32.xlu0 %v1237
        %v1239 = vpop.xlane.xlu0 %1238
        %v1240 = vrcp.pop %v1236
        %v1241 = vrcp.pop %v1239
        %v1242 = vmul.f32 %v1231, %v1240
        %v1243 = vmul.f32 %v1233, %v1241
        %v1244 = vpack.c.bf16 %v1242, %v1242
        %v1245 = vpack.c.bf16 %v1243, %v1243
        %v1247 = vsel %vm1221, %v1244, 0
        %vm1249 = vcmask 1043456
        %v1251 = vsel %vm1249, %v1122, 0
        %1253 = vmatprep.subr.bf16.mxu0 0
        %1254 = vmatpush1.bf16.msra.mxu0 %v1251
        %1255 = vmatprep.subr.bf16.mxu0 0
        %1256 = vmatpush1.bf16.msra.mxu0 0
        %1257 = vmatprep.subr.bf16.mxu0 0
        %1258 = vmatpush1.bf16.msra.mxu0 0
        %1259 = vmatprep.subr.bf16.mxu0 0
        %1260 = vmatpush1.bf16.msra.mxu0 0
        %1261 = vmatprep.subr.bf16.mxu0 0
        %1262 = vmatpush1.bf16.msra.mxu0 0
        %1263 = vmatprep.subr.bf16.mxu0 0
        %1264 = vmatpush1.bf16.msra.mxu0 0
        %1265 = vmatprep.subr.bf16.mxu0 0
        %1266 = vmatpush1.bf16.msra.mxu0 0
        %1267 = vmatprep.subr.bf16.mxu0 0
        %1268 = vmatpush1.bf16.msra.mxu0 0
        %1269 = vmatprep.subr.bf16.mxu0 0
        %1270 = vmatpush1.bf16.msra.mxu0 0
        %1271 = vmatprep.subr.bf16.mxu0 0
        %1272 = vmatpush1.bf16.msra.mxu0 0
        %1273 = vmatprep.subr.bf16.mxu0 0
        %1274 = vmatpush1.bf16.msra.mxu0 0
        %1275 = vmatprep.subr.bf16.mxu0 0
        %1276 = vmatpush1.bf16.msra.mxu0 0
        %1277 = vmatprep.subr.bf16.mxu0 0
        %1278 = vmatpush1.bf16.msra.mxu0 0
        %1279 = vmatprep.subr.bf16.mxu0 0
        %1280 = vmatpush1.bf16.msra.mxu0 0
        %1281 = vmatprep.subr.bf16.mxu0 0
        %1282 = vmatpush1.bf16.msra.mxu0 0
        %1283 = vmatprep.subr.bf16.mxu0 0
        %1284 = vmatpush1.bf16.msra.mxu0 0
        %1285 = vmatprep.mubr.bf16.mxu0 0
        %1286 = vmatmul.mubr.bf16.gmra.mrb[0].mxu0 %v1247
        %v1287 = vpop.f32.mrb[0].mxu0
        %v1288 = vadd.f32 0.0, %v1287
        %v1289 = vpop.f32.mrb[0].mxu0
        %v1290 = vpop.f32.mrb[0].mxu0
        %v1291 = vpop.f32.mrb[0].mxu0
        %1292 = vdwg.mxu0
        %v1294 = vsel %vm1221, %v1245, 0
        %v1297 = vsel %vm1249, %v1123, 0
        %1299 = vmatprep.subr.bf16.mxu0 0
        %1300 = vmatpush1.bf16.msra.mxu0 %v1297
        %1301 = vmatprep.subr.bf16.mxu0 0
        %1302 = vmatpush1.bf16.msra.mxu0 0
        %1303 = vmatprep.subr.bf16.mxu0 0
        %1304 = vmatpush1.bf16.msra.mxu0 0
        %1305 = vmatprep.subr.bf16.mxu0 0
        %1306 = vmatpush1.bf16.msra.mxu0 0
        %1307 = vmatprep.subr.bf16.mxu0 0
        %1308 = vmatpush1.bf16.msra.mxu0 0
        %1309 = vmatprep.subr.bf16.mxu0 0
        %1310 = vmatpush1.bf16.msra.mxu0 0
        %1311 = vmatprep.subr.bf16.mxu0 0
        %1312 = vmatpush1.bf16.msra.mxu0 0
        %1313 = vmatprep.subr.bf16.mxu0 0
        %1314 = vmatpush1.bf16.msra.mxu0 0
        %1315 = vmatprep.subr.bf16.mxu0 0
        %1316 = vmatpush1.bf16.msra.mxu0 0
        %1317 = vmatprep.subr.bf16.mxu0 0
        %1318 = vmatpush1.bf16.msra.mxu0 0
        %1319 = vmatprep.subr.bf16.mxu0 0
        %1320 = vmatpush1.bf16.msra.mxu0 0
        %1321 = vmatprep.subr.bf16.mxu0 0
        %1322 = vmatpush1.bf16.msra.mxu0 0
        %1323 = vmatprep.subr.bf16.mxu0 0
        %1324 = vmatpush1.bf16.msra.mxu0 0
        %1325 = vmatprep.subr.bf16.mxu0 0
        %1326 = vmatpush1.bf16.msra.mxu0 0
        %1327 = vmatprep.subr.bf16.mxu0 0
        %1328 = vmatpush1.bf16.msra.mxu0 0
        %1329 = vmatprep.subr.bf16.mxu0 0
        %1330 = vmatpush1.bf16.msra.mxu0 0
        %1331 = vmatprep.mubr.bf16.mxu0 0
        %1332 = vmatmul.mubr.bf16.gmra.mrb[0].mxu0 %v1294
        %v1333 = vpop.f32.mrb[0].mxu0
        %v1334 = vadd.f32 0.0, %v1333
        %v1335 = vpop.f32.mrb[0].mxu0
        %v1336 = vpop.f32.mrb[0].mxu0
        %v1337 = vpop.f32.mrb[0].mxu0
        %1338 = vdwg.mxu0
        %1340 = vrot.lane.b32.xlu0 %v1118, 64
        %v1341 = vpop.permute.xlu0 %1340
        %1343 = vrot.lane.b32.xlu0 %v1120, 64
        %v1344 = vpop.permute.xlu0 %1343
        %v1346 = vsel %vm1124, %v1341, 0
        %v1349 = vsel %vm1124, %v1344, 0
        %1351 = vmatprep.subr.bf16.mxu0 0
        %1352 = vmatpush1.bf16.xpose.msra.mxu0 %v1349
        %1353 = vmatprep.subr.bf16.mxu0 0
        %1354 = vmatpush1.bf16.xpose.msra.mxu0 0
        %1355 = vmatprep.subr.bf16.mxu0 0
        %1356 = vmatpush1.bf16.xpose.msra.mxu0 0
        %1357 = vmatprep.subr.bf16.mxu0 0
        %1358 = vmatpush1.bf16.xpose.msra.mxu0 0
        %1359 = vmatprep.subr.bf16.mxu0 0
        %1360 = vmatpush1.bf16.xpose.msra.mxu0 0
        %1361 = vmatprep.subr.bf16.mxu0 0
        %1362 = vmatpush1.bf16.xpose.msra.mxu0 0
        %1363 = vmatprep.subr.bf16.mxu0 0
        %1364 = vmatpush1.bf16.xpose.msra.mxu0 0
        %1365 = vmatprep.subr.bf16.mxu0 0
        %1366 = vmatpush1.bf16.xpose.msra.mxu0 0
        %1367 = vmatprep.subr.bf16.mxu0 0
        %1368 = vmatpush1.bf16.xpose.msra.mxu0 0
        %1369 = vmatprep.subr.bf16.mxu0 0
        %1370 = vmatpush1.bf16.xpose.msra.mxu0 0
        %1371 = vmatprep.subr.bf16.mxu0 0
        %1372 = vmatpush1.bf16.xpose.msra.mxu0 0
        %1373 = vmatprep.subr.bf16.mxu0 0
        %1374 = vmatpush1.bf16.xpose.msra.mxu0 0
        %1375 = vmatprep.subr.bf16.mxu0 0
        %1376 = vmatpush1.bf16.xpose.msra.mxu0 0
        %1377 = vmatprep.subr.bf16.mxu0 0
        %1378 = vmatpush1.bf16.xpose.msra.mxu0 0
        %1379 = vmatprep.subr.bf16.mxu0 0
        %1380 = vmatpush1.bf16.xpose.msra.mxu0 0
        %1381 = vmatprep.subr.bf16.mxu0 0
        %1382 = vmatpush1.bf16.xpose.msra.mxu0 0
        %1383 = vmatprep.mubr.bf16.mxu0 0
        %1384 = vmatmul.mubr.bf16.gmra.mrb[0].mxu0 %v1346
        %v1385 = vpop.f32.mrb[0].mxu0
        %v1386 = vadd.f32 0.0, %v1385
        %v1387 = vpop.f32.mrb[0].mxu0
        %v1388 = vpop.f32.mrb[0].mxu0
        %v1389 = vpop.f32.mrb[0].mxu0
        %1390 = vdwg.mxu0
        %1392 = vrot.lane.b32.xlu0 %v1119, 64
        %v1393 = vpop.permute.xlu0 %1392
        %1395 = vrot.lane.b32.xlu0 %v1121, 64
        %v1396 = vpop.permute.xlu0 %1395
        %v1398 = vsel %vm1124, %v1393, 0
        %v1401 = vsel %vm1124, %v1396, 0
        %1403 = vmatprep.subr.bf16.mxu0 0
        %1404 = vmatpush1.bf16.xpose.msra.mxu0 %v1401
        %1405 = vmatprep.subr.bf16.mxu0 0
        %1406 = vmatpush1.bf16.xpose.msra.mxu0 0
        %1407 = vmatprep.subr.bf16.mxu0 0
        %1408 = vmatpush1.bf16.xpose.msra.mxu0 0
        %1409 = vmatprep.subr.bf16.mxu0 0
        %1410 = vmatpush1.bf16.xpose.msra.mxu0 0
        %1411 = vmatprep.subr.bf16.mxu0 0
        %1412 = vmatpush1.bf16.xpose.msra.mxu0 0
        %1413 = vmatprep.subr.bf16.mxu0 0
        %1414 = vmatpush1.bf16.xpose.msra.mxu0 0
        %1415 = vmatprep.subr.bf16.mxu0 0
        %1416 = vmatpush1.bf16.xpose.msra.mxu0 0
        %1417 = vmatprep.subr.bf16.mxu0 0
        %1418 = vmatpush1.bf16.xpose.msra.mxu0 0
        %1419 = vmatprep.subr.bf16.mxu0 0
        %1420 = vmatpush1.bf16.xpose.msra.mxu0 0
        %1421 = vmatprep.subr.bf16.mxu0 0
        %1422 = vmatpush1.bf16.xpose.msra.mxu0 0
        %1423 = vmatprep.subr.bf16.mxu0 0
        %1424 = vmatpush1.bf16.xpose.msra.mxu0 0
        %1425 = vmatprep.subr.bf16.mxu0 0
        %1426 = vmatpush1.bf16.xpose.msra.mxu0 0
        %1427 = vmatprep.subr.bf16.mxu0 0
        %1428 = vmatpush1.bf16.xpose.msra.mxu0 0
        %1429 = vmatprep.subr.bf16.mxu0 0
        %1430 = vmatpush1.bf16.xpose.msra.mxu0 0
        %1431 = vmatprep.subr.bf16.mxu0 0
        %1432 = vmatpush1.bf16.xpose.msra.mxu0 0
        %1433 = vmatprep.subr.bf16.mxu0 0
        %1434 = vmatpush1.bf16.xpose.msra.mxu0 0
        %1435 = vmatprep.mubr.bf16.mxu0 0
        %1436 = vmatmul.mubr.bf16.gmra.mrb[0].mxu0 %v1398
        %v1437 = vpop.f32.mrb[0].mxu0
        %v1438 = vadd.f32 0.0, %v1437
        %v1439 = vpop.f32.mrb[0].mxu0
        %v1440 = vpop.f32.mrb[0].mxu0
        %v1441 = vpop.f32.mrb[0].mxu0
        %1442 = vdwg.mxu0
        %v1443 = vmul.f32 %v1386, 0.125
        %v1444 = vmul.f32 %v1438, 0.125
        %v1445 = vadd.f32 %v1443, %v1117
        %v1446 = vadd.f32 %v1444, %v1117
        %v1447 = vsel %vm1221, %v1445, -inf
        %1448 = vmax.xlane.f32.xlu0 %v1447
        %v1449 = vpop.xlane.xlu0 %1448
        %v1450 = vsel %vm1221, %v1446, -inf
        %1451 = vmax.xlane.f32.xlu0 %v1450
        %v1452 = vpop.xlane.xlu0 %1451
        %v1453 = vsub.f32 %v1445, %v1449
        %v1454 = vsub.f32 %v1446, %v1452
        %v1455 = vmul.f32 %v1453, 1.442695
        %v1456 = vpow.pop %v1455
        %v1457 = vmul.f32 %v1454, 1.442695
        %v1458 = vpow.pop %v1457
        %v1459 = vsel %vm1221, %v1456, 0.0
        %1460 = vadd.xlane.f32.xlu0 %v1459
        %v1461 = vpop.xlane.xlu0 %1460
        %v1462 = vsel %vm1221, %v1458, 0.0
        %1463 = vadd.xlane.f32.xlu0 %v1462
        %v1464 = vpop.xlane.xlu0 %1463
        %v1465 = vrcp.pop %v1461
        %v1466 = vrcp.pop %v1464
        %v1467 = vmul.f32 %v1456, %v1465
        %v1468 = vmul.f32 %v1458, %v1466
        %v1469 = vpack.c.bf16 %v1467, %v1467
        %v1470 = vpack.c.bf16 %v1468, %v1468
        %1472 = vrot.lane.b32.xlu0 %v1122, 64
        %v1473 = vpop.permute.xlu0 %1472
        %v1475 = vsel %vm1221, %v1469, 0
        %v1478 = vsel %vm1249, %v1473, 0
        %1480 = vmatprep.subr.bf16.mxu0 0
        %1481 = vmatpush1.bf16.msra.mxu0 %v1478
        %1482 = vmatprep.subr.bf16.mxu0 0
        %1483 = vmatpush1.bf16.msra.mxu0 0
        %1484 = vmatprep.subr.bf16.mxu0 0
        %1485 = vmatpush1.bf16.msra.mxu0 0
        %1486 = vmatprep.subr.bf16.mxu0 0
        %1487 = vmatpush1.bf16.msra.mxu0 0
        %1488 = vmatprep.subr.bf16.mxu0 0
        %1489 = vmatpush1.bf16.msra.mxu0 0
        %1490 = vmatprep.subr.bf16.mxu0 0
        %1491 = vmatpush1.bf16.msra.mxu0 0
        %1492 = vmatprep.subr.bf16.mxu0 0
        %1493 = vmatpush1.bf16.msra.mxu0 0
        %1494 = vmatprep.subr.bf16.mxu0 0
        %1495 = vmatpush1.bf16.msra.mxu0 0
        %1496 = vmatprep.subr.bf16.mxu0 0
        %1497 = vmatpush1.bf16.msra.mxu0 0
        %1498 = vmatprep.subr.bf16.mxu0 0
        %1499 = vmatpush1.bf16.msra.mxu0 0
        %1500 = vmatprep.subr.bf16.mxu0 0
        %1501 = vmatpush1.bf16.msra.mxu0 0
        %1502 = vmatprep.subr.bf16.mxu0 0
        %1503 = vmatpush1.bf16.msra.mxu0 0
        %1504 = vmatprep.subr.bf16.mxu0 0
        %1505 = vmatpush1.bf16.msra.mxu0 0
        %1506 = vmatprep.subr.bf16.mxu0 0
        %1507 = vmatpush1.bf16.msra.mxu0 0
        %1508 = vmatprep.subr.bf16.mxu0 0
        %1509 = vmatpush1.bf16.msra.mxu0 0
        %1510 = vmatprep.subr.bf16.mxu0 0
        %1511 = vmatpush1.bf16.msra.mxu0 0
        %1512 = vmatprep.mubr.bf16.mxu0 0
        %1513 = vmatmul.mubr.bf16.gmra.mrb[0].mxu0 %v1475
        %v1514 = vpop.f32.mrb[0].mxu0
        %v1515 = vadd.f32 0.0, %v1514
        %v1516 = vpop.f32.mrb[0].mxu0
        %v1517 = vpop.f32.mrb[0].mxu0
        %v1518 = vpop.f32.mrb[0].mxu0
        %1519 = vdwg.mxu0
        %1521 = vrot.lane.b32.xlu0 %v1123, 64
        %v1522 = vpop.permute.xlu0 %1521
        %v1524 = vsel %vm1221, %v1470, 0
        %v1527 = vsel %vm1249, %v1522, 0
        %1529 = vmatprep.subr.bf16.mxu0 0
        %1530 = vmatpush1.bf16.msra.mxu0 %v1527
        %1531 = vmatprep.subr.bf16.mxu0 0
        %1532 = vmatpush1.bf16.msra.mxu0 0
        %1533 = vmatprep.subr.bf16.mxu0 0
        %1534 = vmatpush1.bf16.msra.mxu0 0
        %1535 = vmatprep.subr.bf16.mxu0 0
        %1536 = vmatpush1.bf16.msra.mxu0 0
        %1537 = vmatprep.subr.bf16.mxu0 0
        %1538 = vmatpush1.bf16.msra.mxu0 0
        %1539 = vmatprep.subr.bf16.mxu0 0
        %1540 = vmatpush1.bf16.msra.mxu0 0
        %1541 = vmatprep.subr.bf16.mxu0 0
        %1542 = vmatpush1.bf16.msra.mxu0 0
        %1543 = vmatprep.subr.bf16.mxu0 0
        %1544 = vmatpush1.bf16.msra.mxu0 0
        %1545 = vmatprep.subr.bf16.mxu0 0
        %1546 = vmatpush1.bf16.msra.mxu0 0
        %1547 = vmatprep.subr.bf16.mxu0 0
        %1548 = vmatpush1.bf16.msra.mxu0 0
        %1549 = vmatprep.subr.bf16.mxu0 0
        %1550 = vmatpush1.bf16.msra.mxu0 0
        %1551 = vmatprep.subr.bf16.mxu0 0
        %1552 = vmatpush1.bf16.msra.mxu0 0
        %1553 = vmatprep.subr.bf16.mxu0 0
        %1554 = vmatpush1.bf16.msra.mxu0 0
        %1555 = vmatprep.subr.bf16.mxu0 0
        %1556 = vmatpush1.bf16.msra.mxu0 0
        %1557 = vmatprep.subr.bf16.mxu0 0
        %1558 = vmatpush1.bf16.msra.mxu0 0
        %1559 = vmatprep.subr.bf16.mxu0 0
        %1560 = vmatpush1.bf16.msra.mxu0 0
        %1561 = vmatprep.mubr.bf16.mxu0 0
        %1562 = vmatmul.mubr.bf16.gmra.mrb[0].mxu0 %v1524
        %v1563 = vpop.f32.mrb[0].mxu0
        %v1564 = vadd.f32 0.0, %v1563
        %v1565 = vpop.f32.mrb[0].mxu0
        %v1566 = vpop.f32.mrb[0].mxu0
        %v1567 = vpop.f32.mrb[0].mxu0
        %1568 = vdwg.mxu0
        %1571 = vrot.lane.b32.xlu0 %v1515, 64
        %v1572 = vpop.permute.xlu0 %1571
        %1573 = vrot.lane.b32.xlu0 %v1564, 64
        %v1574 = vpop.permute.xlu0 %1573
        %v1577 = vsel %vm1124, %v1288, %v1572
        %v1578 = vsel %vm1124, %v1334, %v1574
        %v1579 = vpack.c.bf16 %v1578, %v1577
        %v1580 = vld [vmem:[%s766] sm:$0xf]
        %v1581 = vld [vmem:[%s766 + $0x4] sm:$0xf]
        %v1582 = vld [vmem:[%s766 + $0x8] sm:$0xf]
        %v1583 = vld [vmem:[%s766 + $0xc] sm:$0xf]
        %v1584 = vld [vmem:[%s766 + $0x10] sm:$0xf]
        %v1585 = vld [vmem:[%s766 + $0x14] sm:$0xf]
        %v1586 = vld [vmem:[%s766 + $0x18] sm:$0xf]
        %v1587 = vld [vmem:[%s766 + $0x1c] sm:$0xf]
        %v1588 = vld [vmem:[%s766 + $0x20] sm:$0xf]
        %v1589 = vld [vmem:[%s766 + $0x24] sm:$0xf]
        %v1590 = vld [vmem:[%s766 + $0x28] sm:$0xf]
        %v1591 = vld [vmem:[%s766 + $0x2c] sm:$0xf]
        %v1592 = vld [vmem:[%s766 + $0x30] sm:$0xf]
        %v1593 = vld [vmem:[%s766 + $0x34] sm:$0xf]
        %v1594 = vld [vmem:[%s766 + $0x38] sm:$0xf]
        %v1595 = vld [vmem:[%s766 + $0x3c] sm:$0xf]
        %v1596 = vld [vmem:[%s769] sm:$0x1]
        %v1598 = vlaneseq
        %v1599 = vshrl.u32 %v1598, 7
        %v1600 = vsub.s32 0, %v1599
        %v1601 = vrot.slane %v1596, %v1600
        %v1619 = vunpack.c.l.b16 %v1580
        %v1620 = vunpack.c.l.b16 %v1581
        %v1621 = vunpack.c.l.b16 %v1582
        %v1622 = vunpack.c.l.b16 %v1583
        %v1623 = vunpack.c.l.b16 %v1584
        %v1624 = vunpack.c.l.b16 %v1585
        %v1625 = vunpack.c.l.b16 %v1586
        %v1626 = vunpack.c.l.b16 %v1587
        %v1627 = vunpack.c.l.b16 %v1588
        %v1628 = vunpack.c.l.b16 %v1589
        %v1629 = vunpack.c.l.b16 %v1590
        %v1630 = vunpack.c.l.b16 %v1591
        %v1631 = vunpack.c.l.b16 %v1592
        %v1632 = vunpack.c.l.b16 %v1593
        %v1633 = vunpack.c.l.b16 %v1594
        %v1634 = vunpack.c.l.b16 %v1595
        %v1635 = vpack.c.b16 %v1620, %v1619
        %v1636 = vpack.c.b16 %v1622, %v1621
        %v1637 = vpack.c.b16 %v1624, %v1623
        %v1638 = vpack.c.b16 %v1626, %v1625
        %v1639 = vpack.c.b16 %v1628, %v1627
        %v1640 = vpack.c.b16 %v1630, %v1629
        %v1641 = vpack.c.b16 %v1632, %v1631
        %v1642 = vpack.c.b16 %v1634, %v1633
        %1651 = vmatprep.subr.bf16.mxu0 0
        %1652 = vmatpush1.bf16.msra.mxu0 %v1635
        %1653 = vmatprep.subr.bf16.mxu0 0
        %1654 = vmatpush1.bf16.msra.mxu0 %v1636
        %1655 = vmatprep.subr.bf16.mxu0 0
        %1656 = vmatpush1.bf16.msra.mxu0 %v1637
        %1657 = vmatprep.subr.bf16.mxu0 0
        %1658 = vmatpush1.bf16.msra.mxu0 %v1638
        %1659 = vmatprep.subr.bf16.mxu0 0
        %1660 = vmatpush1.bf16.msra.mxu0 %v1639
        %1661 = vmatprep.subr.bf16.mxu0 0
        %1662 = vmatpush1.bf16.msra.mxu0 %v1640
        %1663 = vmatprep.subr.bf16.mxu0 0
        %1664 = vmatpush1.bf16.msra.mxu0 %v1641
        %1665 = vmatprep.subr.bf16.mxu0 0
        %1666 = vmatpush1.bf16.msra.mxu0 %v1642
        %1667 = vmatprep.subr.bf16.mxu0 0
        %1668 = vmatpush1.bf16.msra.mxu0 0
        %1669 = vmatprep.subr.bf16.mxu0 0
        %1670 = vmatpush1.bf16.msra.mxu0 0
        %1671 = vmatprep.subr.bf16.mxu0 0
        %1672 = vmatpush1.bf16.msra.mxu0 0
        %1673 = vmatprep.subr.bf16.mxu0 0
        %1674 = vmatpush1.bf16.msra.mxu0 0
        %1675 = vmatprep.subr.bf16.mxu0 0
        %1676 = vmatpush1.bf16.msra.mxu0 0
        %1677 = vmatprep.subr.bf16.mxu0 0
        %1678 = vmatpush1.bf16.msra.mxu0 0
        %1679 = vmatprep.subr.bf16.mxu0 0
        %1680 = vmatpush1.bf16.msra.mxu0 0
        %1681 = vmatprep.subr.bf16.mxu0 0
        %1682 = vmatpush1.bf16.msra.mxu0 0
        %1683 = vmatprep.mubr.bf16.mxu0 0
        %1684 = vmatmul.mubr.bf16.gmra.mrb[0].mxu0 %v1579
        %v1685 = vpop.f32.mrb[0].mxu0
        %v1686 = vadd.f32 %v1601, %v1685
        %v1687 = vpop.f32.mrb[0].mxu0
        %v1688 = vpop.f32.mrb[0].mxu0
        %v1689 = vadd.f32 %v1601, %v1688
        %v1690 = vpop.f32.mrb[0].mxu0
        %1691 = vdwg.mxu0
        %v1692 = vadd.f32 %v812, %v1686
        %v1693 = vadd.f32 %v813, %v1689
        %v1694 = vld [vmem:[%s772] sm:$0x1]
        %v1695 = vld [vmem:[%s775] sm:$0x1]
        %1696 = vadd.xlane.f32.xlu0 %v1692
        %v1697 = vpop.xlane.xlu0 %1696
        %1698 = vadd.xlane.f32.xlu0 %v1693
        %v1699 = vpop.xlane.xlu0 %1698
        %v1700 = vmul.f32 %v1697, %v820
        %v1701 = vmul.f32 %v1699, %v820
        %v1702 = vsub.f32 %v1692, %v1700
        %v1703 = vsub.f32 %v1693, %v1701
        %v1704 = vmul.f32 %v1702, %v1702
        %v1705 = vmul.f32 %v1703, %v1703
        %1706 = vadd.xlane.f32.xlu0 %v1704
        %v1707 = vpop.xlane.xlu0 %1706
        %1708 = vadd.xlane.f32.xlu0 %v1705
        %v1709 = vpop.xlane.xlu0 %1708
        %v1710 = vmul.f32 %v1707, %v820
        %v1711 = vmul.f32 %v1709, %v820
        %v1712 = vadd.f32 %v1710, 1e-06
        %v1713 = vadd.f32 %v1711, 1e-06
        %v1714 = vrsqrt.pop %v1712
        %v1715 = vrsqrt.pop %v1713
        %v1716 = vmul.f32 %v1702, %v1714
        %v1717 = vmul.f32 %v1703, %v1715
        %v1719 = vlaneseq
        %v1720 = vshrl.u32 %v1719, 7
        %v1721 = vsub.s32 0, %v1720
        %v1722 = vrot.slane %v1694, %v1721
        %v1724 = vmul.f32 %v1716, %v1722
        %v1725 = vmul.f32 %v1717, %v1722
        %v1727 = vlaneseq
        %v1728 = vshrl.u32 %v1727, 7
        %v1729 = vsub.s32 0, %v1728
        %v1730 = vrot.slane %v1695, %v1729
        %v1732 = vadd.f32 %v1724, %v1730
        %v1733 = vadd.f32 %v1725, %v1730
        %v1734 = vpack.c.bf16 %v1733, %v1732
        %v1735 = vld [vmem:[%s780] sm:$0xff]
        %v1736 = vld [vmem:[%s780 + $0x8] sm:$0xff]
        %v1737 = vld [vmem:[%s780 + $0x10] sm:$0xff]
        %v1738 = vld [vmem:[%s780 + $0x18] sm:$0xff]
        %v1739 = vld [vmem:[%s780 + $0x20] sm:$0xff]
        %v1740 = vld [vmem:[%s780 + $0x28] sm:$0xff]
        %v1741 = vld [vmem:[%s780 + $0x30] sm:$0xff]
        %v1742 = vld [vmem:[%s780 + $0x38] sm:$0xff]
        %v1743 = vld [vmem:[%s780 + $0x40] sm:$0xff]
        %v1744 = vld [vmem:[%s780 + $0x48] sm:$0xff]
        %v1745 = vld [vmem:[%s780 + $0x50] sm:$0xff]
        %v1746 = vld [vmem:[%s780 + $0x58] sm:$0xff]
        %v1747 = vld [vmem:[%s780 + $0x60] sm:$0xff]
        %v1748 = vld [vmem:[%s780 + $0x68] sm:$0xff]
        %v1749 = vld [vmem:[%s780 + $0x70] sm:$0xff]
        %v1750 = vld [vmem:[%s780 + $0x78] sm:$0xff]
        %v1751 = vld [vmem:[%s780 + $0x80] sm:$0xff]
        %v1752 = vld [vmem:[%s780 + $0x88] sm:$0xff]
        %v1753 = vld [vmem:[%s780 + $0x90] sm:$0xff]
        %v1754 = vld [vmem:[%s780 + $0x98] sm:$0xff]
        %v1755 = vld [vmem:[%s780 + $0xa0] sm:$0xff]
        %v1756 = vld [vmem:[%s780 + $0xa8] sm:$0xff]
        %v1757 = vld [vmem:[%s780 + $0xb0] sm:$0xff]
        %v1758 = vld [vmem:[%s780 + $0xb8] sm:$0xff]
        %v1759 = vld [vmem:[%s780 + $0xc0] sm:$0xff]
        %v1760 = vld [vmem:[%s780 + $0xc8] sm:$0xff]
        %v1761 = vld [vmem:[%s780 + $0xd0] sm:$0xff]
        %v1762 = vld [vmem:[%s780 + $0xd8] sm:$0xff]
        %v1763 = vld [vmem:[%s780 + $0xe0] sm:$0xff]
        %v1764 = vld [vmem:[%s780 + $0xe8] sm:$0xff]
        %v1765 = vld [vmem:[%s780 + $0xf0] sm:$0xff]
        %v1766 = vld [vmem:[%s780 + $0xf8] sm:$0xff]
        %v1767 = vld [vmem:[%s784] sm:$0xf]
        %v1769 = vlaneseq
        %v1770 = vshrl.u32 %v1769, 7
        %v1771 = vsub.s32 0, %v1770
        %v1772 = vrot.slane %v1767, %v1771
        %v1773 = vlaneseq
        %v1774 = vshrl.u32 %v1773, 7
        %v1775 = vsub.s32 1, %v1774
        %v1776 = vrot.slane %v1767, %v1775
        %v1777 = vlaneseq
        %v1778 = vshrl.u32 %v1777, 7
        %v1779 = vsub.s32 2, %v1778
        %v1780 = vrot.slane %v1767, %v1779
        %v1781 = vlaneseq
        %v1782 = vshrl.u32 %v1781, 7
        %v1783 = vsub.s32 3, %v1782
        %v1784 = vrot.slane %v1767, %v1783
        %v1821 = vunpack.c.l.b16 %v1735
        %v1822 = vunpack.c.h.b16 %v1735
        %v1823 = vunpack.c.l.b16 %v1736
        %v1824 = vunpack.c.h.b16 %v1736
        %v1825 = vunpack.c.l.b16 %v1737
        %v1826 = vunpack.c.h.b16 %v1737
        %v1827 = vunpack.c.l.b16 %v1738
        %v1828 = vunpack.c.h.b16 %v1738
        %v1829 = vunpack.c.l.b16 %v1739
        %v1830 = vunpack.c.h.b16 %v1739
        %v1831 = vunpack.c.l.b16 %v1740
        %v1832 = vunpack.c.h.b16 %v1740
        %v1833 = vunpack.c.l.b16 %v1741
        %v1834 = vunpack.c.h.b16 %v1741
        %v1835 = vunpack.c.l.b16 %v1742
        %v1836 = vunpack.c.h.b16 %v1742
        %v1837 = vunpack.c.l.b16 %v1743
        %v1838 = vunpack.c.h.b16 %v1743
        %v1839 = vunpack.c.l.b16 %v1744
        %v1840 = vunpack.c.h.b16 %v1744
        %v1841 = vunpack.c.l.b16 %v1745
        %v1842 = vunpack.c.h.b16 %v1745
        %v1843 = vunpack.c.l.b16 %v1746
        %v1844 = vunpack.c.h.b16 %v1746
        %v1845 = vunpack.c.l.b16 %v1747
        %v1846 = vunpack.c.h.b16 %v1747
        %v1847 = vunpack.c.l.b16 %v1748
        %v1848 = vunpack.c.h.b16 %v1748
        %v1849 = vunpack.c.l.b16 %v1749
        %v1850 = vunpack.c.h.b16 %v1749
        %v1851 = vunpack.c.l.b16 %v1750
        %v1852 = vunpack.c.h.b16 %v1750
        %v1853 = vunpack.c.l.b16 %v1751
        %v1854 = vunpack.c.h.b16 %v1751
        %v1855 = vunpack.c.l.b16 %v1752
        %v1856 = vunpack.c.h.b16 %v1752
        %v1857 = vunpack.c.l.b16 %v1753
        %v1858 = vunpack.c.h.b16 %v1753
        %v1859 = vunpack.c.l.b16 %v1754
        %v1860 = vunpack.c.h.b16 %v1754
        %v1861 = vunpack.c.l.b16 %v1755
        %v1862 = vunpack.c.h.b16 %v1755
        %v1863 = vunpack.c.l.b16 %v1756
        %v1864 = vunpack.c.h.b16 %v1756
        %v1865 = vunpack.c.l.b16 %v1757
        %v1866 = vunpack.c.h.b16 %v1757
        %v1867 = vunpack.c.l.b16 %v1758
        %v1868 = vunpack.c.h.b16 %v1758
        %v1869 = vunpack.c.l.b16 %v1759
        %v1870 = vunpack.c.h.b16 %v1759
        %v1871 = vunpack.c.l.b16 %v1760
        %v1872 = vunpack.c.h.b16 %v1760
        %v1873 = vunpack.c.l.b16 %v1761
        %v1874 = vunpack.c.h.b16 %v1761
        %v1875 = vunpack.c.l.b16 %v1762
        %v1876 = vunpack.c.h.b16 %v1762
        %v1877 = vunpack.c.l.b16 %v1763
        %v1878 = vunpack.c.h.b16 %v1763
        %v1879 = vunpack.c.l.b16 %v1764
        %v1880 = vunpack.c.h.b16 %v1764
        %v1881 = vunpack.c.l.b16 %v1765
        %v1882 = vunpack.c.h.b16 %v1765
        %v1883 = vunpack.c.l.b16 %v1766
        %v1884 = vunpack.c.h.b16 %v1766
        %v1885 = vpack.c.b16 %v1825, %v1821
        %v1886 = vpack.c.b16 %v1826, %v1822
        %v1887 = vpack.c.b16 %v1827, %v1823
        %v1888 = vpack.c.b16 %v1828, %v1824
        %v1889 = vpack.c.b16 %v1833, %v1829
        %v1890 = vpack.c.b16 %v1834, %v1830
        %v1891 = vpack.c.b16 %v1835, %v1831
        %v1892 = vpack.c.b16 %v1836, %v1832
        %v1893 = vpack.c.b16 %v1841, %v1837
        %v1894 = vpack.c.b16 %v1842, %v1838
        %v1895 = vpack.c.b16 %v1843, %v1839
        %v1896 = vpack.c.b16 %v1844, %v1840
        %v1897 = vpack.c.b16 %v1849, %v1845
        %v1898 = vpack.c.b16 %v1850, %v1846
        %v1899 = vpack.c.b16 %v1851, %v1847
        %v1900 = vpack.c.b16 %v1852, %v1848
        %v1901 = vpack.c.b16 %v1857, %v1853
        %v1902 = vpack.c.b16 %v1858, %v1854
        %v1903 = vpack.c.b16 %v1859, %v1855
        %v1904 = vpack.c.b16 %v1860, %v1856
        %v1905 = vpack.c.b16 %v1865, %v1861
        %v1906 = vpack.c.b16 %v1866, %v1862
        %v1907 = vpack.c.b16 %v1867, %v1863
        %v1908 = vpack.c.b16 %v1868, %v1864
        %v1909 = vpack.c.b16 %v1873, %v1869
        %v1910 = vpack.c.b16 %v1874, %v1870
        %v1911 = vpack.c.b16 %v1875, %v1871
        %v1912 = vpack.c.b16 %v1876, %v1872
        %v1913 = vpack.c.b16 %v1881, %v1877
        %v1914 = vpack.c.b16 %v1882, %v1878
        %v1915 = vpack.c.b16 %v1883, %v1879
        %v1916 = vpack.c.b16 %v1884, %v1880
        %1949 = vmatprep.subr.bf16.mxu0 %v1886
        %1950 = vmatpush1.bf16.msra.mxu0 %v1885
        %1951 = vmatprep.subr.bf16.mxu0 %v1890
        %1952 = vmatpush1.bf16.msra.mxu0 %v1889
        %1953 = vmatprep.subr.bf16.mxu0 %v1894
        %1954 = vmatpush1.bf16.msra.mxu0 %v1893
        %1955 = vmatprep.subr.bf16.mxu0 %v1898
        %1956 = vmatpush1.bf16.msra.mxu0 %v1897
        %1957 = vmatprep.subr.bf16.mxu0 %v1902
        %1958 = vmatpush1.bf16.msra.mxu0 %v1901
        %1959 = vmatprep.subr.bf16.mxu0 %v1906
        %1960 = vmatpush1.bf16.msra.mxu0 %v1905
        %1961 = vmatprep.subr.bf16.mxu0 %v1910
        %1962 = vmatpush1.bf16.msra.mxu0 %v1909
        %1963 = vmatprep.subr.bf16.mxu0 %v1914
        %1964 = vmatpush1.bf16.msra.mxu0 %v1913
        %1965 = vmatprep.subr.bf16.mxu0 0
        %1966 = vmatpush1.bf16.msra.mxu0 0
        %1967 = vmatprep.subr.bf16.mxu0 0
        %1968 = vmatpush1.bf16.msra.mxu0 0
        %1969 = vmatprep.subr.bf16.mxu0 0
        %1970 = vmatpush1.bf16.msra.mxu0 0
        %1971 = vmatprep.subr.bf16.mxu0 0
        %1972 = vmatpush1.bf16.msra.mxu0 0
        %1973 = vmatprep.subr.bf16.mxu0 0
        %1974 = vmatpush1.bf16.msra.mxu0 0
        %1975 = vmatprep.subr.bf16.mxu0 0
        %1976 = vmatpush1.bf16.msra.mxu0 0
        %1977 = vmatprep.subr.bf16.mxu0 0
        %1978 = vmatpush1.bf16.msra.mxu0 0
        %1979 = vmatprep.subr.bf16.mxu0 0
        %1980 = vmatpush1.bf16.msra.mxu0 0
        %1981 = vmatprep.mubr.bf16.mxu0 0
        %1982 = vmatmul.mubr.bf16.gmra.mrb[0].mxu0 %v1734
        %v1983 = vpop.f32.mrb[0].mxu0
        %v1984 = vadd.f32 %v1772, %v1983
        %v1985 = vpop.f32.mrb[0].mxu0
        %v1986 = vadd.f32 %v1776, %v1985
        %v1987 = vpop.f32.mrb[0].mxu0
        %v1988 = vadd.f32 %v1772, %v1987
        %v1989 = vpop.f32.mrb[0].mxu0
        %v1990 = vadd.f32 %v1776, %v1989
        %1991 = vdwg.mxu0
        %1992 = vmatprep.subr.bf16.mxu0 %v1888
        %1993 = vmatpush1.bf16.msra.mxu0 %v1887
        %1994 = vmatprep.subr.bf16.mxu0 %v1892
        %1995 = vmatpush1.bf16.msra.mxu0 %v1891
        %1996 = vmatprep.subr.bf16.mxu0 %v1896
        %1997 = vmatpush1.bf16.msra.mxu0 %v1895
        %1998 = vmatprep.subr.bf16.mxu0 %v1900
        %1999 = vmatpush1.bf16.msra.mxu0 %v1899
        %2000 = vmatprep.subr.bf16.mxu0 %v1904
        %2001 = vmatpush1.bf16.msra.mxu0 %v1903
        %2002 = vmatprep.subr.bf16.mxu0 %v1908
        %2003 = vmatpush1.bf16.msra.mxu0 %v1907
        %2004 = vmatprep.subr.bf16.mxu0 %v1912
        %2005 = vmatpush1.bf16.msra.mxu0 %v1911
        %2006 = vmatprep.subr.bf16.mxu0 %v1916
        %2007 = vmatpush1.bf16.msra.mxu0 %v1915
        %2008 = vmatprep.subr.bf16.mxu0 0
        %2009 = vmatpush1.bf16.msra.mxu0 0
        %2010 = vmatprep.subr.bf16.mxu0 0
        %2011 = vmatpush1.bf16.msra.mxu0 0
        %2012 = vmatprep.subr.bf16.mxu0 0
        %2013 = vmatpush1.bf16.msra.mxu0 0
        %2014 = vmatprep.subr.bf16.mxu0 0
        %2015 = vmatpush1.bf16.msra.mxu0 0
        %2016 = vmatprep.subr.bf16.mxu0 0
        %2017 = vmatpush1.bf16.msra.mxu0 0
        %2018 = vmatprep.subr.bf16.mxu0 0
        %2019 = vmatpush1.bf16.msra.mxu0 0
        %2020 = vmatprep.subr.bf16.mxu0 0
        %2021 = vmatpush1.bf16.msra.mxu0 0
        %2022 = vmatprep.subr.bf16.mxu0 0
        %2023 = vmatpush1.bf16.msra.mxu0 0
        %2024 = vmatprep.mubr.bf16.mxu0 0
        %2025 = vmatmul.mubr.bf16.gmra.mrb[0].mxu0 %v1734
        %v2026 = vpop.f32.mrb[0].mxu0
        %v2027 = vadd.f32 %v1780, %v2026
        %v2028 = vpop.f32.mrb[0].mxu0
        %v2029 = vadd.f32 %v1784, %v2028
        %v2030 = vpop.f32.mrb[0].mxu0
        %v2031 = vadd.f32 %v1780, %v2030
        %v2032 = vpop.f32.mrb[0].mxu0
        %v2033 = vadd.f32 %v1784, %v2032
        %2034 = vdwg.mxu0
        %v2035 = vmul.f32 %v1984, 0.5
        %v2036 = vmul.f32 %v1986, 0.5
        %v2037 = vmul.f32 %v2027, 0.5
        %v2038 = vmul.f32 %v2029, 0.5
        %v2039 = vmul.f32 %v1988, 0.5
        %v2040 = vmul.f32 %v1990, 0.5
        %v2041 = vmul.f32 %v2031, 0.5
        %v2042 = vmul.f32 %v2033, 0.5
        %v2043 = vmul.f32 %v1984, 0.70710677
        %v2044 = vmul.f32 %v1986, 0.70710677
        %v2045 = vmul.f32 %v2027, 0.70710677
        %v2046 = vmul.f32 %v2029, 0.70710677
        %v2047 = vmul.f32 %v1988, 0.70710677
        %v2048 = vmul.f32 %v1990, 0.70710677
        %v2049 = vmul.f32 %v2031, 0.70710677
        %v2050 = vmul.f32 %v2033, 0.70710677
        %v2051 = verf.f32.pop %v2043
        %v2052 = verf.f32.pop %v2044
        %v2053 = verf.f32.pop %v2045
        %v2054 = verf.f32.pop %v2046
        %v2055 = verf.f32.pop %v2047
        %v2056 = verf.f32.pop %v2048
        %v2057 = verf.f32.pop %v2049
        %v2058 = verf.f32.pop %v2050
        %v2059 = vadd.f32 %v2051, 1.0
        %v2060 = vadd.f32 %v2052, 1.0
        %v2061 = vadd.f32 %v2053, 1.0
        %v2062 = vadd.f32 %v2054, 1.0
        %v2063 = vadd.f32 %v2055, 1.0
        %v2064 = vadd.f32 %v2056, 1.0
        %v2065 = vadd.f32 %v2057, 1.0
        %v2066 = vadd.f32 %v2058, 1.0
        %v2067 = vmul.f32 %v2035, %v2059
        %v2068 = vmul.f32 %v2036, %v2060
        %v2069 = vmul.f32 %v2037, %v2061
        %v2070 = vmul.f32 %v2038, %v2062
        %v2071 = vmul.f32 %v2039, %v2063
        %v2072 = vmul.f32 %v2040, %v2064
        %v2073 = vmul.f32 %v2041, %v2065
        %v2074 = vmul.f32 %v2042, %v2066
        %v2075 = vpack.c.bf16 %v2071, %v2067
        %v2076 = vpack.c.bf16 %v2072, %v2068
        %v2077 = vpack.c.bf16 %v2073, %v2069
        %v2078 = vpack.c.bf16 %v2074, %v2070
        %v2079 = vld [vmem:[%s789] sm:$0xf]
        %v2080 = vld [vmem:[%s789 + $0x4] sm:$0xf]
        %v2081 = vld [vmem:[%s789 + $0x8] sm:$0xf]
        %v2082 = vld [vmem:[%s789 + $0xc] sm:$0xf]
        %v2083 = vld [vmem:[%s789 + $0x10] sm:$0xf]
        %v2084 = vld [vmem:[%s789 + $0x14] sm:$0xf]
        %v2085 = vld [vmem:[%s789 + $0x18] sm:$0xf]
        %v2086 = vld [vmem:[%s789 + $0x1c] sm:$0xf]
        %v2087 = vld [vmem:[%s789 + $0x20] sm:$0xf]
        %v2088 = vld [vmem:[%s789 + $0x24] sm:$0xf]
        %v2089 = vld [vmem:[%s789 + $0x28] sm:$0xf]
        %v2090 = vld [vmem:[%s789 + $0x2c] sm:$0xf]
        %v2091 = vld [vmem:[%s789 + $0x30] sm:$0xf]
        %v2092 = vld [vmem:[%s789 + $0x34] sm:$0xf]
        %v2093 = vld [vmem:[%s789 + $0x38] sm:$0xf]
        %v2094 = vld [vmem:[%s789 + $0x3c] sm:$0xf]
        %v2095 = vld [vmem:[%s789 + $0x40] sm:$0xf]
        %v2096 = vld [vmem:[%s789 + $0x44] sm:$0xf]
        %v2097 = vld [vmem:[%s789 + $0x48] sm:$0xf]
        %v2098 = vld [vmem:[%s789 + $0x4c] sm:$0xf]
        %v2099 = vld [vmem:[%s789 + $0x50] sm:$0xf]
        %v2100 = vld [vmem:[%s789 + $0x54] sm:$0xf]
        %v2101 = vld [vmem:[%s789 + $0x58] sm:$0xf]
        %v2102 = vld [vmem:[%s789 + $0x5c] sm:$0xf]
        %v2103 = vld [vmem:[%s789 + $0x60] sm:$0xf]
        %v2104 = vld [vmem:[%s789 + $0x64] sm:$0xf]
        %v2105 = vld [vmem:[%s789 + $0x68] sm:$0xf]
        %v2106 = vld [vmem:[%s789 + $0x6c] sm:$0xf]
        %v2107 = vld [vmem:[%s789 + $0x70] sm:$0xf]
        %v2108 = vld [vmem:[%s789 + $0x74] sm:$0xf]
        %v2109 = vld [vmem:[%s789 + $0x78] sm:$0xf]
        %v2110 = vld [vmem:[%s789 + $0x7c] sm:$0xf]
        %v2111 = vld [vmem:[%s789 + $0x80] sm:$0xf]
        %v2112 = vld [vmem:[%s789 + $0x84] sm:$0xf]
        %v2113 = vld [vmem:[%s789 + $0x88] sm:$0xf]
        %v2114 = vld [vmem:[%s789 + $0x8c] sm:$0xf]
        %v2115 = vld [vmem:[%s789 + $0x90] sm:$0xf]
        %v2116 = vld [vmem:[%s789 + $0x94] sm:$0xf]
        %v2117 = vld [vmem:[%s789 + $0x98] sm:$0xf]
        %v2118 = vld [vmem:[%s789 + $0x9c] sm:$0xf]
        %v2119 = vld [vmem:[%s789 + $0xa0] sm:$0xf]
        %v2120 = vld [vmem:[%s789 + $0xa4] sm:$0xf]
        %v2121 = vld [vmem:[%s789 + $0xa8] sm:$0xf]
        %v2122 = vld [vmem:[%s789 + $0xac] sm:$0xf]
        %v2123 = vld [vmem:[%s789 + $0xb0] sm:$0xf]
        %v2124 = vld [vmem:[%s789 + $0xb4] sm:$0xf]
        %v2125 = vld [vmem:[%s789 + $0xb8] sm:$0xf]
        %v2126 = vld [vmem:[%s789 + $0xbc] sm:$0xf]
        %v2127 = vld [vmem:[%s789 + $0xc0] sm:$0xf]
        %v2128 = vld [vmem:[%s789 + $0xc4] sm:$0xf]
        %v2129 = vld [vmem:[%s789 + $0xc8] sm:$0xf]
        %v2130 = vld [vmem:[%s789 + $0xcc] sm:$0xf]
        %v2131 = vld [vmem:[%s789 + $0xd0] sm:$0xf]
        %v2132 = vld [vmem:[%s789 + $0xd4] sm:$0xf]
        %v2133 = vld [vmem:[%s789 + $0xd8] sm:$0xf]
        %v2134 = vld [vmem:[%s789 + $0xdc] sm:$0xf]
        %v2135 = vld [vmem:[%s789 + $0xe0] sm:$0xf]
        %v2136 = vld [vmem:[%s789 + $0xe4] sm:$0xf]
        %v2137 = vld [vmem:[%s789 + $0xe8] sm:$0xf]
        %v2138 = vld [vmem:[%s789 + $0xec] sm:$0xf]
        %v2139 = vld [vmem:[%s789 + $0xf0] sm:$0xf]
        %v2140 = vld [vmem:[%s789 + $0xf4] sm:$0xf]
        %v2141 = vld [vmem:[%s789 + $0xf8] sm:$0xf]
        %v2142 = vld [vmem:[%s789 + $0xfc] sm:$0xf]
        %v2207 = vunpack.c.l.b16 %v2079
        %v2208 = vunpack.c.l.b16 %v2080
        %v2209 = vunpack.c.l.b16 %v2081
        %v2210 = vunpack.c.l.b16 %v2082
        %v2211 = vunpack.c.l.b16 %v2083
        %v2212 = vunpack.c.l.b16 %v2084
        %v2213 = vunpack.c.l.b16 %v2085
        %v2214 = vunpack.c.l.b16 %v2086
        %v2215 = vunpack.c.l.b16 %v2087
        %v2216 = vunpack.c.l.b16 %v2088
        %v2217 = vunpack.c.l.b16 %v2089
        %v2218 = vunpack.c.l.b16 %v2090
        %v2219 = vunpack.c.l.b16 %v2091
        %v2220 = vunpack.c.l.b16 %v2092
        %v2221 = vunpack.c.l.b16 %v2093
        %v2222 = vunpack.c.l.b16 %v2094
        %v2223 = vunpack.c.l.b16 %v2095
        %v2224 = vunpack.c.l.b16 %v2096
        %v2225 = vunpack.c.l.b16 %v2097
        %v2226 = vunpack.c.l.b16 %v2098
        %v2227 = vunpack.c.l.b16 %v2099
        %v2228 = vunpack.c.l.b16 %v2100
        %v2229 = vunpack.c.l.b16 %v2101
        %v2230 = vunpack.c.l.b16 %v2102
        %v2231 = vunpack.c.l.b16 %v2103
        %v2232 = vunpack.c.l.b16 %v2104
        %v2233 = vunpack.c.l.b16 %v2105
        %v2234 = vunpack.c.l.b16 %v2106
        %v2235 = vunpack.c.l.b16 %v2107
        %v2236 = vunpack.c.l.b16 %v2108
        %v2237 = vunpack.c.l.b16 %v2109
        %v2238 = vunpack.c.l.b16 %v2110
        %v2239 = vunpack.c.l.b16 %v2111
        %v2240 = vunpack.c.l.b16 %v2112
        %v2241 = vunpack.c.l.b16 %v2113
        %v2242 = vunpack.c.l.b16 %v2114
        %v2243 = vunpack.c.l.b16 %v2115
        %v2244 = vunpack.c.l.b16 %v2116
        %v2245 = vunpack.c.l.b16 %v2117
        %v2246 = vunpack.c.l.b16 %v2118
        %v2247 = vunpack.c.l.b16 %v2119
        %v2248 = vunpack.c.l.b16 %v2120
        %v2249 = vunpack.c.l.b16 %v2121
        %v2250 = vunpack.c.l.b16 %v2122
        %v2251 = vunpack.c.l.b16 %v2123
        %v2252 = vunpack.c.l.b16 %v2124
        %v2253 = vunpack.c.l.b16 %v2125
        %v2254 = vunpack.c.l.b16 %v2126
        %v2255 = vunpack.c.l.b16 %v2127
        %v2256 = vunpack.c.l.b16 %v2128
        %v2257 = vunpack.c.l.b16 %v2129
        %v2258 = vunpack.c.l.b16 %v2130
        %v2259 = vunpack.c.l.b16 %v2131
        %v2260 = vunpack.c.l.b16 %v2132
        %v2261 = vunpack.c.l.b16 %v2133
        %v2262 = vunpack.c.l.b16 %v2134
        %v2263 = vunpack.c.l.b16 %v2135
        %v2264 = vunpack.c.l.b16 %v2136
        %v2265 = vunpack.c.l.b16 %v2137
        %v2266 = vunpack.c.l.b16 %v2138
        %v2267 = vunpack.c.l.b16 %v2139
        %v2268 = vunpack.c.l.b16 %v2140
        %v2269 = vunpack.c.l.b16 %v2141
        %v2270 = vunpack.c.l.b16 %v2142
        %v2271 = vpack.c.b16 %v2208, %v2207
        %v2272 = vpack.c.b16 %v2210, %v2209
        %v2273 = vpack.c.b16 %v2212, %v2211
        %v2274 = vpack.c.b16 %v2214, %v2213
        %v2275 = vpack.c.b16 %v2216, %v2215
        %v2276 = vpack.c.b16 %v2218, %v2217
        %v2277 = vpack.c.b16 %v2220, %v2219
        %v2278 = vpack.c.b16 %v2222, %v2221
        %v2279 = vpack.c.b16 %v2224, %v2223
        %v2280 = vpack.c.b16 %v2226, %v2225
        %v2281 = vpack.c.b16 %v2228, %v2227
        %v2282 = vpack.c.b16 %v2230, %v2229
        %v2283 = vpack.c.b16 %v2232, %v2231
        %v2284 = vpack.c.b16 %v2234, %v2233
        %v2285 = vpack.c.b16 %v2236, %v2235
        %v2286 = vpack.c.b16 %v2238, %v2237
        %v2287 = vpack.c.b16 %v2240, %v2239
        %v2288 = vpack.c.b16 %v2242, %v2241
        %v2289 = vpack.c.b16 %v2244, %v2243
        %v2290 = vpack.c.b16 %v2246, %v2245
        %v2291 = vpack.c.b16 %v2248, %v2247
        %v2292 = vpack.c.b16 %v2250, %v2249
        %v2293 = vpack.c.b16 %v2252, %v2251
        %v2294 = vpack.c.b16 %v2254, %v2253
        %v2295 = vpack.c.b16 %v2256, %v2255
        %v2296 = vpack.c.b16 %v2258, %v2257
        %v2297 = vpack.c.b16 %v2260, %v2259
        %v2298 = vpack.c.b16 %v2262, %v2261
        %v2299 = vpack.c.b16 %v2264, %v2263
        %v2300 = vpack.c.b16 %v2266, %v2265
        %v2301 = vpack.c.b16 %v2268, %v2267
        %v2302 = vpack.c.b16 %v2270, %v2269
        %2335 = vmatprep.subr.bf16.mxu0 0
        %2336 = vmatpush1.bf16.msra.mxu0 %v2271
        %2337 = vmatprep.subr.bf16.mxu0 0
        %2338 = vmatpush1.bf16.msra.mxu0 %v2272
        %2339 = vmatprep.subr.bf16.mxu0 0
        %2340 = vmatpush1.bf16.msra.mxu0 %v2273
        %2341 = vmatprep.subr.bf16.mxu0 0
        %2342 = vmatpush1.bf16.msra.mxu0 %v2274
        %2343 = vmatprep.subr.bf16.mxu0 0
        %2344 = vmatpush1.bf16.msra.mxu0 %v2275
        %2345 = vmatprep.subr.bf16.mxu0 0
        %2346 = vmatpush1.bf16.msra.mxu0 %v2276
        %2347 = vmatprep.subr.bf16.mxu0 0
        %2348 = vmatpush1.bf16.msra.mxu0 %v2277
        %2349 = vmatprep.subr.bf16.mxu0 0
        %2350 = vmatpush1.bf16.msra.mxu0 %v2278
        %2351 = vmatprep.subr.bf16.mxu0 0
        %2352 = vmatpush1.bf16.msra.mxu0 %v2279
        %2353 = vmatprep.subr.bf16.mxu0 0
        %2354 = vmatpush1.bf16.msra.mxu0 %v2280
        %2355 = vmatprep.subr.bf16.mxu0 0
        %2356 = vmatpush1.bf16.msra.mxu0 %v2281
        %2357 = vmatprep.subr.bf16.mxu0 0
        %2358 = vmatpush1.bf16.msra.mxu0 %v2282
        %2359 = vmatprep.subr.bf16.mxu0 0
        %2360 = vmatpush1.bf16.msra.mxu0 %v2283
        %2361 = vmatprep.subr.bf16.mxu0 0
        %2362 = vmatpush1.bf16.msra.mxu0 %v2284
        %2363 = vmatprep.subr.bf16.mxu0 0
        %2364 = vmatpush1.bf16.msra.mxu0 %v2285
        %2365 = vmatprep.subr.bf16.mxu0 0
        %2366 = vmatpush1.bf16.msra.mxu0 %v2286
        %2367 = vmatprep.mubr.bf16.mxu0 %v2076
        %2368 = vmatmul.mubr.bf16.gmra.mrb[0].mxu0 %v2075
        %v2369 = vpop.f32.mrb[0].mxu0
        %v2370 = vadd.f32 0.0, %v2369
        %v2371 = vpop.f32.mrb[0].mxu0
        %v2372 = vpop.f32.mrb[0].mxu0
        %v2373 = vadd.f32 0.0, %v2372
        %v2374 = vpop.f32.mrb[0].mxu0
        %2375 = vdwg.mxu0
        %2376 = vmatprep.subr.bf16.mxu0 0
        %2377 = vmatpush1.bf16.msra.mxu0 %v2287
        %2378 = vmatprep.subr.bf16.mxu0 0
        %2379 = vmatpush1.bf16.msra.mxu0 %v2288
        %2380 = vmatprep.subr.bf16.mxu0 0
        %2381 = vmatpush1.bf16.msra.mxu0 %v2289
        %2382 = vmatprep.subr.bf16.mxu0 0
        %2383 = vmatpush1.bf16.msra.mxu0 %v2290
        %2384 = vmatprep.subr.bf16.mxu0 0
        %2385 = vmatpush1.bf16.msra.mxu0 %v2291
        %2386 = vmatprep.subr.bf16.mxu0 0
        %2387 = vmatpush1.bf16.msra.mxu0 %v2292
        %2388 = vmatprep.subr.bf16.mxu0 0
        %2389 = vmatpush1.bf16.msra.mxu0 %v2293
        %2390 = vmatprep.subr.bf16.mxu0 0
        %2391 = vmatpush1.bf16.msra.mxu0 %v2294
        %2392 = vmatprep.subr.bf16.mxu0 0
        %2393 = vmatpush1.bf16.msra.mxu0 %v2295
        %2394 = vmatprep.subr.bf16.mxu0 0
        %2395 = vmatpush1.bf16.msra.mxu0 %v2296
        %2396 = vmatprep.subr.bf16.mxu0 0
        %2397 = vmatpush1.bf16.msra.mxu0 %v2297
        %2398 = vmatprep.subr.bf16.mxu0 0
        %2399 = vmatpush1.bf16.msra.mxu0 %v2298
        %2400 = vmatprep.subr.bf16.mxu0 0
        %2401 = vmatpush1.bf16.msra.mxu0 %v2299
        %2402 = vmatprep.subr.bf16.mxu0 0
        %2403 = vmatpush1.bf16.msra.mxu0 %v2300
        %2404 = vmatprep.subr.bf16.mxu0 0
        %2405 = vmatpush1.bf16.msra.mxu0 %v2301
        %2406 = vmatprep.subr.bf16.mxu0 0
        %2407 = vmatpush1.bf16.msra.mxu0 %v2302
        %2408 = vmatprep.mubr.bf16.mxu0 %v2078
        %2409 = vmatmul.mubr.bf16.gmra.mrb[0].mxu0 %v2077
        %v2410 = vpop.f32.mrb[0].mxu0
        %v2411 = vadd.f32 %v2370, %v2410
        %v2412 = vpop.f32.mrb[0].mxu0
        %v2413 = vpop.f32.mrb[0].mxu0
        %v2414 = vadd.f32 %v2373, %v2413
        %v2415 = vpop.f32.mrb[0].mxu0
        %2416 = vdwg.mxu0
        %v2417 = vadd.f32 %v1692, %v2411
        %v2418 = vadd.f32 %v1693, %v2414
        %v2419 = vld [vmem:[%s792] sm:$0x1]
        %v2421 = vlaneseq
        %v2422 = vshrl.u32 %v2421, 7
        %v2423 = vsub.s32 0, %v2422
        %v2424 = vrot.slane %v2419, %v2423
        %v2426 = vadd.f32 %v2417, %v2424
        %v2427 = vadd.f32 %v2418, %v2424
        %2428 = vst [vmem:[#allocation2] sm:$0xff] %v2426
        %2429 = vst [vmem:[#allocation2 + $0x8] sm:$0xff] %v2427
        %p2430 = scmp.eq.s32.totalorder %s38, 1
        // Predicated region
        $region93: #{backbone_and_heads.3} parent=87 // pred_check
          %p2431 = pneg %p2430
        $region94: #{backbone_and_heads.3} parent=87 // pred_check_branch
          %2433 = sbr.rel (%p2431) target = $region96
        $region95: #{backbone_and_heads.3} parent=87 // pred_region
          %v2434 = vld [vmem:[%s13] sm:$0x1]
          %v2435 = vld [vmem:[%s14] sm:$0x1]
          %2436 = vadd.xlane.f32.xlu0 %v2426
          %v2437 = vpop.xlane.xlu0 %2436
          %2438 = vadd.xlane.f32.xlu0 %v2427
          %v2439 = vpop.xlane.xlu0 %2438
          %v2440 = vmul.f32 %v2437, %v820
          %v2441 = vmul.f32 %v2439, %v820
          %v2442 = vsub.f32 %v2426, %v2440
          %v2443 = vsub.f32 %v2427, %v2441
          %v2444 = vmul.f32 %v2442, %v2442
          %v2445 = vmul.f32 %v2443, %v2443
          %2446 = vadd.xlane.f32.xlu0 %v2444
          %v2447 = vpop.xlane.xlu0 %2446
          %2448 = vadd.xlane.f32.xlu0 %v2445
          %v2449 = vpop.xlane.xlu0 %2448
          %v2450 = vmul.f32 %v2447, %v820
          %v2451 = vmul.f32 %v2449, %v820
          %v2452 = vadd.f32 %v2450, 1e-06
          %v2453 = vadd.f32 %v2451, 1e-06
          %v2454 = vrsqrt.pop %v2452
          %v2455 = vrsqrt.pop %v2453
          %v2456 = vmul.f32 %v2442, %v2454
          %v2457 = vmul.f32 %v2443, %v2455
          %v2459 = vlaneseq
          %v2460 = vshrl.u32 %v2459, 7
          %v2461 = vsub.s32 0, %v2460
          %v2462 = vrot.slane %v2434, %v2461
          %v2464 = vmul.f32 %v2456, %v2462
          %v2465 = vmul.f32 %v2457, %v2462
          %v2467 = vlaneseq
          %v2468 = vshrl.u32 %v2467, 7
          %v2469 = vsub.s32 0, %v2468
          %v2470 = vrot.slane %v2435, %v2469
          %v2472 = vadd.f32 %v2464, %v2470
          %v2473 = vadd.f32 %v2465, %v2470
          %v2474 = vld [vmem:[%s15] sm:$0xff]
          %v2475 = vld [vmem:[%s15 + $0x8] sm:$0xff]
          %v2476 = vld [vmem:[%s15 + $0x10] sm:$0xff]
          %v2477 = vld [vmem:[%s15 + $0x18] sm:$0xff]
          %v2478 = vld [vmem:[%s15 + $0x20] sm:$0xff]
          %v2479 = vld [vmem:[%s15 + $0x28] sm:$0xff]
          %v2480 = vld [vmem:[%s15 + $0x30] sm:$0xff]
          %v2481 = vld [vmem:[%s15 + $0x38] sm:$0xff]
          %v2482 = vld [vmem:[%s15 + $0x40] sm:$0xff]
          %v2483 = vld [vmem:[%s15 + $0x48] sm:$0xff]
          %v2484 = vld [vmem:[%s15 + $0x50] sm:$0xff]
          %v2485 = vld [vmem:[%s15 + $0x58] sm:$0xff]
          %v2486 = vld [vmem:[%s15 + $0x60] sm:$0xff]
          %v2487 = vld [vmem:[%s15 + $0x68] sm:$0xff]
          %v2488 = vld [vmem:[%s15 + $0x70] sm:$0xff]
          %v2489 = vld [vmem:[%s15 + $0x78] sm:$0xff]
          %v2490 = vld [vmem:[%s16] sm:$0x1]
          %v2492 = vlaneseq
          %v2493 = vshrl.u32 %v2492, 7
          %v2494 = vsub.s32 0, %v2493
          %v2495 = vrot.slane %v2490, %v2494
          %v2499 = vrot.slane %v2473, 7
          %vm2500 = vcmask 1041409
          %v2501 = vsel %vm2500, %v2499, %v2472
          %2503 = vmatprep.subr.mxu0 0.0
          %2504 = vmatpush1.msra.mxu0 %v2474
          %2505 = vmatprep.subr.mxu0 0.0
          %2506 = vmatpush1.msra.mxu0 %v2475
          %2507 = vmatprep.subr.mxu0 0.0
          %2508 = vmatpush1.msra.mxu0 %v2476
          %2509 = vmatprep.subr.mxu0 0.0
          %2510 = vmatpush1.msra.mxu0 %v2477
          %2511 = vmatprep.subr.mxu0 0.0
          %2512 = vmatpush1.msra.mxu0 %v2478
          %2513 = vmatprep.subr.mxu0 0.0
          %2514 = vmatpush1.msra.mxu0 %v2479
          %2515 = vmatprep.subr.mxu0 0.0
          %2516 = vmatpush1.msra.mxu0 %v2480
          %2517 = vmatprep.subr.mxu0 0.0
          %2518 = vmatpush1.msra.mxu0 %v2481
          %2519 = vmatprep.subr.mxu0 0.0
          %2520 = vmatpush1.msra.mxu0 %v2482
          %2521 = vmatprep.subr.mxu0 0.0
          %2522 = vmatpush1.msra.mxu0 %v2483
          %2523 = vmatprep.subr.mxu0 0.0
          %2524 = vmatpush1.msra.mxu0 %v2484
          %2525 = vmatprep.subr.mxu0 0.0
          %2526 = vmatpush1.msra.mxu0 %v2485
          %2527 = vmatprep.subr.mxu0 0.0
          %2528 = vmatpush1.msra.mxu0 %v2486
          %2529 = vmatprep.subr.mxu0 0.0
          %2530 = vmatpush1.msra.mxu0 %v2487
          %2531 = vmatprep.subr.mxu0 0.0
          %2532 = vmatpush1.msra.mxu0 %v2488
          %2533 = vmatprep.subr.mxu0 0.0
          %2534 = vmatpush1.msra.mxu0 %v2489
          %2535 = vmatprep.subr.mxu0 0.0
          %2536 = vmatpush1.msra.mxu0 0.0
          %2537 = vmatprep.subr.mxu0 0.0
          %2538 = vmatpush1.msra.mxu0 0.0
          %2539 = vmatprep.subr.mxu0 0.0
          %2540 = vmatpush1.msra.mxu0 0.0
          %2541 = vmatprep.subr.mxu0 0.0
          %2542 = vmatpush1.msra.mxu0 0.0
          %2543 = vmatprep.subr.mxu0 0.0
          %2544 = vmatpush1.msra.mxu0 0.0
          %2545 = vmatprep.subr.mxu0 0.0
          %2546 = vmatpush1.msra.mxu0 0.0
          %2547 = vmatprep.subr.mxu0 0.0
          %2548 = vmatpush1.msra.mxu0 0.0
          %2549 = vmatprep.subr.mxu0 0.0
          %2550 = vmatpush1.msra.mxu0 0.0
          %2551 = vmatprep.subr.mxu0 0.0
          %2552 = vmatpush1.msra.mxu0 0.0
          %2553 = vmatprep.subr.mxu0 0.0
          %2554 = vmatpush1.msra.mxu0 0.0
          %2555 = vmatprep.subr.mxu0 0.0
          %2556 = vmatpush1.msra.mxu0 0.0
          %2557 = vmatprep.subr.mxu0 0.0
          %2558 = vmatpush1.msra.mxu0 0.0
          %2559 = vmatprep.subr.mxu0 0.0
          %2560 = vmatpush1.msra.mxu0 0.0
          %2561 = vmatprep.subr.mxu0 0.0
          %2562 = vmatpush1.msra.mxu0 0.0
          %2563 = vmatprep.subr.mxu0 0.0
          %2564 = vmatpush1.msra.mxu0 0.0
          %2565 = vmatprep.subr.mxu0 0.0
          %2566 = vmatpush1.msra.mxu0 0.0
          %2567 = vmatprep.mubr.f32.mxu0 0.0
          %2568 = vmatmul.mubr.f32.gmra.mrb[0].mxu0 %v2501
          %v2569 = vpop.f32.mrb[0].mxu0
          %v2570 = vadd.f32 %v2495, %v2569
          %v2571 = vpop.f32.mrb[0].mxu0
          %2572 = vdwg.mxu0
          %v2573 = vlaneseq
          %v2574 = vand.u32 %v2573, 127
          %vm2575 = vcmp.lt.s32.totalorder %v2574, 3
          %v2576 = vsel %vm2575, %v2570, -1e+30
          %vm2577 = vcmask 1041408
          %v2578 = vsel %vm2577, %v2576, -inf
          %2579 = vmax.xlane.f32.xlu0 %v2578
          %v2580 = vpop.xlane.xlu0 %2579
          %v2581 = vsub.f32 %v2570, %v2580
          %v2582 = vmul.f32 %v2581, 1.442695
          %v2583 = vpow.pop %v2582
          %v2584 = vsel %vm2575, %v2583, 0.0
          %v2585 = vsel %vm2577, %v2584, 0.0
          %2586 = vadd.xlane.f32.xlu0 %v2585
          %v2587 = vpop.xlane.xlu0 %2586
          %v2588 = vrcp.pop %v2587
          %v2589 = vmul.f32 %v2584, %v2588
          %vm2590 = vcmp.ge.s32.totalorder %v2574, 3
          %vm2591 = vcmp.lt.s32.totalorder %v2574, 15
          %vm2592 = vmand %vm2590, %vm2591
          %v2593 = vsub.f32 0.0, %v2570
          %v2594 = vmul.f32 %v2593, 1.442695
          %v2595 = vpow.pop %v2594
          %v2596 = vadd.f32 %v2595, 1.0
          %v2597 = vrcp.pop %v2596
          %v2598 = vmul.f32 1.0, %v2597
          %v2599 = vsel %vm2592, %v2598, 0.0
          %2600 = vst [vmem:[%s734] sm:$0x3] %v2501
          %v2601 = vadd.f32 %v2589, %v2599
          %2602 = vst [vmem:[%s796] sm:$0x3] %v2601
        $region96: #{backbone_and_heads.3} parent=87 // pred_fallthru
          _
        %s2603 = sand.u32 %s475, 1
        %s2604 = scalar_lea.sflag [#allocation5], %s2603
        %s2605 = sand.u32 %s475, 1
        %s2606 = smul.addr %s2605, 2
        %s2607 = scalar_lea.vmem [#allocation4], %s2606
        %p2608 = scmp.lt.s32.totalorder %s37, 1
        %s2609 = scalar_select %p2608, %s37, 1
        %s2610 = smul.addr %s2609, 2
        %s2611 = scalar_lea.vmem %s18, %s2610
        // Predicated region
        $region97: #{backbone_and_heads.3} parent=87 // pred_check
          %p2612 = pneg %p485
        $region98: #{backbone_and_heads.3} parent=87 // pred_check_branch
          %2614 = sbr.rel (%p2612) target = $region100
        $region99: #{backbone_and_heads.3} parent=87 // pred_region
          %s2616 = ssub.s32 32, 32
          %2617 = vsyncadd %s2604, %s2616
          %s2618 = smul.addr %s37, 32
          %s2619 = scalar_lea.hbm %s17, %s2618
          %s2621 = sshll.u32 %s2607, 4
          %s2622 = int_to_ptr.vmem [resolvable:$true] %s2621
          %2624 = dma.vmem_to_hbm [thread:$0]  %s2622, 32, %s2619, %s2604
        $region100: #{backbone_and_heads.3} parent=87 // pred_fallthru
          _
        // Predicated region
        $region101: #{backbone_and_heads.3} parent=87 // pred_check
          %p2625 = pneg %p511
        $region102: #{backbone_and_heads.3} parent=87 // pred_check_branch
          %2627 = sbr.rel (%p2625) target = $region104
        $region103: #{backbone_and_heads.3} parent=87 // pred_region
          _
        $region104: #{backbone_and_heads.3} parent=87 // pred_fallthru
          _
      $region88: #{backbone_and_heads.3} parent=5 // pred_fallthru
        _
      %p2628 = scmp.le.s32.totalorder 2, %s28
      // Predicated region
      $region105: #{backbone_and_heads.3} parent=5 // pred_check
        %p2629 = pneg %p2628
      $region106: #{backbone_and_heads.3} parent=5 // pred_check_branch
        %2631 = sbr.rel (%p2629) target = $region108
      $region107: #{backbone_and_heads.3} parent=5 // pred_region
        %s2632 = ssub.s32 %s28, 2
        // Predicated region
        $region109: #{backbone_and_heads.3} parent=107 // pred_check
          %p2633 = pneg %p491
        $region110: #{backbone_and_heads.3} parent=107 // pred_check_branch
          %2635 = sbr.rel (%p2633) target = $region112
        $region111: #{backbone_and_heads.3} parent=107 // pred_region
          %s2636 = sand.u32 %s476, 1
          %s2637 = scalar_lea.sflag [#allocation5], %s2636
          %s2638 = sand.u32 %s476, 1
          %s2639 = smul.addr %s2638, 2
          %s2640 = scalar_lea.vmem [#allocation4], %s2639
          %2641 = dma.done %s2637, 32
        $region112: #{backbone_and_heads.3} parent=107 // pred_fallthru
          _
        // Predicated region
        $region113: #{backbone_and_heads.3} parent=107 // pred_check
          %p2642 = pneg %p517
        $region114: #{backbone_and_heads.3} parent=107 // pred_check_branch
          %2644 = sbr.rel (%p2642) target = $region116
        $region115: #{backbone_and_heads.3} parent=107 // pred_region
          %p2645 = scmp.lt.s32.totalorder %s39, 1
          %s2646 = scalar_select %p2645, %s39, 1
          %s2647 = smul.addr %s2646, 2
          %s2648 = scalar_lea.vmem %s18, %s2647
        $region116: #{backbone_and_heads.3} parent=107 // pred_fallthru
          _
      $region108: #{backbone_and_heads.3} parent=5 // pred_fallthru
        _
    $region6: #{backbone_and_heads.3} parent=1 // loop_footer
      %s32 = sadd.s32 1, %s28
    $region7: #{backbone_and_heads.3} parent=1 // loop_footer_branch
      %27 = sbr.rel target = $region3
    $region8: #{backbone_and_heads.3} parent=1 // loop_exit
      _
    %2649 = vsyncpa [#allocation5], 1
    %s2650 = scalar_lea.sflag [#allocation5], 1
    %2651 = vsyncpa %s2650, 1

</llo_original>
